<compile_context>
chip_gen: v6e
topology: v6e:2x2x1
jax: 0.10.0
libtpu: 0.0.40
codegen_flags: <defaults>
</compile_context>

<pallas_src>
import math
import functools

import jax
import jax.numpy as jnp
from jax.experimental import pallas as pl
from jax.experimental.pallas import tpu as pltpu

EPS = 1e-6


def _encoder_block_kernel(H, D_K, BT, S,
                          x_ref, mask_ref,
                          wqkv_ref, bqkv_ref, wo_ref, bo_ref,
                          w1_ref, b1_ref, w2_ref, b2_ref,
                          ln1_a_ref, ln1_b_ref, ln2_a_ref, ln2_b_ref,
                          o_ref,
                          qkv_sc, attn_sc):
    R, D = x_ref.shape                      # R = BT * S rows per grid step
    cdt = wqkv_ref.dtype                    # bf16 compute dtype for MXU operands

    x = x_ref[...]                          # (R, D) f32

    def layer_norm(v, a_ref, b_ref):
        mean = jnp.mean(v, axis=-1, keepdims=True)
        # PyTorch x.std(dim=-1) is unbiased (divide by N-1); eps added to std, not variance.
        var = jnp.sum((v - mean) ** 2, axis=-1, keepdims=True) * (1.0 / (D - 1))
        # exact divide here (error would compound through both residual branches)
        return a_ref[...] * ((v - mean) / (jnp.sqrt(var) + EPS)) + b_ref[...]

    # ---- residual connection 0: self attention on pre-normed x ----
    xn = layer_norm(x, ln1_a_ref, ln1_b_ref).astype(cdt)
    # fused QKV projection (R, D) x (D, 3D) with f32 accumulation, bias add, ONE bf16 cast,
    # then parked in VMEM scratch so it is not live in vregs across the head loop.
    qkv_sc[...] = (jnp.dot(xn, wqkv_ref[...], preferred_element_type=jnp.float32)
                   + bqkv_ref[...]).astype(cdt)

    scale = 1.0 / math.sqrt(D_K)
    # additive key-padding mask bias, computed once (hoisted out of the head loop): (BT, 1, S)
    mask = mask_ref[...].reshape(BT, 1, S)
    bias = jnp.where(mask == 0.0, -1e9, 0.0)

    # Per-head attention; every head's output is staged into attn_sc at its lane offset so the
    # output projection below runs once with full contraction depth D.  Nothing large lives
    # across iterations of this (short, static) loop.
    for h in range(H):
        lo = h * D_K
        qh = qkv_sc[:, lo:lo + D_K].reshape(BT, S, D_K)
        kh = qkv_sc[:, D + lo:D + lo + D_K].reshape(BT, S, D_K)
        vh = qkv_sc[:, 2 * D + lo:2 * D + lo + D_K].reshape(BT, S, D_K)
        # scores: contract last dims directly (no explicit .T), batched over the BT sequences
        s = jnp.einsum('bqd,bkd->bqk', qh, kh,
                       preferred_element_type=jnp.float32) * scale + bias        # (BT, S, S)
        m = jnp.max(s, axis=-1, keepdims=True)
        p = jnp.exp(s - m)
        p = p * pl.reciprocal(jnp.sum(p, axis=-1, keepdims=True), approx=True)
        oh = jnp.einsum('bqk,bkd->bqd', p.astype(cdt), vh,
                        preferred_element_type=jnp.float32)                      # (BT, S, D_K)
        attn_sc[:, lo:lo + D_K] = oh.reshape(R, D_K).astype(cdt)

    # single full-K output projection: (R, D) @ (D, D)   (dropout = identity)
    x = x + jnp.dot(attn_sc[...], wo_ref[...],
                    preferred_element_type=jnp.float32) + bo_ref[...]

    # ---- residual connection 1: feed-forward on pre-normed x ----
    xn2 = layer_norm(x, ln2_a_ref, ln2_b_ref).astype(cdt)
    h1 = jnp.dot(xn2, w1_ref[...], preferred_element_type=jnp.float32) + b1_ref[...]
    h1 = jnp.maximum(h1, 0.0).astype(cdt)                                        # ReLU (dropout = identity)
    ff = jnp.dot(h1, w2_ref[...], preferred_element_type=jnp.float32) + b2_ref[...]

    o_ref[...] = x + ff


def _pick_batch_tile(B, S, target_rows):
    """Largest divisor of B with Bt*S <= max(target_rows, S), keeping >= 2 grid steps when B >= 2
    so the 'parallel' batch axis can shard across v7x's two TensorCores."""
    best = 1
    for bt in range(1, B + 1):
        if B % bt:
            continue
        if bt * S > max(target_rows, S):
            continue
        if B >= 2 and B // bt < 2:
            continue
        best = bt
    return best


def _vmem_limit_bytes(R, D, D_FF, vmem_cap):
    """Scoped-VMEM limit derived from actual block sizes, clamped to ~85% of physical VMEM."""
    w = 2 * (3 * D * D + D * D + D * D_FF + D_FF * D)        # bf16 weights (single-buffered)
    small = 4 * (6 * D + 2 * (3 * D) + 2 * D_FF)             # biases + LN params (f32)
    io = 2 * (R * D * 4) * 2                                 # x in + out blocks, double-buffered f32
    scratch = 2 * R * (3 * D + D)                            # bf16 qkv + attn staging scratches
    live = 3 * R * max(3 * D, D_FF) * 4                      # headroom for f32 intermediates
    need = w + small + io + scratch + live
    hi = int(vmem_cap * 0.85)
    return int(max(min(need, hi), min(32 << 20, hi)))


def encoder_block(x, src_mask, params, *, num_heads, compute_dtype=jnp.bfloat16):
    """x: (B, S, D) f32, src_mask: (B, 1, 1, S) f32 key-padding mask (1=keep, 0=mask)."""
    B, S, D = x.shape
    D_FF = params["w1"].shape[1]
    d_k = D // num_heads

    try:
        vmem_cap = int(pltpu.get_tpu_info().vmem_capacity_bytes)
    except Exception:
        vmem_cap = 64 << 20                                  # conservative (v7x-class) fallback
    target_rows = 1024 if vmem_cap >= (96 << 20) else 512    # v5e/v6e: 128 MiB VMEM; v7x: 64 MiB

    Bt = _pick_batch_tile(B, S, target_rows)
    R = Bt * S

    # host-side fusion + bf16 cast of the matmul weights (biases / LN params stay f32)
    w_qkv = jnp.concatenate([params["wq"], params["wk"], params["wv"]], axis=1).astype(compute_dtype)
    b_qkv = jnp.concatenate([params["bq"], params["bk"], params["bv"]], axis=1).astype(jnp.float32)
    wo = params["wo"].astype(compute_dtype)
    w1 = params["w1"].astype(compute_dtype)
    w2 = params["w2"].astype(compute_dtype)

    x2 = x.reshape(B * S, D)

    kernel = functools.partial(_encoder_block_kernel, num_heads, d_k, Bt, S)

    def build_in_specs(single_buffer_weights):
        def rep(shape):
            idx = lambda b, _n=len(shape): (0,) * _n
            if single_buffer_weights:
                return pl.BlockSpec(shape, idx, pipeline_mode=pl.Buffered(1))
            return pl.BlockSpec(shape, idx)
        return [
            pl.BlockSpec((R, D), lambda b: (b, 0)),              # x (flattened rows)
            pl.BlockSpec((Bt, 1, 1, S), lambda b: (b, 0, 0, 0)), # mask
            rep((D, 3 * D)), rep((1, 3 * D)),                    # fused w_qkv, b_qkv
            rep((D, D)), rep((1, D)),                            # wo, bo
            rep((D, D_FF)), rep((1, D_FF)),                      # w1, b1
            rep((D_FF, D)), rep((1, D)),                         # w2, b2
            rep((1, D)), rep((1, D)),                            # ln1 alpha, bias
            rep((1, D)), rep((1, D)),                            # ln2 alpha, bias
        ]

    def run(single_buffer_weights):
        return pl.pallas_call(
            kernel,
            out_shape=jax.ShapeDtypeStruct((B * S, D), jnp.float32),
            grid_spec=pltpu.PrefetchScalarGridSpec(
                num_scalar_prefetch=0,
                grid=(B // Bt,),
                in_specs=build_in_specs(single_buffer_weights),
                out_specs=pl.BlockSpec((R, D), lambda b: (b, 0)),
                scratch_shapes=[
                    pltpu.VMEM((R, 3 * D), compute_dtype),       # fused qkv (bf16)
                    pltpu.VMEM((R, D), compute_dtype),           # staged head outputs (bf16)
                ],
            ),
            compiler_params=pltpu.CompilerParams(
                dimension_semantics=("parallel",),               # batch steps are independent
                vmem_limit_bytes=_vmem_limit_bytes(R, D, D_FF, vmem_cap),
            ),
        )(x2, src_mask,
          w_qkv, b_qkv, wo, params["bo"],
          w1, params["b1"], w2, params["b2"],
          params["ln1_a"], params["ln1_b"], params["ln2_a"], params["ln2_b"])

    try:
        out = run(True)     # single-buffered weight blocks (halves weight-resident VMEM)
    except Exception:
        out = run(False)    # fall back to default (double-buffered) specs if Buffered(1) rejected
    return out.reshape(B, S, D)


def encoder_block_ref(x, src_mask, params, *, num_heads):
    """Pure-JAX f32 reference with identical math (PyTorch semantics)."""
    B, S, D = x.shape
    d_k = D // num_heads

    def layer_norm(v, a, b):
        mean = jnp.mean(v, axis=-1, keepdims=True)
        var = jnp.sum((v - mean) ** 2, axis=-1, keepdims=True) / (D - 1)
        return a * (v - mean) / (jnp.sqrt(var) + EPS) + b

    xn = layer_norm(x, params["ln1_a"], params["ln1_b"])
    q = xn @ params["wq"] + params["bq"]
    k = xn @ params["wk"] + params["bk"]
    v = xn @ params["wv"] + params["bv"]
    q = q.reshape(B, S, num_heads, d_k).transpose(0, 2, 1, 3)
    k = k.reshape(B, S, num_heads, d_k).transpose(0, 2, 1, 3)
    v = v.reshape(B, S, num_heads, d_k).transpose(0, 2, 1, 3)
    scores = jnp.einsum("bhqd,bhkd->bhqk", q, k) / math.sqrt(d_k)
    scores = jnp.where(src_mask == 0.0, -1e9, scores)
    p = jax.nn.softmax(scores, axis=-1)
    attn = jnp.einsum("bhqk,bhkd->bhqd", p, v).transpose(0, 2, 1, 3).reshape(B, S, D)
    x = x + (attn @ params["wo"] + params["bo"])

    xn2 = layer_norm(x, params["ln2_a"], params["ln2_b"])
    ff = jnp.maximum(xn2 @ params["w1"] + params["b1"], 0.0) @ params["w2"] + params["b2"]
    return x + ff


if __name__ == "__main__":
    B, S, D, H, D_FF = 2, 8, 32, 4, 64

    key = jax.random.PRNGKey(0)
    keys = jax.random.split(key, 10)

    def lin(k, fan_in, shape):
        return jax.random.normal(k, shape, jnp.float32) / math.sqrt(fan_in)

    params = {
        "wq": lin(keys[0], D, (D, D)), "bq": jnp.zeros((1, D), jnp.float32),
        "wk": lin(keys[1], D, (D, D)), "bk": jnp.zeros((1, D), jnp.float32),
        "wv": lin(keys[2], D, (D, D)), "bv": jnp.zeros((1, D), jnp.float32),
        "wo": lin(keys[3], D, (D, D)), "bo": jnp.zeros((1, D), jnp.float32),
        "w1": lin(keys[4], D, (D, D_FF)), "b1": 0.01 * jnp.ones((1, D_FF), jnp.float32),
        "w2": lin(keys[5], D_FF, (D_FF, D)), "b2": 0.01 * jnp.ones((1, D), jnp.float32),
        "ln1_a": jnp.ones((1, D), jnp.float32), "ln1_b": jnp.zeros((1, D), jnp.float32),
        "ln2_a": jnp.ones((1, D), jnp.float32), "ln2_b": jnp.zeros((1, D), jnp.float32),
    }

    x = jax.random.normal(keys[6], (B, S, D), jnp.float32)
    # key-padding mask: batch 0 sees all 8 tokens, batch 1 sees only the first 6.
    lengths = jnp.array([8, 6])
    mask = (jnp.arange(S)[None, :] < lengths[:, None]).astype(jnp.float32)
    src_mask = mask.reshape(B, 1, 1, S)

    out = encoder_block(x, src_mask, params, num_heads=H)
    out = jax.block_until_ready(out)

    # Reference uses the same bf16-quantized weight values the kernel sees (f32 math otherwise),
    # so the comparison isolates kernel correctness from the deliberate weight-precision choice.
    params_q = dict(params)
    for name in ("wq", "wk", "wv", "wo", "w1", "w2"):
        params_q[name] = params[name].astype(jnp.bfloat16).astype(jnp.float32)
    ref = encoder_block_ref(x, src_mask, params_q, num_heads=H)

    assert out.shape == (B, S, D)
    assert jnp.allclose(out, ref, atol=3e-2, rtol=3e-2), "mismatch vs JAX reference"

    print("KERNEL_OK")
</pallas_src>

<mosaic_0001>
module attributes {stable_mosaic.version = 11 : i64} {
  func.func @_encoder_block_kernel(%arg0: i32, %arg1: memref<8x32xf32, #tpu.memory_space<vmem>>, %arg2: memref<1x1x1x8xf32, #tpu.memory_space<vmem>>, %arg3: memref<32x96xbf16, #tpu.memory_space<vmem>>, %arg4: memref<1x96xf32, #tpu.memory_space<vmem>>, %arg5: memref<32x32xbf16, #tpu.memory_space<vmem>>, %arg6: memref<1x32xf32, #tpu.memory_space<vmem>>, %arg7: memref<32x64xbf16, #tpu.memory_space<vmem>>, %arg8: memref<1x64xf32, #tpu.memory_space<vmem>>, %arg9: memref<64x32xbf16, #tpu.memory_space<vmem>>, %arg10: memref<1x32xf32, #tpu.memory_space<vmem>>, %arg11: memref<1x32xf32, #tpu.memory_space<vmem>>, %arg12: memref<1x32xf32, #tpu.memory_space<vmem>>, %arg13: memref<1x32xf32, #tpu.memory_space<vmem>>, %arg14: memref<1x32xf32, #tpu.memory_space<vmem>>, %arg15: memref<8x32xf32, #tpu.memory_space<vmem>>, %arg16: memref<8x96xbf16, #tpu.memory_space<vmem>>, %arg17: memref<8x32xbf16, #tpu.memory_space<vmem>>) attributes {dimension_semantics = [#tpu.dimension_semantics<parallel>], iteration_bounds = array<i64: 2>, scalar_prefetch = 0 : i64, scratch_operands = 2 : i64, tpu.core_type = #tpu.core_type<tc>, window_params = [{transform_indices = @transform_0, window_bounds = array<i64: 8, 32>}, {transform_indices = @transform_1, window_bounds = array<i64: 1, 1, 1, 8>}, {pipeline_mode = #tpu.pipeline_mode<synchronous>, transform_indices = @transform_2, window_bounds = array<i64: 32, 96>}, {pipeline_mode = #tpu.pipeline_mode<synchronous>, transform_indices = @transform_3, window_bounds = array<i64: 1, 96>}, {pipeline_mode = #tpu.pipeline_mode<synchronous>, transform_indices = @transform_4, window_bounds = array<i64: 32, 32>}, {pipeline_mode = #tpu.pipeline_mode<synchronous>, transform_indices = @transform_5, window_bounds = array<i64: 1, 32>}, {pipeline_mode = #tpu.pipeline_mode<synchronous>, transform_indices = @transform_6, window_bounds = array<i64: 32, 64>}, {pipeline_mode = #tpu.pipeline_mode<synchronous>, transform_indices = @transform_7, window_bounds = array<i64: 1, 64>}, {pipeline_mode = #tpu.pipeline_mode<synchronous>, transform_indices = @transform_8, window_bounds = array<i64: 64, 32>}, {pipeline_mode = #tpu.pipeline_mode<synchronous>, transform_indices = @transform_9, window_bounds = array<i64: 1, 32>}, {pipeline_mode = #tpu.pipeline_mode<synchronous>, transform_indices = @transform_10, window_bounds = array<i64: 1, 32>}, {pipeline_mode = #tpu.pipeline_mode<synchronous>, transform_indices = @transform_11, window_bounds = array<i64: 1, 32>}, {pipeline_mode = #tpu.pipeline_mode<synchronous>, transform_indices = @transform_12, window_bounds = array<i64: 1, 32>}, {pipeline_mode = #tpu.pipeline_mode<synchronous>, transform_indices = @transform_13, window_bounds = array<i64: 1, 32>}, {transform_indices = @transform_14, window_bounds = array<i64: 8, 32>}]} {
    %c0 = arith.constant 0 : index
    %c0_0 = arith.constant 0 : index
    %0 = vector.load %arg1[%c0, %c0_0] : memref<8x32xf32, #tpu.memory_space<vmem>>, vector<8x32xf32>
    %cst = arith.constant dense<0.000000e+00> : vector<8xf32>
    %1 = vector.multi_reduction <add>, %0, %cst [1] : vector<8x32xf32> to vector<8xf32>
    %2 = vector.shape_cast %1 : vector<8xf32> to vector<8x1xf32>
    %cst_1 = arith.constant 3.200000e+01 : f32
    %3 = vector.broadcast %cst_1 : f32 to vector<8x1xf32>
    %4 = arith.divf %2, %3 : vector<8x1xf32>
    %5 = vector.broadcast %4 : vector<8x1xf32> to vector<8x32xf32>
    %6 = arith.subf %0, %5 : vector<8x32xf32>
    %7 = arith.mulf %6, %6 : vector<8x32xf32>
    %cst_2 = arith.constant dense<0.000000e+00> : vector<8xf32>
    %8 = vector.multi_reduction <add>, %7, %cst_2 [1] : vector<8x32xf32> to vector<8xf32>
    %9 = vector.shape_cast %8 : vector<8xf32> to vector<8x1xf32>
    %cst_3 = arith.constant 0.0322580636 : f32
    %10 = vector.broadcast %cst_3 : f32 to vector<8x1xf32>
    %11 = arith.mulf %9, %10 : vector<8x1xf32>
    %c0_4 = arith.constant 0 : index
    %c0_5 = arith.constant 0 : index
    %12 = vector.load %arg11[%c0_4, %c0_5] : memref<1x32xf32, #tpu.memory_space<vmem>>, vector<1x32xf32>
    %13 = vector.broadcast %4 : vector<8x1xf32> to vector<8x32xf32>
    %14 = arith.subf %0, %13 : vector<8x32xf32>
    %15 = math.sqrt %11 : vector<8x1xf32>
    %cst_6 = arith.constant 9.99999997E-7 : f32
    %16 = vector.broadcast %cst_6 : f32 to vector<8x1xf32>
    %17 = arith.addf %15, %16 : vector<8x1xf32>
    %18 = vector.broadcast %17 : vector<8x1xf32> to vector<8x32xf32>
    %19 = arith.divf %14, %18 : vector<8x32xf32>
    %20 = vector.broadcast %12 : vector<1x32xf32> to vector<8x32xf32>
    %21 = arith.mulf %20, %19 : vector<8x32xf32>
    %c0_7 = arith.constant 0 : index
    %c0_8 = arith.constant 0 : index
    %22 = vector.load %arg12[%c0_7, %c0_8] : memref<1x32xf32, #tpu.memory_space<vmem>>, vector<1x32xf32>
    %23 = vector.broadcast %22 : vector<1x32xf32> to vector<8x32xf32>
    %24 = arith.addf %21, %23 : vector<8x32xf32>
    %25 = arith.truncf %24 : vector<8x32xf32> to vector<8x32xbf16>
    %c0_9 = arith.constant 0 : index
    %c0_10 = arith.constant 0 : index
    %26 = vector.load %arg3[%c0_9, %c0_10] : memref<32x96xbf16, #tpu.memory_space<vmem>>, vector<32x96xbf16>
    %cst_11 = arith.constant dense<0.000000e+00> : vector<8x96xf32>
    %27 = tpu.matmul %25, %26, %cst_11 {dimension_numbers = #tpu.dot_dimension_numbers<[1], [0], [0], [1], [0, 0, 1, 1], [], []>} : vector<8x32xbf16>, vector<32x96xbf16>, vector<8x96xf32> -> vector<8x96xf32>
    %c0_12 = arith.constant 0 : index
    %c0_13 = arith.constant 0 : index
    %28 = vector.load %arg4[%c0_12, %c0_13] : memref<1x96xf32, #tpu.memory_space<vmem>>, vector<1x96xf32>
    %29 = vector.broadcast %28 : vector<1x96xf32> to vector<8x96xf32>
    %30 = arith.addf %27, %29 : vector<8x96xf32>
    %31 = arith.truncf %30 : vector<8x96xf32> to vector<8x96xbf16>
    %c0_14 = arith.constant 0 : index
    %c0_15 = arith.constant 0 : index
    %32 = vector.load %arg16[%c0_14, %c0_15] : memref<8x96xbf16, #tpu.memory_space<vmem>>, vector<8x96xbf16>
    tpu.vector_store %arg16[%c0_14, %c0_15], %31 {strides = array<i32>} : memref<8x96xbf16, #tpu.memory_space<vmem>>, vector<8x96xbf16>,
    %c0_16 = arith.constant 0 : index
    %c0_17 = arith.constant 0 : index
    %c0_18 = arith.constant 0 : index
    %c0_19 = arith.constant 0 : index
    %33 = vector.load %arg2[%c0_16, %c0_17, %c0_18, %c0_19] : memref<1x1x1x8xf32, #tpu.memory_space<vmem>>, vector<1x1x1x8xf32>
    %34 = vector.shape_cast %33 : vector<1x1x1x8xf32> to vector<1x1x8xf32>
    %cst_20 = arith.constant 0.000000e+00 : f32
    %35 = vector.broadcast %cst_20 : f32 to vector<1x1x8xf32>
    %36 = arith.cmpf oeq, %34, %35 : vector<1x1x8xf32>
    %cst_21 = arith.constant -1.000000e+09 : f32
    %cst_22 = arith.constant 0.000000e+00 : f32
    %37 = vector.broadcast %cst_21 : f32 to vector<1x1x8xf32>
    %38 = vector.broadcast %cst_22 : f32 to vector<1x1x8xf32>
    %39 = arith.select %36, %37, %38 : vector<1x1x8xi1>, vector<1x1x8xf32>
    %c0_23 = arith.constant 0 : index
    %c0_24 = arith.constant 0 : index
    %40 = vector.load %arg16[%c0_23, %c0_24] : memref<8x96xbf16, #tpu.memory_space<vmem>>, vector<8x8xbf16>
    %41 = vector.shape_cast %40 : vector<8x8xbf16> to vector<1x8x8xbf16>
    %c0_25 = arith.constant 0 : index
    %c32 = arith.constant 32 : index
    %42 = vector.load %arg16[%c0_25, %c32] : memref<8x96xbf16, #tpu.memory_space<vmem>>, vector<8x8xbf16>
    %43 = vector.shape_cast %42 : vector<8x8xbf16> to vector<1x8x8xbf16>
    %c0_26 = arith.constant 0 : index
    %c64 = arith.constant 64 : index
    %44 = vector.load %arg16[%c0_26, %c64] : memref<8x96xbf16, #tpu.memory_space<vmem>>, vector<8x8xbf16>
    %45 = vector.shape_cast %44 : vector<8x8xbf16> to vector<1x8x8xbf16>
    "tpu.trace_start"() <{level = 10 : i32, message = "bqd,bkd->bqk"}> : () -> ()
    %cst_27 = arith.constant dense<0.000000e+00> : vector<1x8x8xf32>
    %46 = tpu.matmul %41, %43, %cst_27 {dimension_numbers = #tpu.dot_dimension_numbers<[2], [2], [1], [1], [0, 0, 0, 1, 1, 1], [0], [0]>} : vector<1x8x8xbf16>, vector<1x8x8xbf16>, vector<1x8x8xf32> -> vector<1x8x8xf32>
    "tpu.trace_stop"() : () -> ()
    %cst_28 = arith.constant 0.353553385 : f32
    %47 = vector.broadcast %cst_28 : f32 to vector<1x8x8xf32>
    %48 = arith.mulf %46, %47 : vector<1x8x8xf32>
    %49 = vector.broadcast %39 : vector<1x1x8xf32> to vector<1x8x8xf32>
    %50 = arith.addf %48, %49 : vector<1x8x8xf32>
    %cst_29 = arith.constant dense<0xFF800000> : vector<1x8xf32>
    %51 = vector.multi_reduction <maximumf>, %50, %cst_29 [2] : vector<1x8x8xf32> to vector<1x8xf32>
    %52 = vector.shape_cast %51 : vector<1x8xf32> to vector<1x8x1xf32>
    %53 = vector.broadcast %52 : vector<1x8x1xf32> to vector<1x8x8xf32>
    %54 = arith.subf %50, %53 : vector<1x8x8xf32>
    %55 = math.exp %54 : vector<1x8x8xf32>
    %cst_30 = arith.constant dense<0.000000e+00> : vector<1x8xf32>
    %56 = vector.multi_reduction <add>, %55, %cst_30 [2] : vector<1x8x8xf32> to vector<1x8xf32>
    %57 = vector.shape_cast %56 : vector<1x8xf32> to vector<1x8x1xf32>
    %58 = tpu.reciprocal %57 {approx = true} : vector<1x8x1xf32> -> vector<1x8x1xf32>
    %59 = vector.broadcast %58 : vector<1x8x1xf32> to vector<1x8x8xf32>
    %60 = arith.mulf %55, %59 : vector<1x8x8xf32>
    %61 = arith.truncf %60 : vector<1x8x8xf32> to vector<1x8x8xbf16>
    "tpu.trace_start"() <{level = 10 : i32, message = "bqk,bkd->bqd"}> : () -> ()
    %cst_31 = arith.constant dense<0.000000e+00> : vector<1x8x8xf32>
    %62 = tpu.matmul %61, %45, %cst_31 {dimension_numbers = #tpu.dot_dimension_numbers<[2], [1], [1], [2], [0, 0, 0, 1, 1, 2], [0], [0]>} : vector<1x8x8xbf16>, vector<1x8x8xbf16>, vector<1x8x8xf32> -> vector<1x8x8xf32>
    "tpu.trace_stop"() : () -> ()
    %63 = vector.shape_cast %62 : vector<1x8x8xf32> to vector<8x8xf32>
    %64 = arith.truncf %63 : vector<8x8xf32> to vector<8x8xbf16>
    %c0_32 = arith.constant 0 : index
    %c0_33 = arith.constant 0 : index
    %65 = vector.load %arg17[%c0_32, %c0_33] : memref<8x32xbf16, #tpu.memory_space<vmem>>, vector<8x8xbf16>
    tpu.vector_store %arg17[%c0_32, %c0_33], %64 {strides = array<i32>} : memref<8x32xbf16, #tpu.memory_space<vmem>>, vector<8x8xbf16>,
    %c0_34 = arith.constant 0 : index
    %c8 = arith.constant 8 : index
    %66 = vector.load %arg16[%c0_34, %c8] : memref<8x96xbf16, #tpu.memory_space<vmem>>, vector<8x8xbf16>
    %67 = vector.shape_cast %66 : vector<8x8xbf16> to vector<1x8x8xbf16>
    %c0_35 = arith.constant 0 : index
    %c40 = arith.constant 40 : index
    %68 = vector.load %arg16[%c0_35, %c40] : memref<8x96xbf16, #tpu.memory_space<vmem>>, vector<8x8xbf16>
    %69 = vector.shape_cast %68 : vector<8x8xbf16> to vector<1x8x8xbf16>
    %c0_36 = arith.constant 0 : index
    %c72 = arith.constant 72 : index
    %70 = vector.load %arg16[%c0_36, %c72] : memref<8x96xbf16, #tpu.memory_space<vmem>>, vector<8x8xbf16>
    %71 = vector.shape_cast %70 : vector<8x8xbf16> to vector<1x8x8xbf16>
    "tpu.trace_start"() <{level = 10 : i32, message = "bqd,bkd->bqk"}> : () -> ()
    %cst_37 = arith.constant dense<0.000000e+00> : vector<1x8x8xf32>
    %72 = tpu.matmul %67, %69, %cst_37 {dimension_numbers = #tpu.dot_dimension_numbers<[2], [2], [1], [1], [0, 0, 0, 1, 1, 1], [0], [0]>} : vector<1x8x8xbf16>, vector<1x8x8xbf16>, vector<1x8x8xf32> -> vector<1x8x8xf32>
    "tpu.trace_stop"() : () -> ()
    %cst_38 = arith.constant 0.353553385 : f32
    %73 = vector.broadcast %cst_38 : f32 to vector<1x8x8xf32>
    %74 = arith.mulf %72, %73 : vector<1x8x8xf32>
    %75 = vector.broadcast %39 : vector<1x1x8xf32> to vector<1x8x8xf32>
    %76 = arith.addf %74, %75 : vector<1x8x8xf32>
    %cst_39 = arith.constant dense<0xFF800000> : vector<1x8xf32>
    %77 = vector.multi_reduction <maximumf>, %76, %cst_39 [2] : vector<1x8x8xf32> to vector<1x8xf32>
    %78 = vector.shape_cast %77 : vector<1x8xf32> to vector<1x8x1xf32>
    %79 = vector.broadcast %78 : vector<1x8x1xf32> to vector<1x8x8xf32>
    %80 = arith.subf %76, %79 : vector<1x8x8xf32>
    %81 = math.exp %80 : vector<1x8x8xf32>
    %cst_40 = arith.constant dense<0.000000e+00> : vector<1x8xf32>
    %82 = vector.multi_reduction <add>, %81, %cst_40 [2] : vector<1x8x8xf32> to vector<1x8xf32>
    %83 = vector.shape_cast %82 : vector<1x8xf32> to vector<1x8x1xf32>
    %84 = tpu.reciprocal %83 {approx = true} : vector<1x8x1xf32> -> vector<1x8x1xf32>
    %85 = vector.broadcast %84 : vector<1x8x1xf32> to vector<1x8x8xf32>
    %86 = arith.mulf %81, %85 : vector<1x8x8xf32>
    %87 = arith.truncf %86 : vector<1x8x8xf32> to vector<1x8x8xbf16>
    "tpu.trace_start"() <{level = 10 : i32, message = "bqk,bkd->bqd"}> : () -> ()
    %cst_41 = arith.constant dense<0.000000e+00> : vector<1x8x8xf32>
    %88 = tpu.matmul %87, %71, %cst_41 {dimension_numbers = #tpu.dot_dimension_numbers<[2], [1], [1], [2], [0, 0, 0, 1, 1, 2], [0], [0]>} : vector<1x8x8xbf16>, vector<1x8x8xbf16>, vector<1x8x8xf32> -> vector<1x8x8xf32>
    "tpu.trace_stop"() : () -> ()
    %89 = vector.shape_cast %88 : vector<1x8x8xf32> to vector<8x8xf32>
    %90 = arith.truncf %89 : vector<8x8xf32> to vector<8x8xbf16>
    %c0_42 = arith.constant 0 : index
    %c8_43 = arith.constant 8 : index
    %91 = vector.load %arg17[%c0_42, %c8_43] : memref<8x32xbf16, #tpu.memory_space<vmem>>, vector<8x8xbf16>
    tpu.vector_store %arg17[%c0_42, %c8_43], %90 {strides = array<i32>} : memref<8x32xbf16, #tpu.memory_space<vmem>>, vector<8x8xbf16>,
    %c0_44 = arith.constant 0 : index
    %c16 = arith.constant 16 : index
    %92 = vector.load %arg16[%c0_44, %c16] : memref<8x96xbf16, #tpu.memory_space<vmem>>, vector<8x8xbf16>
    %93 = vector.shape_cast %92 : vector<8x8xbf16> to vector<1x8x8xbf16>
    %c0_45 = arith.constant 0 : index
    %c48 = arith.constant 48 : index
    %94 = vector.load %arg16[%c0_45, %c48] : memref<8x96xbf16, #tpu.memory_space<vmem>>, vector<8x8xbf16>
    %95 = vector.shape_cast %94 : vector<8x8xbf16> to vector<1x8x8xbf16>
    %c0_46 = arith.constant 0 : index
    %c80 = arith.constant 80 : index
    %96 = vector.load %arg16[%c0_46, %c80] : memref<8x96xbf16, #tpu.memory_space<vmem>>, vector<8x8xbf16>
    %97 = vector.shape_cast %96 : vector<8x8xbf16> to vector<1x8x8xbf16>
    "tpu.trace_start"() <{level = 10 : i32, message = "bqd,bkd->bqk"}> : () -> ()
    %cst_47 = arith.constant dense<0.000000e+00> : vector<1x8x8xf32>
    %98 = tpu.matmul %93, %95, %cst_47 {dimension_numbers = #tpu.dot_dimension_numbers<[2], [2], [1], [1], [0, 0, 0, 1, 1, 1], [0], [0]>} : vector<1x8x8xbf16>, vector<1x8x8xbf16>, vector<1x8x8xf32> -> vector<1x8x8xf32>
    "tpu.trace_stop"() : () -> ()
    %cst_48 = arith.constant 0.353553385 : f32
    %99 = vector.broadcast %cst_48 : f32 to vector<1x8x8xf32>
    %100 = arith.mulf %98, %99 : vector<1x8x8xf32>
    %101 = vector.broadcast %39 : vector<1x1x8xf32> to vector<1x8x8xf32>
    %102 = arith.addf %100, %101 : vector<1x8x8xf32>
    %cst_49 = arith.constant dense<0xFF800000> : vector<1x8xf32>
    %103 = vector.multi_reduction <maximumf>, %102, %cst_49 [2] : vector<1x8x8xf32> to vector<1x8xf32>
    %104 = vector.shape_cast %103 : vector<1x8xf32> to vector<1x8x1xf32>
    %105 = vector.broadcast %104 : vector<1x8x1xf32> to vector<1x8x8xf32>
    %106 = arith.subf %102, %105 : vector<1x8x8xf32>
    %107 = math.exp %106 : vector<1x8x8xf32>
    %cst_50 = arith.constant dense<0.000000e+00> : vector<1x8xf32>
    %108 = vector.multi_reduction <add>, %107, %cst_50 [2] : vector<1x8x8xf32> to vector<1x8xf32>
    %109 = vector.shape_cast %108 : vector<1x8xf32> to vector<1x8x1xf32>
    %110 = tpu.reciprocal %109 {approx = true} : vector<1x8x1xf32> -> vector<1x8x1xf32>
    %111 = vector.broadcast %110 : vector<1x8x1xf32> to vector<1x8x8xf32>
    %112 = arith.mulf %107, %111 : vector<1x8x8xf32>
    %113 = arith.truncf %112 : vector<1x8x8xf32> to vector<1x8x8xbf16>
    "tpu.trace_start"() <{level = 10 : i32, message = "bqk,bkd->bqd"}> : () -> ()
    %cst_51 = arith.constant dense<0.000000e+00> : vector<1x8x8xf32>
    %114 = tpu.matmul %113, %97, %cst_51 {dimension_numbers = #tpu.dot_dimension_numbers<[2], [1], [1], [2], [0, 0, 0, 1, 1, 2], [0], [0]>} : vector<1x8x8xbf16>, vector<1x8x8xbf16>, vector<1x8x8xf32> -> vector<1x8x8xf32>
    "tpu.trace_stop"() : () -> ()
    %115 = vector.shape_cast %114 : vector<1x8x8xf32> to vector<8x8xf32>
    %116 = arith.truncf %115 : vector<8x8xf32> to vector<8x8xbf16>
    %c0_52 = arith.constant 0 : index
    %c16_53 = arith.constant 16 : index
    %117 = vector.load %arg17[%c0_52, %c16_53] : memref<8x32xbf16, #tpu.memory_space<vmem>>, vector<8x8xbf16>
    tpu.vector_store %arg17[%c0_52, %c16_53], %116 {strides = array<i32>} : memref<8x32xbf16, #tpu.memory_space<vmem>>, vector<8x8xbf16>,
    %c0_54 = arith.constant 0 : index
    %c24 = arith.constant 24 : index
    %118 = vector.load %arg16[%c0_54, %c24] : memref<8x96xbf16, #tpu.memory_space<vmem>>, vector<8x8xbf16>
    %119 = vector.shape_cast %118 : vector<8x8xbf16> to vector<1x8x8xbf16>
    %c0_55 = arith.constant 0 : index
    %c56 = arith.constant 56 : index
    %120 = vector.load %arg16[%c0_55, %c56] : memref<8x96xbf16, #tpu.memory_space<vmem>>, vector<8x8xbf16>
    %121 = vector.shape_cast %120 : vector<8x8xbf16> to vector<1x8x8xbf16>
    %c0_56 = arith.constant 0 : index
    %c88 = arith.constant 88 : index
    %122 = vector.load %arg16[%c0_56, %c88] : memref<8x96xbf16, #tpu.memory_space<vmem>>, vector<8x8xbf16>
    %123 = vector.shape_cast %122 : vector<8x8xbf16> to vector<1x8x8xbf16>
    "tpu.trace_start"() <{level = 10 : i32, message = "bqd,bkd->bqk"}> : () -> ()
    %cst_57 = arith.constant dense<0.000000e+00> : vector<1x8x8xf32>
    %124 = tpu.matmul %119, %121, %cst_57 {dimension_numbers = #tpu.dot_dimension_numbers<[2], [2], [1], [1], [0, 0, 0, 1, 1, 1], [0], [0]>} : vector<1x8x8xbf16>, vector<1x8x8xbf16>, vector<1x8x8xf32> -> vector<1x8x8xf32>
    "tpu.trace_stop"() : () -> ()
    %cst_58 = arith.constant 0.353553385 : f32
    %125 = vector.broadcast %cst_58 : f32 to vector<1x8x8xf32>
    %126 = arith.mulf %124, %125 : vector<1x8x8xf32>
    %127 = vector.broadcast %39 : vector<1x1x8xf32> to vector<1x8x8xf32>
    %128 = arith.addf %126, %127 : vector<1x8x8xf32>
    %cst_59 = arith.constant dense<0xFF800000> : vector<1x8xf32>
    %129 = vector.multi_reduction <maximumf>, %128, %cst_59 [2] : vector<1x8x8xf32> to vector<1x8xf32>
    %130 = vector.shape_cast %129 : vector<1x8xf32> to vector<1x8x1xf32>
    %131 = vector.broadcast %130 : vector<1x8x1xf32> to vector<1x8x8xf32>
    %132 = arith.subf %128, %131 : vector<1x8x8xf32>
    %133 = math.exp %132 : vector<1x8x8xf32>
    %cst_60 = arith.constant dense<0.000000e+00> : vector<1x8xf32>
    %134 = vector.multi_reduction <add>, %133, %cst_60 [2] : vector<1x8x8xf32> to vector<1x8xf32>
    %135 = vector.shape_cast %134 : vector<1x8xf32> to vector<1x8x1xf32>
    %136 = tpu.reciprocal %135 {approx = true} : vector<1x8x1xf32> -> vector<1x8x1xf32>
    %137 = vector.broadcast %136 : vector<1x8x1xf32> to vector<1x8x8xf32>
    %138 = arith.mulf %133, %137 : vector<1x8x8xf32>
    %139 = arith.truncf %138 : vector<1x8x8xf32> to vector<1x8x8xbf16>
    "tpu.trace_start"() <{level = 10 : i32, message = "bqk,bkd->bqd"}> : () -> ()
    %cst_61 = arith.constant dense<0.000000e+00> : vector<1x8x8xf32>
    %140 = tpu.matmul %139, %123, %cst_61 {dimension_numbers = #tpu.dot_dimension_numbers<[2], [1], [1], [2], [0, 0, 0, 1, 1, 2], [0], [0]>} : vector<1x8x8xbf16>, vector<1x8x8xbf16>, vector<1x8x8xf32> -> vector<1x8x8xf32>
    "tpu.trace_stop"() : () -> ()
    %141 = vector.shape_cast %140 : vector<1x8x8xf32> to vector<8x8xf32>
    %142 = arith.truncf %141 : vector<8x8xf32> to vector<8x8xbf16>
    %c0_62 = arith.constant 0 : index
    %c24_63 = arith.constant 24 : index
    %143 = vector.load %arg17[%c0_62, %c24_63] : memref<8x32xbf16, #tpu.memory_space<vmem>>, vector<8x8xbf16>
    tpu.vector_store %arg17[%c0_62, %c24_63], %142 {strides = array<i32>} : memref<8x32xbf16, #tpu.memory_space<vmem>>, vector<8x8xbf16>,
    %c0_64 = arith.constant 0 : index
    %c0_65 = arith.constant 0 : index
    %144 = vector.load %arg17[%c0_64, %c0_65] : memref<8x32xbf16, #tpu.memory_space<vmem>>, vector<8x32xbf16>
    %c0_66 = arith.constant 0 : index
    %c0_67 = arith.constant 0 : index
    %145 = vector.load %arg5[%c0_66, %c0_67] : memref<32x32xbf16, #tpu.memory_space<vmem>>, vector<32x32xbf16>
    %cst_68 = arith.constant dense<0.000000e+00> : vector<8x32xf32>
    %146 = tpu.matmul %144, %145, %cst_68 {dimension_numbers = #tpu.dot_dimension_numbers<[1], [0], [0], [1], [0, 0, 1, 1], [], []>} : vector<8x32xbf16>, vector<32x32xbf16>, vector<8x32xf32> -> vector<8x32xf32>
    %147 = arith.addf %0, %146 : vector<8x32xf32>
    %c0_69 = arith.constant 0 : index
    %c0_70 = arith.constant 0 : index
    %148 = vector.load %arg6[%c0_69, %c0_70] : memref<1x32xf32, #tpu.memory_space<vmem>>, vector<1x32xf32>
    %149 = vector.broadcast %148 : vector<1x32xf32> to vector<8x32xf32>
    %150 = arith.addf %147, %149 : vector<8x32xf32>
    %cst_71 = arith.constant dense<0.000000e+00> : vector<8xf32>
    %151 = vector.multi_reduction <add>, %150, %cst_71 [1] : vector<8x32xf32> to vector<8xf32>
    %152 = vector.shape_cast %151 : vector<8xf32> to vector<8x1xf32>
    %cst_72 = arith.constant 3.200000e+01 : f32
    %153 = vector.broadcast %cst_72 : f32 to vector<8x1xf32>
    %154 = arith.divf %152, %153 : vector<8x1xf32>
    %155 = vector.broadcast %154 : vector<8x1xf32> to vector<8x32xf32>
    %156 = arith.subf %150, %155 : vector<8x32xf32>
    %157 = arith.mulf %156, %156 : vector<8x32xf32>
    %cst_73 = arith.constant dense<0.000000e+00> : vector<8xf32>
    %158 = vector.multi_reduction <add>, %157, %cst_73 [1] : vector<8x32xf32> to vector<8xf32>
    %159 = vector.shape_cast %158 : vector<8xf32> to vector<8x1xf32>
    %cst_74 = arith.constant 0.0322580636 : f32
    %160 = vector.broadcast %cst_74 : f32 to vector<8x1xf32>
    %161 = arith.mulf %159, %160 : vector<8x1xf32>
    %c0_75 = arith.constant 0 : index
    %c0_76 = arith.constant 0 : index
    %162 = vector.load %arg13[%c0_75, %c0_76] : memref<1x32xf32, #tpu.memory_space<vmem>>, vector<1x32xf32>
    %163 = vector.broadcast %154 : vector<8x1xf32> to vector<8x32xf32>
    %164 = arith.subf %150, %163 : vector<8x32xf32>
    %165 = math.sqrt %161 : vector<8x1xf32>
    %cst_77 = arith.constant 9.99999997E-7 : f32
    %166 = vector.broadcast %cst_77 : f32 to vector<8x1xf32>
    %167 = arith.addf %165, %166 : vector<8x1xf32>
    %168 = vector.broadcast %167 : vector<8x1xf32> to vector<8x32xf32>
    %169 = arith.divf %164, %168 : vector<8x32xf32>
    %170 = vector.broadcast %162 : vector<1x32xf32> to vector<8x32xf32>
    %171 = arith.mulf %170, %169 : vector<8x32xf32>
    %c0_78 = arith.constant 0 : index
    %c0_79 = arith.constant 0 : index
    %172 = vector.load %arg14[%c0_78, %c0_79] : memref<1x32xf32, #tpu.memory_space<vmem>>, vector<1x32xf32>
    %173 = vector.broadcast %172 : vector<1x32xf32> to vector<8x32xf32>
    %174 = arith.addf %171, %173 : vector<8x32xf32>
    %175 = arith.truncf %174 : vector<8x32xf32> to vector<8x32xbf16>
    %c0_80 = arith.constant 0 : index
    %c0_81 = arith.constant 0 : index
    %176 = vector.load %arg7[%c0_80, %c0_81] : memref<32x64xbf16, #tpu.memory_space<vmem>>, vector<32x64xbf16>
    %cst_82 = arith.constant dense<0.000000e+00> : vector<8x64xf32>
    %177 = tpu.matmul %175, %176, %cst_82 {dimension_numbers = #tpu.dot_dimension_numbers<[1], [0], [0], [1], [0, 0, 1, 1], [], []>} : vector<8x32xbf16>, vector<32x64xbf16>, vector<8x64xf32> -> vector<8x64xf32>
    %c0_83 = arith.constant 0 : index
    %c0_84 = arith.constant 0 : index
    %178 = vector.load %arg8[%c0_83, %c0_84] : memref<1x64xf32, #tpu.memory_space<vmem>>, vector<1x64xf32>
    %179 = vector.broadcast %178 : vector<1x64xf32> to vector<8x64xf32>
    %180 = arith.addf %177, %179 : vector<8x64xf32>
    %cst_85 = arith.constant 0.000000e+00 : f32
    %181 = vector.broadcast %cst_85 : f32 to vector<8x64xf32>
    %182 = arith.maximumf %180, %181 : vector<8x64xf32>
    %183 = arith.truncf %182 : vector<8x64xf32> to vector<8x64xbf16>
    %c0_86 = arith.constant 0 : index
    %c0_87 = arith.constant 0 : index
    %184 = vector.load %arg9[%c0_86, %c0_87] : memref<64x32xbf16, #tpu.memory_space<vmem>>, vector<64x32xbf16>
    %cst_88 = arith.constant dense<0.000000e+00> : vector<8x32xf32>
    %185 = tpu.matmul %183, %184, %cst_88 {dimension_numbers = #tpu.dot_dimension_numbers<[1], [0], [0], [1], [0, 0, 1, 1], [], []>} : vector<8x64xbf16>, vector<64x32xbf16>, vector<8x32xf32> -> vector<8x32xf32>
    %c0_89 = arith.constant 0 : index
    %c0_90 = arith.constant 0 : index
    %186 = vector.load %arg10[%c0_89, %c0_90] : memref<1x32xf32, #tpu.memory_space<vmem>>, vector<1x32xf32>
    %187 = vector.broadcast %186 : vector<1x32xf32> to vector<8x32xf32>
    %188 = arith.addf %185, %187 : vector<8x32xf32>
    %189 = arith.addf %150, %188 : vector<8x32xf32>
    %c0_91 = arith.constant 0 : index
    %c0_92 = arith.constant 0 : index
    %190 = vector.load %arg15[%c0_91, %c0_92] : memref<8x32xf32, #tpu.memory_space<vmem>>, vector<8x32xf32>
    tpu.vector_store %arg15[%c0_91, %c0_92], %189 {strides = array<i32>} : memref<8x32xf32, #tpu.memory_space<vmem>>, vector<8x32xf32>,
    return
  }
  func.func @transform_0(%arg0: i32) -> (i32, i32) {
    %c0_i32 = arith.constant 0 : i32
    %c0_i32_0 = arith.constant 0 : i32
    return %arg0, %c0_i32 : i32, i32
  }
  func.func @transform_1(%arg0: i32) -> (i32, i32, i32, i32) {
    %c0_i32 = arith.constant 0 : i32
    %c0_i32_0 = arith.constant 0 : i32
    %c0_i32_1 = arith.constant 0 : i32
    %c0_i32_2 = arith.constant 0 : i32
    return %arg0, %c0_i32, %c0_i32_0, %c0_i32_1 : i32, i32, i32, i32
  }
  func.func @transform_2(%arg0: i32) -> (i32, i32) {
    %c0_i32 = arith.constant 0 : i32
    %c0_i32_0 = arith.constant 0 : i32
    %c0_i32_1 = arith.constant 0 : i32
    return %c0_i32, %c0_i32_0 : i32, i32
  }
  func.func @transform_3(%arg0: i32) -> (i32, i32) {
    %c0_i32 = arith.constant 0 : i32
    %c0_i32_0 = arith.constant 0 : i32
    %c0_i32_1 = arith.constant 0 : i32
    return %c0_i32, %c0_i32_0 : i32, i32
  }
  func.func @transform_4(%arg0: i32) -> (i32, i32) {
    %c0_i32 = arith.constant 0 : i32
    %c0_i32_0 = arith.constant 0 : i32
    %c0_i32_1 = arith.constant 0 : i32
    return %c0_i32, %c0_i32_0 : i32, i32
  }
  func.func @transform_5(%arg0: i32) -> (i32, i32) {
    %c0_i32 = arith.constant 0 : i32
    %c0_i32_0 = arith.constant 0 : i32
    %c0_i32_1 = arith.constant 0 : i32
    return %c0_i32, %c0_i32_0 : i32, i32
  }
  func.func @transform_6(%arg0: i32) -> (i32, i32) {
    %c0_i32 = arith.constant 0 : i32
    %c0_i32_0 = arith.constant 0 : i32
    %c0_i32_1 = arith.constant 0 : i32
    return %c0_i32, %c0_i32_0 : i32, i32
  }
  func.func @transform_7(%arg0: i32) -> (i32, i32) {
    %c0_i32 = arith.constant 0 : i32
    %c0_i32_0 = arith.constant 0 : i32
    %c0_i32_1 = arith.constant 0 : i32
    return %c0_i32, %c0_i32_0 : i32, i32
  }
  func.func @transform_8(%arg0: i32) -> (i32, i32) {
    %c0_i32 = arith.constant 0 : i32
    %c0_i32_0 = arith.constant 0 : i32
    %c0_i32_1 = arith.constant 0 : i32
    return %c0_i32, %c0_i32_0 : i32, i32
  }
  func.func @transform_9(%arg0: i32) -> (i32, i32) {
    %c0_i32 = arith.constant 0 : i32
    %c0_i32_0 = arith.constant 0 : i32
    %c0_i32_1 = arith.constant 0 : i32
    return %c0_i32, %c0_i32_0 : i32, i32
  }
  func.func @transform_10(%arg0: i32) -> (i32, i32) {
    %c0_i32 = arith.constant 0 : i32
    %c0_i32_0 = arith.constant 0 : i32
    %c0_i32_1 = arith.constant 0 : i32
    return %c0_i32, %c0_i32_0 : i32, i32
  }
  func.func @transform_11(%arg0: i32) -> (i32, i32) {
    %c0_i32 = arith.constant 0 : i32
    %c0_i32_0 = arith.constant 0 : i32
    %c0_i32_1 = arith.constant 0 : i32
    return %c0_i32, %c0_i32_0 : i32, i32
  }
  func.func @transform_12(%arg0: i32) -> (i32, i32) {
    %c0_i32 = arith.constant 0 : i32
    %c0_i32_0 = arith.constant 0 : i32
    %c0_i32_1 = arith.constant 0 : i32
    return %c0_i32, %c0_i32_0 : i32, i32
  }
  func.func @transform_13(%arg0: i32) -> (i32, i32) {
    %c0_i32 = arith.constant 0 : i32
    %c0_i32_0 = arith.constant 0 : i32
    %c0_i32_1 = arith.constant 0 : i32
    return %c0_i32, %c0_i32_0 : i32, i32
  }
  func.func @transform_14(%arg0: i32) -> (i32, i32) {
    %c0_i32 = arith.constant 0 : i32
    %c0_i32_0 = arith.constant 0 : i32
    return %arg0, %c0_i32 : i32, i32
  }
}

module attributes {stable_mosaic.version = 11 : i64} {
  func.func @_encoder_block_kernel(%arg0: i32, %arg1: memref<8x32xf32, #tpu.memory_space<vmem>>, %arg2: memref<1x1x1x8xf32, #tpu.memory_space<vmem>>, %arg3: memref<32x96xbf16, #tpu.memory_space<vmem>>, %arg4: memref<1x96xf32, #tpu.memory_space<vmem>>, %arg5: memref<32x32xbf16, #tpu.memory_space<vmem>>, %arg6: memref<1x32xf32, #tpu.memory_space<vmem>>, %arg7: memref<32x64xbf16, #tpu.memory_space<vmem>>, %arg8: memref<1x64xf32, #tpu.memory_space<vmem>>, %arg9: memref<64x32xbf16, #tpu.memory_space<vmem>>, %arg10: memref<1x32xf32, #tpu.memory_space<vmem>>, %arg11: memref<1x32xf32, #tpu.memory_space<vmem>>, %arg12: memref<1x32xf32, #tpu.memory_space<vmem>>, %arg13: memref<1x32xf32, #tpu.memory_space<vmem>>, %arg14: memref<1x32xf32, #tpu.memory_space<vmem>>, %arg15: memref<8x32xf32, #tpu.memory_space<vmem>>, %arg16: memref<8x96xbf16, #tpu.memory_space<vmem>>, %arg17: memref<8x32xbf16, #tpu.memory_space<vmem>>) attributes {dimension_semantics = [#tpu.dimension_semantics<parallel>], iteration_bounds = array<i64: 2>, scalar_prefetch = 0 : i64, scratch_operands = 2 : i64, tpu.core_type = #tpu.core_type<tc>, window_params = [{transform_indices = @transform_0, window_bounds = array<i64: 8, 32>}, {transform_indices = @transform_1, window_bounds = array<i64: 1, 1, 1, 8>}, {pipeline_mode = #tpu.pipeline_mode<synchronous>, transform_indices = @transform_2, window_bounds = array<i64: 32, 96>}, {pipeline_mode = #tpu.pipeline_mode<synchronous>, transform_indices = @transform_3, window_bounds = array<i64: 1, 96>}, {pipeline_mode = #tpu.pipeline_mode<synchronous>, transform_indices = @transform_4, window_bounds = array<i64: 32, 32>}, {pipeline_mode = #tpu.pipeline_mode<synchronous>, transform_indices = @transform_5, window_bounds = array<i64: 1, 32>}, {pipeline_mode = #tpu.pipeline_mode<synchronous>, transform_indices = @transform_6, window_bounds = array<i64: 32, 64>}, {pipeline_mode = #tpu.pipeline_mode<synchronous>, transform_indices = @transform_7, window_bounds = array<i64: 1, 64>}, {pipeline_mode = #tpu.pipeline_mode<synchronous>, transform_indices = @transform_8, window_bounds = array<i64: 64, 32>}, {pipeline_mode = #tpu.pipeline_mode<synchronous>, transform_indices = @transform_9, window_bounds = array<i64: 1, 32>}, {pipeline_mode = #tpu.pipeline_mode<synchronous>, transform_indices = @transform_10, window_bounds = array<i64: 1, 32>}, {pipeline_mode = #tpu.pipeline_mode<synchronous>, transform_indices = @transform_11, window_bounds = array<i64: 1, 32>}, {pipeline_mode = #tpu.pipeline_mode<synchronous>, transform_indices = @transform_12, window_bounds = array<i64: 1, 32>}, {pipeline_mode = #tpu.pipeline_mode<synchronous>, transform_indices = @transform_13, window_bounds = array<i64: 1, 32>}, {transform_indices = @transform_14, window_bounds = array<i64: 8, 32>}]} {
    %c0 = arith.constant 0 : index
    %c0_0 = arith.constant 0 : index
    %0 = vector.load %arg1[%c0, %c0_0] : memref<8x32xf32, #tpu.memory_space<vmem>>, vector<8x32xf32>
    %cst = arith.constant dense<0.000000e+00> : vector<8xf32>
    %1 = vector.multi_reduction <add>, %0, %cst [1] : vector<8x32xf32> to vector<8xf32>
    %2 = vector.shape_cast %1 : vector<8xf32> to vector<8x1xf32>
    %cst_1 = arith.constant 3.200000e+01 : f32
    %3 = vector.broadcast %cst_1 : f32 to vector<8x1xf32>
    %4 = arith.divf %2, %3 : vector<8x1xf32>
    %5 = vector.broadcast %4 : vector<8x1xf32> to vector<8x32xf32>
    %6 = arith.subf %0, %5 : vector<8x32xf32>
    %7 = arith.mulf %6, %6 : vector<8x32xf32>
    %cst_2 = arith.constant dense<0.000000e+00> : vector<8xf32>
    %8 = vector.multi_reduction <add>, %7, %cst_2 [1] : vector<8x32xf32> to vector<8xf32>
    %9 = vector.shape_cast %8 : vector<8xf32> to vector<8x1xf32>
    %cst_3 = arith.constant 0.0322580636 : f32
    %10 = vector.broadcast %cst_3 : f32 to vector<8x1xf32>
    %11 = arith.mulf %9, %10 : vector<8x1xf32>
    %c0_4 = arith.constant 0 : index
    %c0_5 = arith.constant 0 : index
    %12 = vector.load %arg11[%c0_4, %c0_5] : memref<1x32xf32, #tpu.memory_space<vmem>>, vector<1x32xf32>
    %13 = vector.broadcast %4 : vector<8x1xf32> to vector<8x32xf32>
    %14 = arith.subf %0, %13 : vector<8x32xf32>
    %15 = math.sqrt %11 : vector<8x1xf32>
    %cst_6 = arith.constant 9.99999997E-7 : f32
    %16 = vector.broadcast %cst_6 : f32 to vector<8x1xf32>
    %17 = arith.addf %15, %16 : vector<8x1xf32>
    %18 = vector.broadcast %17 : vector<8x1xf32> to vector<8x32xf32>
    %19 = arith.divf %14, %18 : vector<8x32xf32>
    %20 = vector.broadcast %12 : vector<1x32xf32> to vector<8x32xf32>
    %21 = arith.mulf %20, %19 : vector<8x32xf32>
    %c0_7 = arith.constant 0 : index
    %c0_8 = arith.constant 0 : index
    %22 = vector.load %arg12[%c0_7, %c0_8] : memref<1x32xf32, #tpu.memory_space<vmem>>, vector<1x32xf32>
    %23 = vector.broadcast %22 : vector<1x32xf32> to vector<8x32xf32>
    %24 = arith.addf %21, %23 : vector<8x32xf32>
    %25 = arith.truncf %24 : vector<8x32xf32> to vector<8x32xbf16>
    %c0_9 = arith.constant 0 : index
    %c0_10 = arith.constant 0 : index
    %26 = vector.load %arg3[%c0_9, %c0_10] : memref<32x96xbf16, #tpu.memory_space<vmem>>, vector<32x96xbf16>
    %cst_11 = arith.constant dense<0.000000e+00> : vector<8x96xf32>
    %27 = tpu.matmul %25, %26, %cst_11 {dimension_numbers = #tpu.dot_dimension_numbers<[1], [0], [0], [1], [0, 0, 1, 1], [], []>} : vector<8x32xbf16>, vector<32x96xbf16>, vector<8x96xf32> -> vector<8x96xf32>
    %c0_12 = arith.constant 0 : index
    %c0_13 = arith.constant 0 : index
    %28 = vector.load %arg4[%c0_12, %c0_13] : memref<1x96xf32, #tpu.memory_space<vmem>>, vector<1x96xf32>
    %29 = vector.broadcast %28 : vector<1x96xf32> to vector<8x96xf32>
    %30 = arith.addf %27, %29 : vector<8x96xf32>
    %31 = arith.truncf %30 : vector<8x96xf32> to vector<8x96xbf16>
    %c0_14 = arith.constant 0 : index
    %c0_15 = arith.constant 0 : index
    %32 = vector.load %arg16[%c0_14, %c0_15] : memref<8x96xbf16, #tpu.memory_space<vmem>>, vector<8x96xbf16>
    tpu.vector_store %arg16[%c0_14, %c0_15], %31 {strides = array<i32>} : memref<8x96xbf16, #tpu.memory_space<vmem>>, vector<8x96xbf16>,
    %c0_16 = arith.constant 0 : index
    %c0_17 = arith.constant 0 : index
    %c0_18 = arith.constant 0 : index
    %c0_19 = arith.constant 0 : index
    %33 = vector.load %arg2[%c0_16, %c0_17, %c0_18, %c0_19] : memref<1x1x1x8xf32, #tpu.memory_space<vmem>>, vector<1x1x1x8xf32>
    %34 = vector.shape_cast %33 : vector<1x1x1x8xf32> to vector<1x1x8xf32>
    %cst_20 = arith.constant 0.000000e+00 : f32
    %35 = vector.broadcast %cst_20 : f32 to vector<1x1x8xf32>
    %36 = arith.cmpf oeq, %34, %35 : vector<1x1x8xf32>
    %cst_21 = arith.constant -1.000000e+09 : f32
    %cst_22 = arith.constant 0.000000e+00 : f32
    %37 = vector.broadcast %cst_21 : f32 to vector<1x1x8xf32>
    %38 = vector.broadcast %cst_22 : f32 to vector<1x1x8xf32>
    %39 = arith.select %36, %37, %38 : vector<1x1x8xi1>, vector<1x1x8xf32>
    %c0_23 = arith.constant 0 : index
    %c0_24 = arith.constant 0 : index
    %40 = vector.load %arg16[%c0_23, %c0_24] : memref<8x96xbf16, #tpu.memory_space<vmem>>, vector<8x8xbf16>
    %41 = vector.shape_cast %40 : vector<8x8xbf16> to vector<1x8x8xbf16>
    %c0_25 = arith.constant 0 : index
    %c32 = arith.constant 32 : index
    %42 = vector.load %arg16[%c0_25, %c32] : memref<8x96xbf16, #tpu.memory_space<vmem>>, vector<8x8xbf16>
    %43 = vector.shape_cast %42 : vector<8x8xbf16> to vector<1x8x8xbf16>
    %c0_26 = arith.constant 0 : index
    %c64 = arith.constant 64 : index
    %44 = vector.load %arg16[%c0_26, %c64] : memref<8x96xbf16, #tpu.memory_space<vmem>>, vector<8x8xbf16>
    %45 = vector.shape_cast %44 : vector<8x8xbf16> to vector<1x8x8xbf16>
    "tpu.trace_start"() <{level = 10 : i32, message = "bqd,bkd->bqk"}> : () -> ()
    %cst_27 = arith.constant dense<0.000000e+00> : vector<1x8x8xf32>
    %46 = tpu.matmul %41, %43, %cst_27 {dimension_numbers = #tpu.dot_dimension_numbers<[2], [2], [1], [1], [0, 0, 0, 1, 1, 1], [0], [0]>} : vector<1x8x8xbf16>, vector<1x8x8xbf16>, vector<1x8x8xf32> -> vector<1x8x8xf32>
    "tpu.trace_stop"() : () -> ()
    %cst_28 = arith.constant 0.353553385 : f32
    %47 = vector.broadcast %cst_28 : f32 to vector<1x8x8xf32>
    %48 = arith.mulf %46, %47 : vector<1x8x8xf32>
    %49 = vector.broadcast %39 : vector<1x1x8xf32> to vector<1x8x8xf32>
    %50 = arith.addf %48, %49 : vector<1x8x8xf32>
    %cst_29 = arith.constant dense<0xFF800000> : vector<1x8xf32>
    %51 = vector.multi_reduction <maximumf>, %50, %cst_29 [2] : vector<1x8x8xf32> to vector<1x8xf32>
    %52 = vector.shape_cast %51 : vector<1x8xf32> to vector<1x8x1xf32>
    %53 = vector.broadcast %52 : vector<1x8x1xf32> to vector<1x8x8xf32>
    %54 = arith.subf %50, %53 : vector<1x8x8xf32>
    %55 = math.exp %54 : vector<1x8x8xf32>
    %cst_30 = arith.constant dense<0.000000e+00> : vector<1x8xf32>
    %56 = vector.multi_reduction <add>, %55, %cst_30 [2] : vector<1x8x8xf32> to vector<1x8xf32>
    %57 = vector.shape_cast %56 : vector<1x8xf32> to vector<1x8x1xf32>
    %58 = tpu.reciprocal %57 {approx = true} : vector<1x8x1xf32> -> vector<1x8x1xf32>
    %59 = vector.broadcast %58 : vector<1x8x1xf32> to vector<1x8x8xf32>
    %60 = arith.mulf %55, %59 : vector<1x8x8xf32>
    %61 = arith.truncf %60 : vector<1x8x8xf32> to vector<1x8x8xbf16>
    "tpu.trace_start"() <{level = 10 : i32, message = "bqk,bkd->bqd"}> : () -> ()
    %cst_31 = arith.constant dense<0.000000e+00> : vector<1x8x8xf32>
    %62 = tpu.matmul %61, %45, %cst_31 {dimension_numbers = #tpu.dot_dimension_numbers<[2], [1], [1], [2], [0, 0, 0, 1, 1, 2], [0], [0]>} : vector<1x8x8xbf16>, vector<1x8x8xbf16>, vector<1x8x8xf32> -> vector<1x8x8xf32>
    "tpu.trace_stop"() : () -> ()
    %63 = vector.shape_cast %62 : vector<1x8x8xf32> to vector<8x8xf32>
    %64 = arith.truncf %63 : vector<8x8xf32> to vector<8x8xbf16>
    %c0_32 = arith.constant 0 : index
    %c0_33 = arith.constant 0 : index
    %65 = vector.load %arg17[%c0_32, %c0_33] : memref<8x32xbf16, #tpu.memory_space<vmem>>, vector<8x8xbf16>
    tpu.vector_store %arg17[%c0_32, %c0_33], %64 {strides = array<i32>} : memref<8x32xbf16, #tpu.memory_space<vmem>>, vector<8x8xbf16>,
    %c0_34 = arith.constant 0 : index
    %c8 = arith.constant 8 : index
    %66 = vector.load %arg16[%c0_34, %c8] : memref<8x96xbf16, #tpu.memory_space<vmem>>, vector<8x8xbf16>
    %67 = vector.shape_cast %66 : vector<8x8xbf16> to vector<1x8x8xbf16>
    %c0_35 = arith.constant 0 : index
    %c40 = arith.constant 40 : index
    %68 = vector.load %arg16[%c0_35, %c40] : memref<8x96xbf16, #tpu.memory_space<vmem>>, vector<8x8xbf16>
    %69 = vector.shape_cast %68 : vector<8x8xbf16> to vector<1x8x8xbf16>
    %c0_36 = arith.constant 0 : index
    %c72 = arith.constant 72 : index
    %70 = vector.load %arg16[%c0_36, %c72] : memref<8x96xbf16, #tpu.memory_space<vmem>>, vector<8x8xbf16>
    %71 = vector.shape_cast %70 : vector<8x8xbf16> to vector<1x8x8xbf16>
    "tpu.trace_start"() <{level = 10 : i32, message = "bqd,bkd->bqk"}> : () -> ()
    %cst_37 = arith.constant dense<0.000000e+00> : vector<1x8x8xf32>
    %72 = tpu.matmul %67, %69, %cst_37 {dimension_numbers = #tpu.dot_dimension_numbers<[2], [2], [1], [1], [0, 0, 0, 1, 1, 1], [0], [0]>} : vector<1x8x8xbf16>, vector<1x8x8xbf16>, vector<1x8x8xf32> -> vector<1x8x8xf32>
    "tpu.trace_stop"() : () -> ()
    %cst_38 = arith.constant 0.353553385 : f32
    %73 = vector.broadcast %cst_38 : f32 to vector<1x8x8xf32>
    %74 = arith.mulf %72, %73 : vector<1x8x8xf32>
    %75 = vector.broadcast %39 : vector<1x1x8xf32> to vector<1x8x8xf32>
    %76 = arith.addf %74, %75 : vector<1x8x8xf32>
    %cst_39 = arith.constant dense<0xFF800000> : vector<1x8xf32>
    %77 = vector.multi_reduction <maximumf>, %76, %cst_39 [2] : vector<1x8x8xf32> to vector<1x8xf32>
    %78 = vector.shape_cast %77 : vector<1x8xf32> to vector<1x8x1xf32>
    %79 = vector.broadcast %78 : vector<1x8x1xf32> to vector<1x8x8xf32>
    %80 = arith.subf %76, %79 : vector<1x8x8xf32>
    %81 = math.exp %80 : vector<1x8x8xf32>
    %cst_40 = arith.constant dense<0.000000e+00> : vector<1x8xf32>
    %82 = vector.multi_reduction <add>, %81, %cst_40 [2] : vector<1x8x8xf32> to vector<1x8xf32>
    %83 = vector.shape_cast %82 : vector<1x8xf32> to vector<1x8x1xf32>
    %84 = tpu.reciprocal %83 {approx = true} : vector<1x8x1xf32> -> vector<1x8x1xf32>
    %85 = vector.broadcast %84 : vector<1x8x1xf32> to vector<1x8x8xf32>
    %86 = arith.mulf %81, %85 : vector<1x8x8xf32>
    %87 = arith.truncf %86 : vector<1x8x8xf32> to vector<1x8x8xbf16>
    "tpu.trace_start"() <{level = 10 : i32, message = "bqk,bkd->bqd"}> : () -> ()
    %cst_41 = arith.constant dense<0.000000e+00> : vector<1x8x8xf32>
    %88 = tpu.matmul %87, %71, %cst_41 {dimension_numbers = #tpu.dot_dimension_numbers<[2], [1], [1], [2], [0, 0, 0, 1, 1, 2], [0], [0]>} : vector<1x8x8xbf16>, vector<1x8x8xbf16>, vector<1x8x8xf32> -> vector<1x8x8xf32>
    "tpu.trace_stop"() : () -> ()
    %89 = vector.shape_cast %88 : vector<1x8x8xf32> to vector<8x8xf32>
    %90 = arith.truncf %89 : vector<8x8xf32> to vector<8x8xbf16>
    %c0_42 = arith.constant 0 : index
    %c8_43 = arith.constant 8 : index
    %91 = vector.load %arg17[%c0_42, %c8_43] : memref<8x32xbf16, #tpu.memory_space<vmem>>, vector<8x8xbf16>
    tpu.vector_store %arg17[%c0_42, %c8_43], %90 {strides = array<i32>} : memref<8x32xbf16, #tpu.memory_space<vmem>>, vector<8x8xbf16>,
    %c0_44 = arith.constant 0 : index
    %c16 = arith.constant 16 : index
    %92 = vector.load %arg16[%c0_44, %c16] : memref<8x96xbf16, #tpu.memory_space<vmem>>, vector<8x8xbf16>
    %93 = vector.shape_cast %92 : vector<8x8xbf16> to vector<1x8x8xbf16>
    %c0_45 = arith.constant 0 : index
    %c48 = arith.constant 48 : index
    %94 = vector.load %arg16[%c0_45, %c48] : memref<8x96xbf16, #tpu.memory_space<vmem>>, vector<8x8xbf16>
    %95 = vector.shape_cast %94 : vector<8x8xbf16> to vector<1x8x8xbf16>
    %c0_46 = arith.constant 0 : index
    %c80 = arith.constant 80 : index
    %96 = vector.load %arg16[%c0_46, %c80] : memref<8x96xbf16, #tpu.memory_space<vmem>>, vector<8x8xbf16>
    %97 = vector.shape_cast %96 : vector<8x8xbf16> to vector<1x8x8xbf16>
    "tpu.trace_start"() <{level = 10 : i32, message = "bqd,bkd->bqk"}> : () -> ()
    %cst_47 = arith.constant dense<0.000000e+00> : vector<1x8x8xf32>
    %98 = tpu.matmul %93, %95, %cst_47 {dimension_numbers = #tpu.dot_dimension_numbers<[2], [2], [1], [1], [0, 0, 0, 1, 1, 1], [0], [0]>} : vector<1x8x8xbf16>, vector<1x8x8xbf16>, vector<1x8x8xf32> -> vector<1x8x8xf32>
    "tpu.trace_stop"() : () -> ()
    %cst_48 = arith.constant 0.353553385 : f32
    %99 = vector.broadcast %cst_48 : f32 to vector<1x8x8xf32>
    %100 = arith.mulf %98, %99 : vector<1x8x8xf32>
    %101 = vector.broadcast %39 : vector<1x1x8xf32> to vector<1x8x8xf32>
    %102 = arith.addf %100, %101 : vector<1x8x8xf32>
    %cst_49 = arith.constant dense<0xFF800000> : vector<1x8xf32>
    %103 = vector.multi_reduction <maximumf>, %102, %cst_49 [2] : vector<1x8x8xf32> to vector<1x8xf32>
    %104 = vector.shape_cast %103 : vector<1x8xf32> to vector<1x8x1xf32>
    %105 = vector.broadcast %104 : vector<1x8x1xf32> to vector<1x8x8xf32>
    %106 = arith.subf %102, %105 : vector<1x8x8xf32>
    %107 = math.exp %106 : vector<1x8x8xf32>
    %cst_50 = arith.constant dense<0.000000e+00> : vector<1x8xf32>
    %108 = vector.multi_reduction <add>, %107, %cst_50 [2] : vector<1x8x8xf32> to vector<1x8xf32>
    %109 = vector.shape_cast %108 : vector<1x8xf32> to vector<1x8x1xf32>
    %110 = tpu.reciprocal %109 {approx = true} : vector<1x8x1xf32> -> vector<1x8x1xf32>
    %111 = vector.broadcast %110 : vector<1x8x1xf32> to vector<1x8x8xf32>
    %112 = arith.mulf %107, %111 : vector<1x8x8xf32>
    %113 = arith.truncf %112 : vector<1x8x8xf32> to vector<1x8x8xbf16>
    "tpu.trace_start"() <{level = 10 : i32, message = "bqk,bkd->bqd"}> : () -> ()
    %cst_51 = arith.constant dense<0.000000e+00> : vector<1x8x8xf32>
    %114 = tpu.matmul %113, %97, %cst_51 {dimension_numbers = #tpu.dot_dimension_numbers<[2], [1], [1], [2], [0, 0, 0, 1, 1, 2], [0], [0]>} : vector<1x8x8xbf16>, vector<1x8x8xbf16>, vector<1x8x8xf32> -> vector<1x8x8xf32>
    "tpu.trace_stop"() : () -> ()
    %115 = vector.shape_cast %114 : vector<1x8x8xf32> to vector<8x8xf32>
    %116 = arith.truncf %115 : vector<8x8xf32> to vector<8x8xbf16>
    %c0_52 = arith.constant 0 : index
    %c16_53 = arith.constant 16 : index
    %117 = vector.load %arg17[%c0_52, %c16_53] : memref<8x32xbf16, #tpu.memory_space<vmem>>, vector<8x8xbf16>
    tpu.vector_store %arg17[%c0_52, %c16_53], %116 {strides = array<i32>} : memref<8x32xbf16, #tpu.memory_space<vmem>>, vector<8x8xbf16>,
    %c0_54 = arith.constant 0 : index
    %c24 = arith.constant 24 : index
    %118 = vector.load %arg16[%c0_54, %c24] : memref<8x96xbf16, #tpu.memory_space<vmem>>, vector<8x8xbf16>
    %119 = vector.shape_cast %118 : vector<8x8xbf16> to vector<1x8x8xbf16>
    %c0_55 = arith.constant 0 : index
    %c56 = arith.constant 56 : index
    %120 = vector.load %arg16[%c0_55, %c56] : memref<8x96xbf16, #tpu.memory_space<vmem>>, vector<8x8xbf16>
    %121 = vector.shape_cast %120 : vector<8x8xbf16> to vector<1x8x8xbf16>
    %c0_56 = arith.constant 0 : index
    %c88 = arith.constant 88 : index
    %122 = vector.load %arg16[%c0_56, %c88] : memref<8x96xbf16, #tpu.memory_space<vmem>>, vector<8x8xbf16>
    %123 = vector.shape_cast %122 : vector<8x8xbf16> to vector<1x8x8xbf16>
    "tpu.trace_start"() <{level = 10 : i32, message = "bqd,bkd->bqk"}> : () -> ()
    %cst_57 = arith.constant dense<0.000000e+00> : vector<1x8x8xf32>
    %124 = tpu.matmul %119, %121, %cst_57 {dimension_numbers = #tpu.dot_dimension_numbers<[2], [2], [1], [1], [0, 0, 0, 1, 1, 1], [0], [0]>} : vector<1x8x8xbf16>, vector<1x8x8xbf16>, vector<1x8x8xf32> -> vector<1x8x8xf32>
    "tpu.trace_stop"() : () -> ()
    %cst_58 = arith.constant 0.353553385 : f32
    %125 = vector.broadcast %cst_58 : f32 to vector<1x8x8xf32>
    %126 = arith.mulf %124, %125 : vector<1x8x8xf32>
    %127 = vector.broadcast %39 : vector<1x1x8xf32> to vector<1x8x8xf32>
    %128 = arith.addf %126, %127 : vector<1x8x8xf32>
    %cst_59 = arith.constant dense<0xFF800000> : vector<1x8xf32>
    %129 = vector.multi_reduction <maximumf>, %128, %cst_59 [2] : vector<1x8x8xf32> to vector<1x8xf32>
    %130 = vector.shape_cast %129 : vector<1x8xf32> to vector<1x8x1xf32>
    %131 = vector.broadcast %130 : vector<1x8x1xf32> to vector<1x8x8xf32>
    %132 = arith.subf %128, %131 : vector<1x8x8xf32>
    %133 = math.exp %132 : vector<1x8x8xf32>
    %cst_60 = arith.constant dense<0.000000e+00> : vector<1x8xf32>
    %134 = vector.multi_reduction <add>, %133, %cst_60 [2] : vector<1x8x8xf32> to vector<1x8xf32>
    %135 = vector.shape_cast %134 : vector<1x8xf32> to vector<1x8x1xf32>
    %136 = tpu.reciprocal %135 {approx = true} : vector<1x8x1xf32> -> vector<1x8x1xf32>
    %137 = vector.broadcast %136 : vector<1x8x1xf32> to vector<1x8x8xf32>
    %138 = arith.mulf %133, %137 : vector<1x8x8xf32>
    %139 = arith.truncf %138 : vector<1x8x8xf32> to vector<1x8x8xbf16>
    "tpu.trace_start"() <{level = 10 : i32, message = "bqk,bkd->bqd"}> : () -> ()
    %cst_61 = arith.constant dense<0.000000e+00> : vector<1x8x8xf32>
    %140 = tpu.matmul %139, %123, %cst_61 {dimension_numbers = #tpu.dot_dimension_numbers<[2], [1], [1], [2], [0, 0, 0, 1, 1, 2], [0], [0]>} : vector<1x8x8xbf16>, vector<1x8x8xbf16>, vector<1x8x8xf32> -> vector<1x8x8xf32>
    "tpu.trace_stop"() : () -> ()
    %141 = vector.shape_cast %140 : vector<1x8x8xf32> to vector<8x8xf32>
    %142 = arith.truncf %141 : vector<8x8xf32> to vector<8x8xbf16>
    %c0_62 = arith.constant 0 : index
    %c24_63 = arith.constant 24 : index
    %143 = vector.load %arg17[%c0_62, %c24_63] : memref<8x32xbf16, #tpu.memory_space<vmem>>, vector<8x8xbf16>
    tpu.vector_store %arg17[%c0_62, %c24_63], %142 {strides = array<i32>} : memref<8x32xbf16, #tpu.memory_space<vmem>>, vector<8x8xbf16>,
    %c0_64 = arith.constant 0 : index
    %c0_65 = arith.constant 0 : index
    %144 = vector.load %arg17[%c0_64, %c0_65] : memref<8x32xbf16, #tpu.memory_space<vmem>>, vector<8x32xbf16>
    %c0_66 = arith.constant 0 : index
    %c0_67 = arith.constant 0 : index
    %145 = vector.load %arg5[%c0_66, %c0_67] : memref<32x32xbf16, #tpu.memory_space<vmem>>, vector<32x32xbf16>
    %cst_68 = arith.constant dense<0.000000e+00> : vector<8x32xf32>
    %146 = tpu.matmul %144, %145, %cst_68 {dimension_numbers = #tpu.dot_dimension_numbers<[1], [0], [0], [1], [0, 0, 1, 1], [], []>} : vector<8x32xbf16>, vector<32x32xbf16>, vector<8x32xf32> -> vector<8x32xf32>
    %147 = arith.addf %0, %146 : vector<8x32xf32>
    %c0_69 = arith.constant 0 : index
    %c0_70 = arith.constant 0 : index
    %148 = vector.load %arg6[%c0_69, %c0_70] : memref<1x32xf32, #tpu.memory_space<vmem>>, vector<1x32xf32>
    %149 = vector.broadcast %148 : vector<1x32xf32> to vector<8x32xf32>
    %150 = arith.addf %147, %149 : vector<8x32xf32>
    %cst_71 = arith.constant dense<0.000000e+00> : vector<8xf32>
    %151 = vector.multi_reduction <add>, %150, %cst_71 [1] : vector<8x32xf32> to vector<8xf32>
    %152 = vector.shape_cast %151 : vector<8xf32> to vector<8x1xf32>
    %cst_72 = arith.constant 3.200000e+01 : f32
    %153 = vector.broadcast %cst_72 : f32 to vector<8x1xf32>
    %154 = arith.divf %152, %153 : vector<8x1xf32>
    %155 = vector.broadcast %154 : vector<8x1xf32> to vector<8x32xf32>
    %156 = arith.subf %150, %155 : vector<8x32xf32>
    %157 = arith.mulf %156, %156 : vector<8x32xf32>
    %cst_73 = arith.constant dense<0.000000e+00> : vector<8xf32>
    %158 = vector.multi_reduction <add>, %157, %cst_73 [1] : vector<8x32xf32> to vector<8xf32>
    %159 = vector.shape_cast %158 : vector<8xf32> to vector<8x1xf32>
    %cst_74 = arith.constant 0.0322580636 : f32
    %160 = vector.broadcast %cst_74 : f32 to vector<8x1xf32>
    %161 = arith.mulf %159, %160 : vector<8x1xf32>
    %c0_75 = arith.constant 0 : index
    %c0_76 = arith.constant 0 : index
    %162 = vector.load %arg13[%c0_75, %c0_76] : memref<1x32xf32, #tpu.memory_space<vmem>>, vector<1x32xf32>
    %163 = vector.broadcast %154 : vector<8x1xf32> to vector<8x32xf32>
    %164 = arith.subf %150, %163 : vector<8x32xf32>
    %165 = math.sqrt %161 : vector<8x1xf32>
    %cst_77 = arith.constant 9.99999997E-7 : f32
    %166 = vector.broadcast %cst_77 : f32 to vector<8x1xf32>
    %167 = arith.addf %165, %166 : vector<8x1xf32>
    %168 = vector.broadcast %167 : vector<8x1xf32> to vector<8x32xf32>
    %169 = arith.divf %164, %168 : vector<8x32xf32>
    %170 = vector.broadcast %162 : vector<1x32xf32> to vector<8x32xf32>
    %171 = arith.mulf %170, %169 : vector<8x32xf32>
    %c0_78 = arith.constant 0 : index
    %c0_79 = arith.constant 0 : index
    %172 = vector.load %arg14[%c0_78, %c0_79] : memref<1x32xf32, #tpu.memory_space<vmem>>, vector<1x32xf32>
    %173 = vector.broadcast %172 : vector<1x32xf32> to vector<8x32xf32>
    %174 = arith.addf %171, %173 : vector<8x32xf32>
    %175 = arith.truncf %174 : vector<8x32xf32> to vector<8x32xbf16>
    %c0_80 = arith.constant 0 : index
    %c0_81 = arith.constant 0 : index
    %176 = vector.load %arg7[%c0_80, %c0_81] : memref<32x64xbf16, #tpu.memory_space<vmem>>, vector<32x64xbf16>
    %cst_82 = arith.constant dense<0.000000e+00> : vector<8x64xf32>
    %177 = tpu.matmul %175, %176, %cst_82 {dimension_numbers = #tpu.dot_dimension_numbers<[1], [0], [0], [1], [0, 0, 1, 1], [], []>} : vector<8x32xbf16>, vector<32x64xbf16>, vector<8x64xf32> -> vector<8x64xf32>
    %c0_83 = arith.constant 0 : index
    %c0_84 = arith.constant 0 : index
    %178 = vector.load %arg8[%c0_83, %c0_84] : memref<1x64xf32, #tpu.memory_space<vmem>>, vector<1x64xf32>
    %179 = vector.broadcast %178 : vector<1x64xf32> to vector<8x64xf32>
    %180 = arith.addf %177, %179 : vector<8x64xf32>
    %cst_85 = arith.constant 0.000000e+00 : f32
    %181 = vector.broadcast %cst_85 : f32 to vector<8x64xf32>
    %182 = arith.maximumf %180, %181 : vector<8x64xf32>
    %183 = arith.truncf %182 : vector<8x64xf32> to vector<8x64xbf16>
    %c0_86 = arith.constant 0 : index
    %c0_87 = arith.constant 0 : index
    %184 = vector.load %arg9[%c0_86, %c0_87] : memref<64x32xbf16, #tpu.memory_space<vmem>>, vector<64x32xbf16>
    %cst_88 = arith.constant dense<0.000000e+00> : vector<8x32xf32>
    %185 = tpu.matmul %183, %184, %cst_88 {dimension_numbers = #tpu.dot_dimension_numbers<[1], [0], [0], [1], [0, 0, 1, 1], [], []>} : vector<8x64xbf16>, vector<64x32xbf16>, vector<8x32xf32> -> vector<8x32xf32>
    %c0_89 = arith.constant 0 : index
    %c0_90 = arith.constant 0 : index
    %186 = vector.load %arg10[%c0_89, %c0_90] : memref<1x32xf32, #tpu.memory_space<vmem>>, vector<1x32xf32>
    %187 = vector.broadcast %186 : vector<1x32xf32> to vector<8x32xf32>
    %188 = arith.addf %185, %187 : vector<8x32xf32>
    %189 = arith.addf %150, %188 : vector<8x32xf32>
    %c0_91 = arith.constant 0 : index
    %c0_92 = arith.constant 0 : index
    %190 = vector.load %arg15[%c0_91, %c0_92] : memref<8x32xf32, #tpu.memory_space<vmem>>, vector<8x32xf32>
    tpu.vector_store %arg15[%c0_91, %c0_92], %189 {strides = array<i32>} : memref<8x32xf32, #tpu.memory_space<vmem>>, vector<8x32xf32>,
    return
  }
  func.func @transform_0(%arg0: i32) -> (i32, i32) {
    %c0_i32 = arith.constant 0 : i32
    %c0_i32_0 = arith.constant 0 : i32
    return %arg0, %c0_i32 : i32, i32
  }
  func.func @transform_1(%arg0: i32) -> (i32, i32, i32, i32) {
    %c0_i32 = arith.constant 0 : i32
    %c0_i32_0 = arith.constant 0 : i32
    %c0_i32_1 = arith.constant 0 : i32
    %c0_i32_2 = arith.constant 0 : i32
    return %arg0, %c0_i32, %c0_i32_0, %c0_i32_1 : i32, i32, i32, i32
  }
  func.func @transform_2(%arg0: i32) -> (i32, i32) {
    %c0_i32 = arith.constant 0 : i32
    %c0_i32_0 = arith.constant 0 : i32
    %c0_i32_1 = arith.constant 0 : i32
    return %c0_i32, %c0_i32_0 : i32, i32
  }
  func.func @transform_3(%arg0: i32) -> (i32, i32) {
    %c0_i32 = arith.constant 0 : i32
    %c0_i32_0 = arith.constant 0 : i32
    %c0_i32_1 = arith.constant 0 : i32
    return %c0_i32, %c0_i32_0 : i32, i32
  }
  func.func @transform_4(%arg0: i32) -> (i32, i32) {
    %c0_i32 = arith.constant 0 : i32
    %c0_i32_0 = arith.constant 0 : i32
    %c0_i32_1 = arith.constant 0 : i32
    return %c0_i32, %c0_i32_0 : i32, i32
  }
  func.func @transform_5(%arg0: i32) -> (i32, i32) {
    %c0_i32 = arith.constant 0 : i32
    %c0_i32_0 = arith.constant 0 : i32
    %c0_i32_1 = arith.constant 0 : i32
    return %c0_i32, %c0_i32_0 : i32, i32
  }
  func.func @transform_6(%arg0: i32) -> (i32, i32) {
    %c0_i32 = arith.constant 0 : i32
    %c0_i32_0 = arith.constant 0 : i32
    %c0_i32_1 = arith.constant 0 : i32
    return %c0_i32, %c0_i32_0 : i32, i32
  }
  func.func @transform_7(%arg0: i32) -> (i32, i32) {
    %c0_i32 = arith.constant 0 : i32
    %c0_i32_0 = arith.constant 0 : i32
    %c0_i32_1 = arith.constant 0 : i32
    return %c0_i32, %c0_i32_0 : i32, i32
  }
  func.func @transform_8(%arg0: i32) -> (i32, i32) {
    %c0_i32 = arith.constant 0 : i32
    %c0_i32_0 = arith.constant 0 : i32
    %c0_i32_1 = arith.constant 0 : i32
    return %c0_i32, %c0_i32_0 : i32, i32
  }
  func.func @transform_9(%arg0: i32) -> (i32, i32) {
    %c0_i32 = arith.constant 0 : i32
    %c0_i32_0 = arith.constant 0 : i32
    %c0_i32_1 = arith.constant 0 : i32
    return %c0_i32, %c0_i32_0 : i32, i32
  }
  func.func @transform_10(%arg0: i32) -> (i32, i32) {
    %c0_i32 = arith.constant 0 : i32
    %c0_i32_0 = arith.constant 0 : i32
    %c0_i32_1 = arith.constant 0 : i32
    return %c0_i32, %c0_i32_0 : i32, i32
  }
  func.func @transform_11(%arg0: i32) -> (i32, i32) {
    %c0_i32 = arith.constant 0 : i32
    %c0_i32_0 = arith.constant 0 : i32
    %c0_i32_1 = arith.constant 0 : i32
    return %c0_i32, %c0_i32_0 : i32, i32
  }
  func.func @transform_12(%arg0: i32) -> (i32, i32) {
    %c0_i32 = arith.constant 0 : i32
    %c0_i32_0 = arith.constant 0 : i32
    %c0_i32_1 = arith.constant 0 : i32
    return %c0_i32, %c0_i32_0 : i32, i32
  }
  func.func @transform_13(%arg0: i32) -> (i32, i32) {
    %c0_i32 = arith.constant 0 : i32
    %c0_i32_0 = arith.constant 0 : i32
    %c0_i32_1 = arith.constant 0 : i32
    return %c0_i32, %c0_i32_0 : i32, i32
  }
  func.func @transform_14(%arg0: i32) -> (i32, i32) {
    %c0_i32 = arith.constant 0 : i32
    %c0_i32_0 = arith.constant 0 : i32
    return %arg0, %c0_i32 : i32, i32
  }
}

</mosaic_0001>

<llo_original>
// kernel: tpu_custom_call.1
$region0: #{tpu_custom_call.1}
  #allocation0 [shape = 'u32[]', space=smem, size = 0x4, offset = 0x4, fixed_abs, tag = 'smem constant byte address 0x4 - core index']
  #allocation1 [shape = 'u32[144,128]{1,0:T(1,128)}', space=vmem, size = 0x12000, scoped, tag = 'internal scratch']
  #allocation2 [shape = 'bf16[8,96]{1,0:T(8,128)(2,1)}', space=vmem, size = 0x800, scoped, tag = 'scratch operand']
  #allocation3 [shape = 'bf16[8,32]{1,0:T(8,128)(2,1)}', space=vmem, size = 0x800, scoped, tag = 'scratch operand']
  %s0 = inlined_call_operand.vmem [shape: f32[16,32], index: 0, kind: input, shape index: {}]
  %s1 = inlined_call_operand.hbm [shape: f32[2,1,1,8], index: 1, kind: input, shape index: {}]
  %s2 = inlined_call_operand.vmem [shape: bf16[32,96], index: 2, kind: input, shape index: {}]
  %s3 = inlined_call_operand.vmem [shape: f32[1,96], index: 3, kind: input, shape index: {}]
  %s4 = inlined_call_operand.vmem [shape: bf16[32,32], index: 4, kind: input, shape index: {}]
  %s5 = inlined_call_operand.vmem [shape: f32[1,32], index: 5, kind: input, shape index: {}]
  %s6 = inlined_call_operand.hbm [shape: bf16[32,64], index: 6, kind: input, shape index: {}]
  %s7 = inlined_call_operand.vmem [shape: f32[1,64], index: 7, kind: input, shape index: {}]
  %s8 = inlined_call_operand.vmem [shape: bf16[64,32], index: 8, kind: input, shape index: {}]
  %s9 = inlined_call_operand.vmem [shape: f32[1,32], index: 9, kind: input, shape index: {}]
  %s10 = inlined_call_operand.vmem [shape: f32[1,32], index: 10, kind: input, shape index: {}]
  %s11 = inlined_call_operand.vmem [shape: f32[1,32], index: 11, kind: input, shape index: {}]
  %s12 = inlined_call_operand.vmem [shape: f32[1,32], index: 12, kind: input, shape index: {}]
  %s13 = inlined_call_operand.vmem [shape: f32[1,32], index: 13, kind: input, shape index: {}]
  %s14 = inlined_call_operand.hbm [shape: f32[16,32], index: 14, kind: output, shape index: {}]
  %s15 = sld [smem:[#allocation0]]
  $region97: #{tpu_custom_call.1} parent=0
    _
  %s17 = ssub.s32 1, %s15
  %s18 = scalar_select 0, %s17, %s15
  $region1: #{tpu_custom_call.1} parent=0
    #allocation4 [shape = 'u8[1024]{0}', space=vmem, size = 0x400, scoped, tag = 'input window, operand 1']
    #allocation5 [shape = 's32[2]{0}', space=sflag, size = 0x8, scoped, tag = 'scoped memory for tpu_custom_call.1']
    #allocation6 [shape = 's32[2]{0}', space=sflag, size = 0x8, scoped, tag = 'scoped memory for tpu_custom_call.1']
    #allocation7 [shape = 'u8[8192]{0}', space=vmem, size = 0x2000, scoped, tag = 'input window, operand 6, single buffered']
    #allocation8 [shape = 's32[1]{0}', space=sflag, size = 0x4, scoped, tag = 'scoped memory for tpu_custom_call.1']
    #allocation9 [shape = 'u8[8192]{0}', space=vmem, size = 0x2000, scoped, tag = 'output window, operand 0']
    %19 = vsyncpa [#allocation5], 0
    %s20 = scalar_lea.sflag [#allocation5], 1
    %21 = vsyncpa %s20, 0
    %22 = vsyncpa [#allocation8], 0
    %23 = vsyncpa [#allocation6], 0
    %s24 = scalar_lea.sflag [#allocation6], 1
    %25 = vsyncpa %s24, 0
    loop: start=0, step=1, limit=4
    $region2: #{tpu_custom_call.1} parent=1 // loop_pre_header
      _
    $region3: #{tpu_custom_call.1} parent=1 // loop_header
      %s27 = sphi 0, %s31
      %p28 = scmp.ge.s32.totalorder %s27, 4
      %s37 = sphi 0, %s39
      %s40 = sphi 0, %s37
      %s41 = sphi 0, %s40
      %s57 = sphi 0, %s41
      %s63 = sphi 0, %s65
      %s66 = sphi 0, %s63
      %s67 = sphi 0, %s66
      %s83 = sphi 0, %s67
      %s87 = sphi 0, %s87
      %s89 = sphi 0, %s87
      %s90 = sphi 0, %s89
      %s104 = sphi 0, %s90
      %s108 = sphi 0, %s108
      %s110 = sphi 0, %s108
      %s111 = sphi 0, %s110
      %s125 = sphi 0, %s111
      %s129 = sphi 0, %s129
      %s131 = sphi 0, %s129
      %s132 = sphi 0, %s131
      %s146 = sphi 0, %s132
      %s150 = sphi 0, %s150
      %s152 = sphi 0, %s150
      %s153 = sphi 0, %s152
      %s167 = sphi 0, %s153
      %s171 = sphi 0, %s171
      %s173 = sphi 0, %s171
      %s174 = sphi 0, %s173
      %s188 = sphi 0, %s174
      %s192 = sphi 0, %s192
      %s194 = sphi 0, %s192
      %s195 = sphi 0, %s194
      %s209 = sphi 0, %s195
      %s213 = sphi 0, %s213
      %s215 = sphi 0, %s213
      %s216 = sphi 0, %s215
      %s230 = sphi 0, %s216
      %s234 = sphi 0, %s234
      %s236 = sphi 0, %s234
      %s237 = sphi 0, %s236
      %s251 = sphi 0, %s237
      %s255 = sphi 0, %s255
      %s257 = sphi 0, %s255
      %s258 = sphi 0, %s257
      %s272 = sphi 0, %s258
      %s276 = sphi 0, %s276
      %s278 = sphi 0, %s276
      %s279 = sphi 0, %s278
      %s293 = sphi 0, %s279
      %s297 = sphi 0, %s297
      %s299 = sphi 0, %s297
      %s300 = sphi 0, %s299
      %s314 = sphi 0, %s300
      %s318 = sphi 0, %s318
      %s320 = sphi 0, %s318
      %s321 = sphi 0, %s320
      %s335 = sphi 0, %s321
      %s341 = sphi 0, %s343
      %s344 = sphi 0, %s341
      %s345 = sphi 0, %s344
      %s361 = sphi 0, %s345
    $region4: #{tpu_custom_call.1} parent=1 // loop_header_branch
      %30 = sbr.rel (%p28) target = $region8
    $region5: #{tpu_custom_call.1} parent=1 // loop_body
      %s32 = ssub.s32 %s27, 1
      %s33 = ssub.s32 %s27, 2
      %s34 = sadd.s32 %s27, 1
      %s35 = ssub.s32 %s27, %s34
      %p36 = scmp.eq.s32.totalorder %s35, 0
      %s38 = sadd.s32 %s37, 1
      %s39 = scalar_select %p36, %s37, %s38
      %p42 = pneg %p36
      %p43 = scmp.eq.s32.totalorder %s27, 1
      %p44 = por %p42, %p43
      %p45 = scmp.ne.s32.totalorder %s37, %s40
      %p46 = scmp.eq.s32.totalorder %s27, 0
      %p47 = por %p45, %p46
      %p48 = scmp.ne.s32.totalorder %s37, %s40
      %p49 = scmp.eq.s32.totalorder %s32, 1
      %p50 = por %p48, %p49
      %p51 = scmp.ne.s32.totalorder %s40, %s41
      %p52 = scmp.eq.s32.totalorder %s32, 0
      %p53 = por %p51, %p52
      %p54 = scmp.ne.s32.totalorder %s40, %s41
      %p55 = scmp.eq.s32.totalorder %s33, 1
      %p56 = por %p54, %p55
      %p58 = scmp.ne.s32.totalorder %s41, %s57
      %p59 = scmp.eq.s32.totalorder %s33, 0
      %p60 = por %p58, %p59
      %s61 = ssub.s32 %s27, %s34
      %p62 = scmp.eq.s32.totalorder %s61, 0
      %s64 = sadd.s32 %s63, 1
      %s65 = scalar_select %p62, %s63, %s64
      %p68 = pneg %p62
      %p69 = scmp.eq.s32.totalorder %s27, 1
      %p70 = por %p68, %p69
      %p71 = scmp.ne.s32.totalorder %s63, %s66
      %p72 = scmp.eq.s32.totalorder %s27, 0
      %p73 = por %p71, %p72
      %p74 = scmp.ne.s32.totalorder %s63, %s66
      %p75 = scmp.eq.s32.totalorder %s32, 1
      %p76 = por %p74, %p75
      %p77 = scmp.ne.s32.totalorder %s66, %s67
      %p78 = scmp.eq.s32.totalorder %s32, 0
      %p79 = por %p77, %p78
      %p80 = scmp.ne.s32.totalorder %s66, %s67
      %p81 = scmp.eq.s32.totalorder %s33, 1
      %p82 = por %p80, %p81
      %p84 = scmp.ne.s32.totalorder %s67, %s83
      %p85 = scmp.eq.s32.totalorder %s33, 0
      %p86 = por %p84, %p85
      %s88 = sadd.s32 %s87, 1
      %p91 = scmp.eq.s32.totalorder %s27, 1
      %p92 = scmp.ne.s32.totalorder %s87, %s89
      %p93 = scmp.eq.s32.totalorder %s27, 0
      %p94 = por %p92, %p93
      %p95 = scmp.ne.s32.totalorder %s87, %s89
      %p96 = scmp.eq.s32.totalorder %s32, 1
      %p97 = por %p95, %p96
      %p98 = scmp.ne.s32.totalorder %s89, %s90
      %p99 = scmp.eq.s32.totalorder %s32, 0
      %p100 = por %p98, %p99
      %p101 = scmp.ne.s32.totalorder %s89, %s90
      %p102 = scmp.eq.s32.totalorder %s33, 1
      %p103 = por %p101, %p102
      %p105 = scmp.ne.s32.totalorder %s90, %s104
      %p106 = scmp.eq.s32.totalorder %s33, 0
      %p107 = por %p105, %p106
      %s109 = sadd.s32 %s108, 1
      %p112 = scmp.eq.s32.totalorder %s27, 1
      %p113 = scmp.ne.s32.totalorder %s108, %s110
      %p114 = scmp.eq.s32.totalorder %s27, 0
      %p115 = por %p113, %p114
      %p116 = scmp.ne.s32.totalorder %s108, %s110
      %p117 = scmp.eq.s32.totalorder %s32, 1
      %p118 = por %p116, %p117
      %p119 = scmp.ne.s32.totalorder %s110, %s111
      %p120 = scmp.eq.s32.totalorder %s32, 0
      %p121 = por %p119, %p120
      %p122 = scmp.ne.s32.totalorder %s110, %s111
      %p123 = scmp.eq.s32.totalorder %s33, 1
      %p124 = por %p122, %p123
      %p126 = scmp.ne.s32.totalorder %s111, %s125
      %p127 = scmp.eq.s32.totalorder %s33, 0
      %p128 = por %p126, %p127
      %s130 = sadd.s32 %s129, 1
      %p133 = scmp.eq.s32.totalorder %s27, 1
      %p134 = scmp.ne.s32.totalorder %s129, %s131
      %p135 = scmp.eq.s32.totalorder %s27, 0
      %p136 = por %p134, %p135
      %p137 = scmp.ne.s32.totalorder %s129, %s131
      %p138 = scmp.eq.s32.totalorder %s32, 1
      %p139 = por %p137, %p138
      %p140 = scmp.ne.s32.totalorder %s131, %s132
      %p141 = scmp.eq.s32.totalorder %s32, 0
      %p142 = por %p140, %p141
      %p143 = scmp.ne.s32.totalorder %s131, %s132
      %p144 = scmp.eq.s32.totalorder %s33, 1
      %p145 = por %p143, %p144
      %p147 = scmp.ne.s32.totalorder %s132, %s146
      %p148 = scmp.eq.s32.totalorder %s33, 0
      %p149 = por %p147, %p148
      %s151 = sadd.s32 %s150, 1
      %p154 = scmp.eq.s32.totalorder %s27, 1
      %p155 = scmp.ne.s32.totalorder %s150, %s152
      %p156 = scmp.eq.s32.totalorder %s27, 0
      %p157 = por %p155, %p156
      %p158 = scmp.ne.s32.totalorder %s150, %s152
      %p159 = scmp.eq.s32.totalorder %s32, 1
      %p160 = por %p158, %p159
      %p161 = scmp.ne.s32.totalorder %s152, %s153
      %p162 = scmp.eq.s32.totalorder %s32, 0
      %p163 = por %p161, %p162
      %p164 = scmp.ne.s32.totalorder %s152, %s153
      %p165 = scmp.eq.s32.totalorder %s33, 1
      %p166 = por %p164, %p165
      %p168 = scmp.ne.s32.totalorder %s153, %s167
      %p169 = scmp.eq.s32.totalorder %s33, 0
      %p170 = por %p168, %p169
      %s172 = sadd.s32 %s171, 1
      %p175 = scmp.eq.s32.totalorder %s27, 1
      %p176 = scmp.ne.s32.totalorder %s171, %s173
      %p177 = scmp.eq.s32.totalorder %s27, 0
      %p178 = por %p176, %p177
      %p179 = scmp.ne.s32.totalorder %s171, %s173
      %p180 = scmp.eq.s32.totalorder %s32, 1
      %p181 = por %p179, %p180
      %p182 = scmp.ne.s32.totalorder %s173, %s174
      %p183 = scmp.eq.s32.totalorder %s32, 0
      %p184 = por %p182, %p183
      %p185 = scmp.ne.s32.totalorder %s173, %s174
      %p186 = scmp.eq.s32.totalorder %s33, 1
      %p187 = por %p185, %p186
      %p189 = scmp.ne.s32.totalorder %s174, %s188
      %p190 = scmp.eq.s32.totalorder %s33, 0
      %p191 = por %p189, %p190
      %s193 = sadd.s32 %s192, 1
      %p196 = scmp.eq.s32.totalorder %s27, 1
      %p197 = scmp.ne.s32.totalorder %s192, %s194
      %p198 = scmp.eq.s32.totalorder %s27, 0
      %p199 = por %p197, %p198
      %p200 = scmp.ne.s32.totalorder %s192, %s194
      %p201 = scmp.eq.s32.totalorder %s32, 1
      %p202 = por %p200, %p201
      %p203 = scmp.ne.s32.totalorder %s194, %s195
      %p204 = scmp.eq.s32.totalorder %s32, 0
      %p205 = por %p203, %p204
      %p206 = scmp.ne.s32.totalorder %s194, %s195
      %p207 = scmp.eq.s32.totalorder %s33, 1
      %p208 = por %p206, %p207
      %p210 = scmp.ne.s32.totalorder %s195, %s209
      %p211 = scmp.eq.s32.totalorder %s33, 0
      %p212 = por %p210, %p211
      %s214 = sadd.s32 %s213, 1
      %p217 = scmp.eq.s32.totalorder %s27, 1
      %p218 = scmp.ne.s32.totalorder %s213, %s215
      %p219 = scmp.eq.s32.totalorder %s27, 0
      %p220 = por %p218, %p219
      %p221 = scmp.ne.s32.totalorder %s213, %s215
      %p222 = scmp.eq.s32.totalorder %s32, 1
      %p223 = por %p221, %p222
      %p224 = scmp.ne.s32.totalorder %s215, %s216
      %p225 = scmp.eq.s32.totalorder %s32, 0
      %p226 = por %p224, %p225
      %p227 = scmp.ne.s32.totalorder %s215, %s216
      %p228 = scmp.eq.s32.totalorder %s33, 1
      %p229 = por %p227, %p228
      %p231 = scmp.ne.s32.totalorder %s216, %s230
      %p232 = scmp.eq.s32.totalorder %s33, 0
      %p233 = por %p231, %p232
      %s235 = sadd.s32 %s234, 1
      %p238 = scmp.eq.s32.totalorder %s27, 1
      %p239 = scmp.ne.s32.totalorder %s234, %s236
      %p240 = scmp.eq.s32.totalorder %s27, 0
      %p241 = por %p239, %p240
      %p242 = scmp.ne.s32.totalorder %s234, %s236
      %p243 = scmp.eq.s32.totalorder %s32, 1
      %p244 = por %p242, %p243
      %p245 = scmp.ne.s32.totalorder %s236, %s237
      %p246 = scmp.eq.s32.totalorder %s32, 0
      %p247 = por %p245, %p246
      %p248 = scmp.ne.s32.totalorder %s236, %s237
      %p249 = scmp.eq.s32.totalorder %s33, 1
      %p250 = por %p248, %p249
      %p252 = scmp.ne.s32.totalorder %s237, %s251
      %p253 = scmp.eq.s32.totalorder %s33, 0
      %p254 = por %p252, %p253
      %s256 = sadd.s32 %s255, 1
      %p259 = scmp.eq.s32.totalorder %s27, 1
      %p260 = scmp.ne.s32.totalorder %s255, %s257
      %p261 = scmp.eq.s32.totalorder %s27, 0
      %p262 = por %p260, %p261
      %p263 = scmp.ne.s32.totalorder %s255, %s257
      %p264 = scmp.eq.s32.totalorder %s32, 1
      %p265 = por %p263, %p264
      %p266 = scmp.ne.s32.totalorder %s257, %s258
      %p267 = scmp.eq.s32.totalorder %s32, 0
      %p268 = por %p266, %p267
      %p269 = scmp.ne.s32.totalorder %s257, %s258
      %p270 = scmp.eq.s32.totalorder %s33, 1
      %p271 = por %p269, %p270
      %p273 = scmp.ne.s32.totalorder %s258, %s272
      %p274 = scmp.eq.s32.totalorder %s33, 0
      %p275 = por %p273, %p274
      %s277 = sadd.s32 %s276, 1
      %p280 = scmp.eq.s32.totalorder %s27, 1
      %p281 = scmp.ne.s32.totalorder %s276, %s278
      %p282 = scmp.eq.s32.totalorder %s27, 0
      %p283 = por %p281, %p282
      %p284 = scmp.ne.s32.totalorder %s276, %s278
      %p285 = scmp.eq.s32.totalorder %s32, 1
      %p286 = por %p284, %p285
      %p287 = scmp.ne.s32.totalorder %s278, %s279
      %p288 = scmp.eq.s32.totalorder %s32, 0
      %p289 = por %p287, %p288
      %p290 = scmp.ne.s32.totalorder %s278, %s279
      %p291 = scmp.eq.s32.totalorder %s33, 1
      %p292 = por %p290, %p291
      %p294 = scmp.ne.s32.totalorder %s279, %s293
      %p295 = scmp.eq.s32.totalorder %s33, 0
      %p296 = por %p294, %p295
      %s298 = sadd.s32 %s297, 1
      %p301 = scmp.eq.s32.totalorder %s27, 1
      %p302 = scmp.ne.s32.totalorder %s297, %s299
      %p303 = scmp.eq.s32.totalorder %s27, 0
      %p304 = por %p302, %p303
      %p305 = scmp.ne.s32.totalorder %s297, %s299
      %p306 = scmp.eq.s32.totalorder %s32, 1
      %p307 = por %p305, %p306
      %p308 = scmp.ne.s32.totalorder %s299, %s300
      %p309 = scmp.eq.s32.totalorder %s32, 0
      %p310 = por %p308, %p309
      %p311 = scmp.ne.s32.totalorder %s299, %s300
      %p312 = scmp.eq.s32.totalorder %s33, 1
      %p313 = por %p311, %p312
      %p315 = scmp.ne.s32.totalorder %s300, %s314
      %p316 = scmp.eq.s32.totalorder %s33, 0
      %p317 = por %p315, %p316
      %s319 = sadd.s32 %s318, 1
      %p322 = scmp.eq.s32.totalorder %s27, 1
      %p323 = scmp.ne.s32.totalorder %s318, %s320
      %p324 = scmp.eq.s32.totalorder %s27, 0
      %p325 = por %p323, %p324
      %p326 = scmp.ne.s32.totalorder %s318, %s320
      %p327 = scmp.eq.s32.totalorder %s32, 1
      %p328 = por %p326, %p327
      %p329 = scmp.ne.s32.totalorder %s320, %s321
      %p330 = scmp.eq.s32.totalorder %s32, 0
      %p331 = por %p329, %p330
      %p332 = scmp.ne.s32.totalorder %s320, %s321
      %p333 = scmp.eq.s32.totalorder %s33, 1
      %p334 = por %p332, %p333
      %p336 = scmp.ne.s32.totalorder %s321, %s335
      %p337 = scmp.eq.s32.totalorder %s33, 0
      %p338 = por %p336, %p337
      %s339 = ssub.s32 %s27, %s34
      %p340 = scmp.eq.s32.totalorder %s339, 0
      %s342 = sadd.s32 %s341, 1
      %s343 = scalar_select %p340, %s341, %s342
      %p346 = pneg %p340
      %p347 = scmp.eq.s32.totalorder %s27, 1
      %p348 = por %p346, %p347
      %p349 = scmp.ne.s32.totalorder %s341, %s344
      %p350 = scmp.eq.s32.totalorder %s27, 0
      %p351 = por %p349, %p350
      %p352 = scmp.ne.s32.totalorder %s341, %s344
      %p353 = scmp.eq.s32.totalorder %s32, 1
      %p354 = por %p352, %p353
      %p355 = scmp.ne.s32.totalorder %s344, %s345
      %p356 = scmp.eq.s32.totalorder %s32, 0
      %p357 = por %p355, %p356
      %p358 = scmp.ne.s32.totalorder %s344, %s345
      %p359 = scmp.eq.s32.totalorder %s33, 1
      %p360 = por %p358, %p359
      %p362 = scmp.ne.s32.totalorder %s345, %s361
      %p363 = scmp.eq.s32.totalorder %s33, 0
      %p364 = por %p362, %p363
      %p365 = scmp.le.s32.totalorder 1, %s27
      %p366 = scmp.lt.s32.totalorder %s27, 3
      %p367 = pnand %p365, %p366
      %p368 = pneg %p367
      // Predicated region
      $region9: #{tpu_custom_call.1} parent=5 // pred_check
        _
      $region10: #{tpu_custom_call.1} parent=5 // pred_check_branch
        %370 = sbr.rel (%p367) target = $region12
      $region11: #{tpu_custom_call.1} parent=5 // pred_region
        %s371 = ssub.s32 %s27, 1
        // Predicated region
        $region13: #{tpu_custom_call.1} parent=11 // pred_check
          %p372 = pneg %p100
        $region14: #{tpu_custom_call.1} parent=11 // pred_check_branch
          %374 = sbr.rel (%p372) target = $region16
        $region15: #{tpu_custom_call.1} parent=11 // pred_region
          _
        $region16: #{tpu_custom_call.1} parent=11 // pred_fallthru
          _
        // Predicated region
        $region17: #{tpu_custom_call.1} parent=11 // pred_check
          %p375 = pneg %p121
        $region18: #{tpu_custom_call.1} parent=11 // pred_check_branch
          %377 = sbr.rel (%p375) target = $region20
        $region19: #{tpu_custom_call.1} parent=11 // pred_region
          _
        $region20: #{tpu_custom_call.1} parent=11 // pred_fallthru
          _
        // Predicated region
        $region21: #{tpu_custom_call.1} parent=11 // pred_check
          %p378 = pneg %p142
        $region22: #{tpu_custom_call.1} parent=11 // pred_check_branch
          %380 = sbr.rel (%p378) target = $region24
        $region23: #{tpu_custom_call.1} parent=11 // pred_region
          _
        $region24: #{tpu_custom_call.1} parent=11 // pred_fallthru
          _
        // Predicated region
        $region25: #{tpu_custom_call.1} parent=11 // pred_check
          %p381 = pneg %p163
        $region26: #{tpu_custom_call.1} parent=11 // pred_check_branch
          %383 = sbr.rel (%p381) target = $region28
        $region27: #{tpu_custom_call.1} parent=11 // pred_region
          _
        $region28: #{tpu_custom_call.1} parent=11 // pred_fallthru
          _
        // Predicated region
        $region29: #{tpu_custom_call.1} parent=11 // pred_check
          %p384 = pneg %p184
        $region30: #{tpu_custom_call.1} parent=11 // pred_check_branch
          %386 = sbr.rel (%p384) target = $region32
        $region31: #{tpu_custom_call.1} parent=11 // pred_region
          %s388 = ssub.s32 256, 256
          %389 = vsyncadd [#allocation8], %s388
          %s390 = sshll.u32 [#allocation7], 4
          %s391 = int_to_ptr.vmem [resolvable:$true] %s390
          %396 = dma.hbm_to_vmem [thread:$0]  %s6, 256, %s391, [#allocation8], 64, 64, 4
        $region32: #{tpu_custom_call.1} parent=11 // pred_fallthru
          _
        // Predicated region
        $region33: #{tpu_custom_call.1} parent=11 // pred_check
          %p397 = pneg %p205
        $region34: #{tpu_custom_call.1} parent=11 // pred_check_branch
          %399 = sbr.rel (%p397) target = $region36
        $region35: #{tpu_custom_call.1} parent=11 // pred_region
          _
        $region36: #{tpu_custom_call.1} parent=11 // pred_fallthru
          _
        // Predicated region
        $region37: #{tpu_custom_call.1} parent=11 // pred_check
          %p400 = pneg %p226
        $region38: #{tpu_custom_call.1} parent=11 // pred_check_branch
          %402 = sbr.rel (%p400) target = $region40
        $region39: #{tpu_custom_call.1} parent=11 // pred_region
          _
        $region40: #{tpu_custom_call.1} parent=11 // pred_fallthru
          _
        // Predicated region
        $region41: #{tpu_custom_call.1} parent=11 // pred_check
          %p403 = pneg %p247
        $region42: #{tpu_custom_call.1} parent=11 // pred_check_branch
          %405 = sbr.rel (%p403) target = $region44
        $region43: #{tpu_custom_call.1} parent=11 // pred_region
          _
        $region44: #{tpu_custom_call.1} parent=11 // pred_fallthru
          _
        // Predicated region
        $region45: #{tpu_custom_call.1} parent=11 // pred_check
          %p406 = pneg %p268
        $region46: #{tpu_custom_call.1} parent=11 // pred_check_branch
          %408 = sbr.rel (%p406) target = $region48
        $region47: #{tpu_custom_call.1} parent=11 // pred_region
          _
        $region48: #{tpu_custom_call.1} parent=11 // pred_fallthru
          _
        // Predicated region
        $region49: #{tpu_custom_call.1} parent=11 // pred_check
          %p409 = pneg %p289
        $region50: #{tpu_custom_call.1} parent=11 // pred_check_branch
          %411 = sbr.rel (%p409) target = $region52
        $region51: #{tpu_custom_call.1} parent=11 // pred_region
          _
        $region52: #{tpu_custom_call.1} parent=11 // pred_fallthru
          _
        // Predicated region
        $region53: #{tpu_custom_call.1} parent=11 // pred_check
          %p412 = pneg %p310
        $region54: #{tpu_custom_call.1} parent=11 // pred_check_branch
          %414 = sbr.rel (%p412) target = $region56
        $region55: #{tpu_custom_call.1} parent=11 // pred_region
          _
        $region56: #{tpu_custom_call.1} parent=11 // pred_fallthru
          _
        // Predicated region
        $region57: #{tpu_custom_call.1} parent=11 // pred_check
          %p415 = pneg %p331
        $region58: #{tpu_custom_call.1} parent=11 // pred_check_branch
          %417 = sbr.rel (%p415) target = $region60
        $region59: #{tpu_custom_call.1} parent=11 // pred_region
          _
        $region60: #{tpu_custom_call.1} parent=11 // pred_fallthru
          _
      $region12: #{tpu_custom_call.1} parent=5 // pred_fallthru
        _
      %p418 = scmp.lt.s32.totalorder %s27, 2
      // Predicated region
      $region61: #{tpu_custom_call.1} parent=5 // pred_check
        %p419 = pneg %p418
      $region62: #{tpu_custom_call.1} parent=5 // pred_check_branch
        %421 = sbr.rel (%p419) target = $region64
      $region63: #{tpu_custom_call.1} parent=5 // pred_region
        // Predicated region
        $region65: #{tpu_custom_call.1} parent=63 // pred_check
          %p422 = pneg %p47
        $region66: #{tpu_custom_call.1} parent=63 // pred_check_branch
          %424 = sbr.rel (%p422) target = $region68
        $region67: #{tpu_custom_call.1} parent=63 // pred_region
          %p425 = scmp.lt.s32.totalorder %s27, 1
          %s426 = scalar_select %p425, %s27, 1
          %s427 = smul.addr %s426, 8
          %s428 = scalar_lea.vmem %s0, %s427
        $region68: #{tpu_custom_call.1} parent=63 // pred_fallthru
          _
        // Predicated region
        $region69: #{tpu_custom_call.1} parent=63 // pred_check
          %p429 = pneg %p73
        $region70: #{tpu_custom_call.1} parent=63 // pred_check_branch
          %431 = sbr.rel (%p429) target = $region72
        $region71: #{tpu_custom_call.1} parent=63 // pred_region
          %s432 = sand.u32 %s63, 1
          %s433 = scalar_lea.sflag [#allocation5], %s432
          %s434 = sand.u32 %s63, 1
          %s435 = scalar_lea.vmem [#allocation4], %s434
          %s437 = ssub.s32 16, 16
          %438 = vsyncadd %s433, %s437
          %s439 = smul.addr %s27, 16
          %s440 = scalar_lea.hbm %s1, %s439
          %s442 = sshll.u32 %s435, 4
          %s443 = int_to_ptr.vmem [resolvable:$true] %s442
          %445 = dma.hbm_to_vmem [thread:$0]  %s440, 16, %s443, %s433
        $region72: #{tpu_custom_call.1} parent=63 // pred_fallthru
          _
      $region64: #{tpu_custom_call.1} parent=5 // pred_fallthru
        _
      %p446 = scmp.le.s32.totalorder 1, %s27
      %p447 = scmp.lt.s32.totalorder %s27, 3
      %p448 = pnand %p446, %p447
      %p449 = pneg %p448
      // Predicated region
      $region73: #{tpu_custom_call.1} parent=5 // pred_check
        _
      $region74: #{tpu_custom_call.1} parent=5 // pred_check_branch
        %451 = sbr.rel (%p448) target = $region76
      $region75: #{tpu_custom_call.1} parent=5 // pred_region
        %s452 = ssub.s32 %s27, 1
        %s453 = sand.u32 %s66, 1
        %s454 = scalar_lea.sflag [#allocation5], %s453
        %s455 = sand.u32 %s66, 1
        %s456 = scalar_lea.vmem [#allocation4], %s455
        // Predicated region
        $region77: #{tpu_custom_call.1} parent=75 // pred_check
          %p457 = pneg %p79
        $region78: #{tpu_custom_call.1} parent=75 // pred_check_branch
          %459 = sbr.rel (%p457) target = $region80
        $region79: #{tpu_custom_call.1} parent=75 // pred_region
          %460 = dma.done %s454, 16
        $region80: #{tpu_custom_call.1} parent=75 // pred_fallthru
          _
        // Predicated region
        $region81: #{tpu_custom_call.1} parent=75 // pred_check
          %p461 = pneg %p184
        $region82: #{tpu_custom_call.1} parent=75 // pred_check_branch
          %463 = sbr.rel (%p461) target = $region84
        $region83: #{tpu_custom_call.1} parent=75 // pred_region
          %464 = dma.done [#allocation8], 256
        $region84: #{tpu_custom_call.1} parent=75 // pred_fallthru
          _
        %p465 = scmp.lt.s32.totalorder %s32, 1
        %s466 = scalar_select %p465, %s32, 1
        %s467 = smul.addr %s466, 8
        %s468 = scalar_lea.vmem %s0, %s467
        %p469 = pneg %p53
        %p470 = pneg %p50
        %s471 = sand.u32 %s66, 1
        %s472 = scalar_lea.sflag [#allocation5], %s471
        %s473 = sand.u32 %s66, 1
        %s474 = scalar_lea.vmem [#allocation4], %s473
        %p475 = pneg %p79
        %p476 = pneg %p76
        %p477 = pneg %p100
        %p478 = pneg %p97
        %p479 = pneg %p121
        %p480 = pneg %p118
        %p481 = pneg %p142
        %p482 = pneg %p139
        %p483 = pneg %p163
        %p484 = pneg %p160
        %p485 = pneg %p184
        %p486 = pneg %p181
        %p487 = pneg %p205
        %p488 = pneg %p202
        %p489 = pneg %p226
        %p490 = pneg %p223
        %p491 = pneg %p247
        %p492 = pneg %p244
        %p493 = pneg %p268
        %p494 = pneg %p265
        %p495 = pneg %p289
        %p496 = pneg %p286
        %p497 = pneg %p310
        %p498 = pneg %p307
        %p499 = pneg %p331
        %p500 = pneg %p328
        %p501 = pneg %p357
        %p502 = pneg %p354
        %s503 = sand.u32 %s344, 1
        %s504 = scalar_lea.sflag [#allocation6], %s503
        %s505 = sand.u32 %s344, 1
        %s506 = smul.addr %s505, 8
        %s507 = scalar_lea.vmem [#allocation9], %s506
        %p508 = scmp.lt.s32.totalorder %s32, 1
        %s509 = scalar_select %p508, %s32, 1
        %s510 = smul.addr %s509, 8
        %s511 = scalar_lea.vmem %s0, %s510
        %v513 = vld [vmem:[%s511] sm:$0xff]
        %vm514 = vcmask 261120
        %v515 = vsel %vm514, %v513, 0.0
        %516 = vadd.xlane.f32.xlu0 %v515
        %v517 = vpop.xlane.xlu0 %516
        %v518 = vrcp.pop 32.0
        %v519 = vmul.f32 %v517, %v518
        %v520 = vsub.f32 %v513, %v519
        %v521 = vmul.f32 %v520, %v520
        %v522 = vsel %vm514, %v521, 0.0
        %523 = vadd.xlane.f32.xlu0 %v522
        %v524 = vpop.xlane.xlu0 %523
        %v525 = vmul.f32 %v524, 0.032258064
        %v526 = vld [vmem:[%s10] sm:$0x1]
        %v527 = vrsqrt.pop %v525
        %v528 = vmul.f32 %v525, %v527
        %vm529 = vcmp.eq.f32.partialorder %v525, inf
        %v530 = vsel %vm529, %v525, %v528
        %vm531 = vcmp.eq.f32.partialorder %v525, 0.0
        %v532 = vand.u32 %v525, 2147483648
        %v533 = vsel %vm531, %v532, %v530
        %v534 = vadd.f32 %v533, 1e-06
        %v535 = vrcp.pop %v534
        %v536 = vmul.f32 %v520, %v535
        %v538 = vlaneseq
        %v539 = vshrl.u32 %v538, 7
        %v540 = vsub.s32 0, %v539
        %v541 = vrot.slane %v526, %v540
        %v543 = vmul.f32 %v541, %v536
        %v544 = vld [vmem:[%s11] sm:$0x1]
        %v546 = vlaneseq
        %v547 = vshrl.u32 %v546, 7
        %v548 = vsub.s32 0, %v547
        %v549 = vrot.slane %v544, %v548
        %v551 = vadd.f32 %v543, %v549
        %v552 = vpack.c.bf16 %v551, %v551
        %v553 = vld [vmem:[%s2] sm:$0xf]
        %v554 = vld [vmem:[%s2 + $0x4] sm:$0xf]
        %v555 = vld [vmem:[%s2 + $0x8] sm:$0xf]
        %v556 = vld [vmem:[%s2 + $0xc] sm:$0xf]
        %v557 = vld [vmem:[%s3] sm:$0x1]
        %v559 = vlaneseq
        %v560 = vshrl.u32 %v559, 7
        %v561 = vsub.s32 0, %v560
        %v562 = vrot.slane %v557, %v561
        %v568 = vunpack.c.l.b16 %v553
        %v569 = vunpack.c.l.b16 %v554
        %v570 = vunpack.c.l.b16 %v555
        %v571 = vunpack.c.l.b16 %v556
        %v572 = vpack.c.b16 %v569, %v568
        %v573 = vpack.c.b16 %v571, %v570
        %v577 = vsel %vm514, %v552, 0
        %579 = vmatprep.subr.bf16.mxu0 0
        %580 = vmatpush1.bf16.msra.mxu0 0
        %581 = vmatprep.subr.bf16.mxu0 0
        %582 = vmatpush1.bf16.msra.mxu0 0
        %583 = vmatprep.subr.bf16.mxu0 0
        %584 = vmatpush1.bf16.msra.mxu0 0
        %585 = vmatprep.subr.bf16.mxu0 0
        %586 = vmatpush1.bf16.msra.mxu0 0
        %587 = vmatprep.subr.bf16.mxu0 0
        %588 = vmatpush1.bf16.msra.mxu0 0
        %589 = vmatprep.subr.bf16.mxu0 0
        %590 = vmatpush1.bf16.msra.mxu0 0
        %591 = vmatprep.subr.bf16.mxu0 0
        %592 = vmatpush1.bf16.msra.mxu0 %v573
        %593 = vmatprep.subr.bf16.mxu0 0
        %594 = vmatpush1.bf16.msra.mxu0 %v572
        %595 = vmatprep.subr.bf16.mxu0 0
        %596 = vmatpush2.bf16.msra.mxu0 0
        %597 = vmatprep.subr.bf16.mxu0 0
        %598 = vmatpush2.bf16.msra.mxu0 0
        %599 = vmatprep.subr.bf16.mxu0 0
        %600 = vmatpush2.bf16.msra.mxu0 0
        %601 = vmatprep.subr.bf16.mxu0 0
        %602 = vmatpush2.bf16.msra.mxu0 0
        %603 = vmatprep.subr.bf16.mxu0 0
        %604 = vmatpush2.bf16.msra.mxu0 0
        %605 = vmatprep.subr.bf16.mxu0 0
        %606 = vmatpush2.bf16.msra.mxu0 0
        %607 = vmatprep.subr.bf16.mxu0 0
        %608 = vmatpush2.bf16.msra.mxu0 0
        %609 = vmatprep.subr.bf16.mxu0 0
        %610 = vmatpush2.bf16.msra.mxu0 0
        %611 = vmatprep.mubr.bf16.mxu0 0
        %612 = vmatmul.mubr.bf16.gmra.mxu0 %v577
        %v613 = vpop.f32.mrf.mxu0
        %v614 = vadd.f32 %v562, %v613
        %v615 = vpop.f32.mrf.mxu0
        %v616 = vpop.f32.mrf.mxu0
        %v617 = vpop.f32.mrf.mxu0
        %618 = vdwg.mxu0
        %v619 = vpack.c.bf16 %v614, %v614
        %vm620 = vcmask 781312
        %621 = vst.msk [vmem:[#allocation2] sm:$0xf] %vm620, %v619
        %v622 = vld [vmem:[%s456] sm:$0x1]
        %vm623 = vcmp.eq.f32.partialorder %v622, 0.0
        %v624 = vsel %vm623, -1e+09, 0.0
        %v625 = vld [vmem:[#allocation2] sm:$0xf]
        %v627 = vunpack.c.l.b16 %v625
        %v628 = vpack.c.b16 %v627, %v627
        %629 = vrot.lane.b32.xlu0 %v628, 96
        %v630 = vpop.permute.xlu0 %629
        %vm631 = vcmask 64512
        %v633 = vsel %vm631, %v625, 0
        %v636 = vsel %vm631, %v630, 0
        %638 = vmatprep.subr.bf16.mxu0 0
        %639 = vmatpush1.bf16.xpose.msra.mxu0 0
        %640 = vmatprep.subr.bf16.mxu0 0
        %641 = vmatpush1.bf16.xpose.msra.mxu0 0
        %642 = vmatprep.subr.bf16.mxu0 0
        %643 = vmatpush1.bf16.xpose.msra.mxu0 0
        %644 = vmatprep.subr.bf16.mxu0 0
        %645 = vmatpush1.bf16.xpose.msra.mxu0 0
        %646 = vmatprep.subr.bf16.mxu0 0
        %647 = vmatpush1.bf16.xpose.msra.mxu0 0
        %648 = vmatprep.subr.bf16.mxu0 0
        %649 = vmatpush1.bf16.xpose.msra.mxu0 0
        %650 = vmatprep.subr.bf16.mxu0 0
        %651 = vmatpush1.bf16.xpose.msra.mxu0 0
        %652 = vmatprep.subr.bf16.mxu0 0
        %653 = vmatpush1.bf16.xpose.msra.mxu0 %v636
        %654 = vmatprep.subr.bf16.mxu0 0
        %655 = vmatpush2.bf16.xpose.msra.mxu0 0
        %656 = vmatprep.subr.bf16.mxu0 0
        %657 = vmatpush2.bf16.xpose.msra.mxu0 0
        %658 = vmatprep.subr.bf16.mxu0 0
        %659 = vmatpush2.bf16.xpose.msra.mxu0 0
        %660 = vmatprep.subr.bf16.mxu0 0
        %661 = vmatpush2.bf16.xpose.msra.mxu0 0
        %662 = vmatprep.subr.bf16.mxu0 0
        %663 = vmatpush2.bf16.xpose.msra.mxu0 0
        %664 = vmatprep.subr.bf16.mxu0 0
        %665 = vmatpush2.bf16.xpose.msra.mxu0 0
        %666 = vmatprep.subr.bf16.mxu0 0
        %667 = vmatpush2.bf16.xpose.msra.mxu0 0
        %668 = vmatprep.subr.bf16.mxu0 0
        %669 = vmatpush2.bf16.xpose.msra.mxu0 0
        %670 = vmatprep.mubr.bf16.mxu0 0
        %671 = vmatmul.mubr.bf16.gmra.mxu0 %v633
        %v672 = vpop.f32.mrf.mxu0
        %v673 = vadd.f32 0.0, %v672
        %v674 = vpop.f32.mrf.mxu0
        %v675 = vpop.f32.mrf.mxu0
        %v676 = vpop.f32.mrf.mxu0
        %677 = vdwg.mxu0
        %v678 = vmul.f32 %v673, 0.35355338
        %v680 = vlaneseq
        %v681 = vshrl.u32 %v680, 7
        %v682 = vsub.s32 0, %v681
        %v683 = vrot.slane %v624, %v682
        %v685 = vadd.f32 %v678, %v683
        %v686 = vsel %vm631, %v685, -inf
        %687 = vmax.xlane.f32.xlu0 %v686
        %v688 = vpop.xlane.xlu0 %687
        %v689 = vsub.f32 %v685, %v688
        %v690 = vmul.f32 %v689, 1.442695
        %v691 = vpow.pop %v690
        %v692 = vsel %vm631, %v691, 0.0
        %693 = vadd.xlane.f32.xlu0 %v692
        %v694 = vpop.xlane.xlu0 %693
        %v695 = vrcp.pop %v694
        %v696 = vmul.f32 %v691, %v695
        %v697 = vpack.c.bf16 %v696, %v696
        %698 = vrot.lane.b32.xlu0 %v628, 64
        %v699 = vpop.permute.xlu0 %698
        %v701 = vsel %vm631, %v697, 0
        %vm703 = vcmask 1043456
        %v705 = vsel %vm703, %v699, 0
        %707 = vmatprep.subr.bf16.mxu0 0
        %708 = vmatpush1.bf16.msra.mxu0 0
        %709 = vmatprep.subr.bf16.mxu0 0
        %710 = vmatpush1.bf16.msra.mxu0 0
        %711 = vmatprep.subr.bf16.mxu0 0
        %712 = vmatpush1.bf16.msra.mxu0 0
        %713 = vmatprep.subr.bf16.mxu0 0
        %714 = vmatpush1.bf16.msra.mxu0 0
        %715 = vmatprep.subr.bf16.mxu0 0
        %716 = vmatpush1.bf16.msra.mxu0 0
        %717 = vmatprep.subr.bf16.mxu0 0
        %718 = vmatpush1.bf16.msra.mxu0 0
        %719 = vmatprep.subr.bf16.mxu0 0
        %720 = vmatpush1.bf16.msra.mxu0 0
        %721 = vmatprep.subr.bf16.mxu0 0
        %722 = vmatpush1.bf16.msra.mxu0 %v705
        %723 = vmatprep.subr.bf16.mxu0 0
        %724 = vmatpush2.bf16.msra.mxu0 0
        %725 = vmatprep.subr.bf16.mxu0 0
        %726 = vmatpush2.bf16.msra.mxu0 0
        %727 = vmatprep.subr.bf16.mxu0 0
        %728 = vmatpush2.bf16.msra.mxu0 0
        %729 = vmatprep.subr.bf16.mxu0 0
        %730 = vmatpush2.bf16.msra.mxu0 0
        %731 = vmatprep.subr.bf16.mxu0 0
        %732 = vmatpush2.bf16.msra.mxu0 0
        %733 = vmatprep.subr.bf16.mxu0 0
        %734 = vmatpush2.bf16.msra.mxu0 0
        %735 = vmatprep.subr.bf16.mxu0 0
        %736 = vmatpush2.bf16.msra.mxu0 0
        %737 = vmatprep.subr.bf16.mxu0 0
        %738 = vmatpush2.bf16.msra.mxu0 0
        %739 = vmatprep.mubr.bf16.mxu0 0
        %740 = vmatmul.mubr.bf16.gmra.mxu0 %v701
        %v741 = vpop.f32.mrf.mxu0
        %v742 = vadd.f32 0.0, %v741
        %v743 = vpop.f32.mrf.mxu0
        %v744 = vpop.f32.mrf.mxu0
        %v745 = vpop.f32.mrf.mxu0
        %746 = vdwg.mxu0
        %v747 = vpack.c.bf16 %v742, %v742
        %vm748 = vcmask 60416
        %749 = vst.msk [vmem:[#allocation3] sm:$0xf] %vm748, %v747
        %v750 = vld [vmem:[#allocation2] sm:$0xf]
        %v752 = vunpack.c.l.b16 %v750
        %v753 = vpack.c.b16 %v752, %v752
        %754 = vrot.lane.b32.xlu0 %v753, 120
        %v755 = vpop.permute.xlu0 %754
        %756 = vrot.lane.b32.xlu0 %v753, 88
        %v757 = vpop.permute.xlu0 %756
        %v759 = vsel %vm631, %v755, 0
        %v762 = vsel %vm631, %v757, 0
        %764 = vmatprep.subr.bf16.mxu0 0
        %765 = vmatpush1.bf16.xpose.msra.mxu0 0
        %766 = vmatprep.subr.bf16.mxu0 0
        %767 = vmatpush1.bf16.xpose.msra.mxu0 0
        %768 = vmatprep.subr.bf16.mxu0 0
        %769 = vmatpush1.bf16.xpose.msra.mxu0 0
        %770 = vmatprep.subr.bf16.mxu0 0
        %771 = vmatpush1.bf16.xpose.msra.mxu0 0
        %772 = vmatprep.subr.bf16.mxu0 0
        %773 = vmatpush1.bf16.xpose.msra.mxu0 0
        %774 = vmatprep.subr.bf16.mxu0 0
        %775 = vmatpush1.bf16.xpose.msra.mxu0 0
        %776 = vmatprep.subr.bf16.mxu0 0
        %777 = vmatpush1.bf16.xpose.msra.mxu0 0
        %778 = vmatprep.subr.bf16.mxu0 0
        %779 = vmatpush1.bf16.xpose.msra.mxu0 %v762
        %780 = vmatprep.subr.bf16.mxu0 0
        %781 = vmatpush2.bf16.xpose.msra.mxu0 0
        %782 = vmatprep.subr.bf16.mxu0 0
        %783 = vmatpush2.bf16.xpose.msra.mxu0 0
        %784 = vmatprep.subr.bf16.mxu0 0
        %785 = vmatpush2.bf16.xpose.msra.mxu0 0
        %786 = vmatprep.subr.bf16.mxu0 0
        %787 = vmatpush2.bf16.xpose.msra.mxu0 0
        %788 = vmatprep.subr.bf16.mxu0 0
        %789 = vmatpush2.bf16.xpose.msra.mxu0 0
        %790 = vmatprep.subr.bf16.mxu0 0
        %791 = vmatpush2.bf16.xpose.msra.mxu0 0
        %792 = vmatprep.subr.bf16.mxu0 0
        %793 = vmatpush2.bf16.xpose.msra.mxu0 0
        %794 = vmatprep.subr.bf16.mxu0 0
        %795 = vmatpush2.bf16.xpose.msra.mxu0 0
        %796 = vmatprep.mubr.bf16.mxu0 0
        %797 = vmatmul.mubr.bf16.gmra.mxu0 %v759
        %v798 = vpop.f32.mrf.mxu0
        %v799 = vadd.f32 0.0, %v798
        %v800 = vpop.f32.mrf.mxu0
        %v801 = vpop.f32.mrf.mxu0
        %v802 = vpop.f32.mrf.mxu0
        %803 = vdwg.mxu0
        %v804 = vmul.f32 %v799, 0.35355338
        %v805 = vadd.f32 %v804, %v683
        %v806 = vsel %vm631, %v805, -inf
        %807 = vmax.xlane.f32.xlu0 %v806
        %v808 = vpop.xlane.xlu0 %807
        %v809 = vsub.f32 %v805, %v808
        %v810 = vmul.f32 %v809, 1.442695
        %v811 = vpow.pop %v810
        %v812 = vsel %vm631, %v811, 0.0
        %813 = vadd.xlane.f32.xlu0 %v812
        %v814 = vpop.xlane.xlu0 %813
        %v815 = vrcp.pop %v814
        %v816 = vmul.f32 %v811, %v815
        %v817 = vpack.c.bf16 %v816, %v816
        %818 = vrot.lane.b32.xlu0 %v753, 56
        %v819 = vpop.permute.xlu0 %818
        %v821 = vsel %vm631, %v817, 0
        %v824 = vsel %vm703, %v819, 0
        %826 = vmatprep.subr.bf16.mxu0 0
        %827 = vmatpush1.bf16.msra.mxu0 0
        %828 = vmatprep.subr.bf16.mxu0 0
        %829 = vmatpush1.bf16.msra.mxu0 0
        %830 = vmatprep.subr.bf16.mxu0 0
        %831 = vmatpush1.bf16.msra.mxu0 0
        %832 = vmatprep.subr.bf16.mxu0 0
        %833 = vmatpush1.bf16.msra.mxu0 0
        %834 = vmatprep.subr.bf16.mxu0 0
        %835 = vmatpush1.bf16.msra.mxu0 0
        %836 = vmatprep.subr.bf16.mxu0 0
        %837 = vmatpush1.bf16.msra.mxu0 0
        %838 = vmatprep.subr.bf16.mxu0 0
        %839 = vmatpush1.bf16.msra.mxu0 0
        %840 = vmatprep.subr.bf16.mxu0 0
        %841 = vmatpush1.bf16.msra.mxu0 %v824
        %842 = vmatprep.subr.bf16.mxu0 0
        %843 = vmatpush2.bf16.msra.mxu0 0
        %844 = vmatprep.subr.bf16.mxu0 0
        %845 = vmatpush2.bf16.msra.mxu0 0
        %846 = vmatprep.subr.bf16.mxu0 0
        %847 = vmatpush2.bf16.msra.mxu0 0
        %848 = vmatprep.subr.bf16.mxu0 0
        %849 = vmatpush2.bf16.msra.mxu0 0
        %850 = vmatprep.subr.bf16.mxu0 0
        %851 = vmatpush2.bf16.msra.mxu0 0
        %852 = vmatprep.subr.bf16.mxu0 0
        %853 = vmatpush2.bf16.msra.mxu0 0
        %854 = vmatprep.subr.bf16.mxu0 0
        %855 = vmatpush2.bf16.msra.mxu0 0
        %856 = vmatprep.subr.bf16.mxu0 0
        %857 = vmatpush2.bf16.msra.mxu0 0
        %858 = vmatprep.mubr.bf16.mxu0 0
        %859 = vmatmul.mubr.bf16.gmra.mxu0 %v821
        %v860 = vpop.f32.mrf.mxu0
        %v861 = vadd.f32 0.0, %v860
        %v862 = vpop.f32.mrf.mxu0
        %v863 = vpop.f32.mrf.mxu0
        %v864 = vpop.f32.mrf.mxu0
        %865 = vdwg.mxu0
        %v866 = vpack.c.bf16 %v861, %v861
        %v868 = vunpack.c.l.b16 %v866
        %v869 = vpack.c.b16 %v868, %v868
        %870 = vrot.lane.b32.xlu0 %v869, 8
        %v871 = vpop.permute.xlu0 %870
        %vm873 = vcmask 126016
        %874 = vst.msk [vmem:[#allocation3] sm:$0xf] %vm873, %v871
        %v875 = vld [vmem:[#allocation2] sm:$0xf]
        %v877 = vunpack.c.l.b16 %v875
        %v878 = vpack.c.b16 %v877, %v877
        %879 = vrot.lane.b32.xlu0 %v878, 112
        %v880 = vpop.permute.xlu0 %879
        %881 = vrot.lane.b32.xlu0 %v878, 80
        %v882 = vpop.permute.xlu0 %881
        %v884 = vsel %vm631, %v880, 0
        %v887 = vsel %vm631, %v882, 0
        %889 = vmatprep.subr.bf16.mxu0 0
        %890 = vmatpush1.bf16.xpose.msra.mxu0 0
        %891 = vmatprep.subr.bf16.mxu0 0
        %892 = vmatpush1.bf16.xpose.msra.mxu0 0
        %893 = vmatprep.subr.bf16.mxu0 0
        %894 = vmatpush1.bf16.xpose.msra.mxu0 0
        %895 = vmatprep.subr.bf16.mxu0 0
        %896 = vmatpush1.bf16.xpose.msra.mxu0 0
        %897 = vmatprep.subr.bf16.mxu0 0
        %898 = vmatpush1.bf16.xpose.msra.mxu0 0
        %899 = vmatprep.subr.bf16.mxu0 0
        %900 = vmatpush1.bf16.xpose.msra.mxu0 0
        %901 = vmatprep.subr.bf16.mxu0 0
        %902 = vmatpush1.bf16.xpose.msra.mxu0 0
        %903 = vmatprep.subr.bf16.mxu0 0
        %904 = vmatpush1.bf16.xpose.msra.mxu0 %v887
        %905 = vmatprep.subr.bf16.mxu0 0
        %906 = vmatpush2.bf16.xpose.msra.mxu0 0
        %907 = vmatprep.subr.bf16.mxu0 0
        %908 = vmatpush2.bf16.xpose.msra.mxu0 0
        %909 = vmatprep.subr.bf16.mxu0 0
        %910 = vmatpush2.bf16.xpose.msra.mxu0 0
        %911 = vmatprep.subr.bf16.mxu0 0
        %912 = vmatpush2.bf16.xpose.msra.mxu0 0
        %913 = vmatprep.subr.bf16.mxu0 0
        %914 = vmatpush2.bf16.xpose.msra.mxu0 0
        %915 = vmatprep.subr.bf16.mxu0 0
        %916 = vmatpush2.bf16.xpose.msra.mxu0 0
        %917 = vmatprep.subr.bf16.mxu0 0
        %918 = vmatpush2.bf16.xpose.msra.mxu0 0
        %919 = vmatprep.subr.bf16.mxu0 0
        %920 = vmatpush2.bf16.xpose.msra.mxu0 0
        %921 = vmatprep.mubr.bf16.mxu0 0
        %922 = vmatmul.mubr.bf16.gmra.mxu0 %v884
        %v923 = vpop.f32.mrf.mxu0
        %v924 = vadd.f32 0.0, %v923
        %v925 = vpop.f32.mrf.mxu0
        %v926 = vpop.f32.mrf.mxu0
        %v927 = vpop.f32.mrf.mxu0
        %928 = vdwg.mxu0
        %v929 = vmul.f32 %v924, 0.35355338
        %v930 = vadd.f32 %v929, %v683
        %v931 = vsel %vm631, %v930, -inf
        %932 = vmax.xlane.f32.xlu0 %v931
        %v933 = vpop.xlane.xlu0 %932
        %v934 = vsub.f32 %v930, %v933
        %v935 = vmul.f32 %v934, 1.442695
        %v936 = vpow.pop %v935
        %v937 = vsel %vm631, %v936, 0.0
        %938 = vadd.xlane.f32.xlu0 %v937
        %v939 = vpop.xlane.xlu0 %938
        %v940 = vrcp.pop %v939
        %v941 = vmul.f32 %v936, %v940
        %v942 = vpack.c.bf16 %v941, %v941
        %943 = vrot.lane.b32.xlu0 %v878, 48
        %v944 = vpop.permute.xlu0 %943
        %v946 = vsel %vm631, %v942, 0
        %v949 = vsel %vm703, %v944, 0
        %951 = vmatprep.subr.bf16.mxu0 0
        %952 = vmatpush1.bf16.msra.mxu0 0
        %953 = vmatprep.subr.bf16.mxu0 0
        %954 = vmatpush1.bf16.msra.mxu0 0
        %955 = vmatprep.subr.bf16.mxu0 0
        %956 = vmatpush1.bf16.msra.mxu0 0
        %957 = vmatprep.subr.bf16.mxu0 0
        %958 = vmatpush1.bf16.msra.mxu0 0
        %959 = vmatprep.subr.bf16.mxu0 0
        %960 = vmatpush1.bf16.msra.mxu0 0
        %961 = vmatprep.subr.bf16.mxu0 0
        %962 = vmatpush1.bf16.msra.mxu0 0
        %963 = vmatprep.subr.bf16.mxu0 0
        %964 = vmatpush1.bf16.msra.mxu0 0
        %965 = vmatprep.subr.bf16.mxu0 0
        %966 = vmatpush1.bf16.msra.mxu0 %v949
        %967 = vmatprep.subr.bf16.mxu0 0
        %968 = vmatpush2.bf16.msra.mxu0 0
        %969 = vmatprep.subr.bf16.mxu0 0
        %970 = vmatpush2.bf16.msra.mxu0 0
        %971 = vmatprep.subr.bf16.mxu0 0
        %972 = vmatpush2.bf16.msra.mxu0 0
        %973 = vmatprep.subr.bf16.mxu0 0
        %974 = vmatpush2.bf16.msra.mxu0 0
        %975 = vmatprep.subr.bf16.mxu0 0
        %976 = vmatpush2.bf16.msra.mxu0 0
        %977 = vmatprep.subr.bf16.mxu0 0
        %978 = vmatpush2.bf16.msra.mxu0 0
        %979 = vmatprep.subr.bf16.mxu0 0
        %980 = vmatpush2.bf16.msra.mxu0 0
        %981 = vmatprep.subr.bf16.mxu0 0
        %982 = vmatpush2.bf16.msra.mxu0 0
        %983 = vmatprep.mubr.bf16.mxu0 0
        %984 = vmatmul.mubr.bf16.gmra.mxu0 %v946
        %v985 = vpop.f32.mrf.mxu0
        %v986 = vadd.f32 0.0, %v985
        %v987 = vpop.f32.mrf.mxu0
        %v988 = vpop.f32.mrf.mxu0
        %v989 = vpop.f32.mrf.mxu0
        %990 = vdwg.mxu0
        %v991 = vpack.c.bf16 %v986, %v986
        %v993 = vunpack.c.l.b16 %v991
        %v994 = vpack.c.b16 %v993, %v993
        %995 = vrot.lane.b32.xlu0 %v994, 16
        %v996 = vpop.permute.xlu0 %995
        %vm998 = vcmask 191616
        %999 = vst.msk [vmem:[#allocation3] sm:$0xf] %vm998, %v996
        %v1000 = vld [vmem:[#allocation2] sm:$0xf]
        %v1002 = vunpack.c.l.b16 %v1000
        %v1003 = vpack.c.b16 %v1002, %v1002
        %1004 = vrot.lane.b32.xlu0 %v1003, 104
        %v1005 = vpop.permute.xlu0 %1004
        %1006 = vrot.lane.b32.xlu0 %v1003, 72
        %v1007 = vpop.permute.xlu0 %1006
        %v1009 = vsel %vm631, %v1005, 0
        %v1012 = vsel %vm631, %v1007, 0
        %1014 = vmatprep.subr.bf16.mxu0 0
        %1015 = vmatpush1.bf16.xpose.msra.mxu0 0
        %1016 = vmatprep.subr.bf16.mxu0 0
        %1017 = vmatpush1.bf16.xpose.msra.mxu0 0
        %1018 = vmatprep.subr.bf16.mxu0 0
        %1019 = vmatpush1.bf16.xpose.msra.mxu0 0
        %1020 = vmatprep.subr.bf16.mxu0 0
        %1021 = vmatpush1.bf16.xpose.msra.mxu0 0
        %1022 = vmatprep.subr.bf16.mxu0 0
        %1023 = vmatpush1.bf16.xpose.msra.mxu0 0
        %1024 = vmatprep.subr.bf16.mxu0 0
        %1025 = vmatpush1.bf16.xpose.msra.mxu0 0
        %1026 = vmatprep.subr.bf16.mxu0 0
        %1027 = vmatpush1.bf16.xpose.msra.mxu0 0
        %1028 = vmatprep.subr.bf16.mxu0 0
        %1029 = vmatpush1.bf16.xpose.msra.mxu0 %v1012
        %1030 = vmatprep.subr.bf16.mxu0 0
        %1031 = vmatpush2.bf16.xpose.msra.mxu0 0
        %1032 = vmatprep.subr.bf16.mxu0 0
        %1033 = vmatpush2.bf16.xpose.msra.mxu0 0
        %1034 = vmatprep.subr.bf16.mxu0 0
        %1035 = vmatpush2.bf16.xpose.msra.mxu0 0
        %1036 = vmatprep.subr.bf16.mxu0 0
        %1037 = vmatpush2.bf16.xpose.msra.mxu0 0
        %1038 = vmatprep.subr.bf16.mxu0 0
        %1039 = vmatpush2.bf16.xpose.msra.mxu0 0
        %1040 = vmatprep.subr.bf16.mxu0 0
        %1041 = vmatpush2.bf16.xpose.msra.mxu0 0
        %1042 = vmatprep.subr.bf16.mxu0 0
        %1043 = vmatpush2.bf16.xpose.msra.mxu0 0
        %1044 = vmatprep.subr.bf16.mxu0 0
        %1045 = vmatpush2.bf16.xpose.msra.mxu0 0
        %1046 = vmatprep.mubr.bf16.mxu0 0
        %1047 = vmatmul.mubr.bf16.gmra.mxu0 %v1009
        %v1048 = vpop.f32.mrf.mxu0
        %v1049 = vadd.f32 0.0, %v1048
        %v1050 = vpop.f32.mrf.mxu0
        %v1051 = vpop.f32.mrf.mxu0
        %v1052 = vpop.f32.mrf.mxu0
        %1053 = vdwg.mxu0
        %v1054 = vmul.f32 %v1049, 0.35355338
        %v1055 = vadd.f32 %v1054, %v683
        %v1056 = vsel %vm631, %v1055, -inf
        %1057 = vmax.xlane.f32.xlu0 %v1056
        %v1058 = vpop.xlane.xlu0 %1057
        %v1059 = vsub.f32 %v1055, %v1058
        %v1060 = vmul.f32 %v1059, 1.442695
        %v1061 = vpow.pop %v1060
        %v1062 = vsel %vm631, %v1061, 0.0
        %1063 = vadd.xlane.f32.xlu0 %v1062
        %v1064 = vpop.xlane.xlu0 %1063
        %v1065 = vrcp.pop %v1064
        %v1066 = vmul.f32 %v1061, %v1065
        %v1067 = vpack.c.bf16 %v1066, %v1066
        %1068 = vrot.lane.b32.xlu0 %v1003, 40
        %v1069 = vpop.permute.xlu0 %1068
        %v1071 = vsel %vm631, %v1067, 0
        %v1074 = vsel %vm703, %v1069, 0
        %1076 = vmatprep.subr.bf16.mxu0 0
        %1077 = vmatpush1.bf16.msra.mxu0 0
        %1078 = vmatprep.subr.bf16.mxu0 0
        %1079 = vmatpush1.bf16.msra.mxu0 0
        %1080 = vmatprep.subr.bf16.mxu0 0
        %1081 = vmatpush1.bf16.msra.mxu0 0
        %1082 = vmatprep.subr.bf16.mxu0 0
        %1083 = vmatpush1.bf16.msra.mxu0 0
        %1084 = vmatprep.subr.bf16.mxu0 0
        %1085 = vmatpush1.bf16.msra.mxu0 0
        %1086 = vmatprep.subr.bf16.mxu0 0
        %1087 = vmatpush1.bf16.msra.mxu0 0
        %1088 = vmatprep.subr.bf16.mxu0 0
        %1089 = vmatpush1.bf16.msra.mxu0 0
        %1090 = vmatprep.subr.bf16.mxu0 0
        %1091 = vmatpush1.bf16.msra.mxu0 %v1074
        %1092 = vmatprep.subr.bf16.mxu0 0
        %1093 = vmatpush2.bf16.msra.mxu0 0
        %1094 = vmatprep.subr.bf16.mxu0 0
        %1095 = vmatpush2.bf16.msra.mxu0 0
        %1096 = vmatprep.subr.bf16.mxu0 0
        %1097 = vmatpush2.bf16.msra.mxu0 0
        %1098 = vmatprep.subr.bf16.mxu0 0
        %1099 = vmatpush2.bf16.msra.mxu0 0
        %1100 = vmatprep.subr.bf16.mxu0 0
        %1101 = vmatpush2.bf16.msra.mxu0 0
        %1102 = vmatprep.subr.bf16.mxu0 0
        %1103 = vmatpush2.bf16.msra.mxu0 0
        %1104 = vmatprep.subr.bf16.mxu0 0
        %1105 = vmatpush2.bf16.msra.mxu0 0
        %1106 = vmatprep.subr.bf16.mxu0 0
        %1107 = vmatpush2.bf16.msra.mxu0 0
        %1108 = vmatprep.mubr.bf16.mxu0 0
        %1109 = vmatmul.mubr.bf16.gmra.mxu0 %v1071
        %v1110 = vpop.f32.mrf.mxu0
        %v1111 = vadd.f32 0.0, %v1110
        %v1112 = vpop.f32.mrf.mxu0
        %v1113 = vpop.f32.mrf.mxu0
        %v1114 = vpop.f32.mrf.mxu0
        %1115 = vdwg.mxu0
        %v1116 = vpack.c.bf16 %v1111, %v1111
        %v1118 = vunpack.c.l.b16 %v1116
        %v1119 = vpack.c.b16 %v1118, %v1118
        %1120 = vrot.lane.b32.xlu0 %v1119, 24
        %v1121 = vpop.permute.xlu0 %1120
        %vm1123 = vcmask 257216
        %1124 = vst.msk [vmem:[#allocation3] sm:$0xf] %vm1123, %v1121
        %v1125 = vld [vmem:[#allocation3] sm:$0xf]
        %v1126 = vld [vmem:[%s4] sm:$0xf]
        %v1127 = vld [vmem:[%s4 + $0x4] sm:$0xf]
        %v1128 = vld [vmem:[%s4 + $0x8] sm:$0xf]
        %v1129 = vld [vmem:[%s4 + $0xc] sm:$0xf]
        %v1134 = vunpack.c.l.b16 %v1126
        %v1135 = vunpack.c.l.b16 %v1127
        %v1136 = vunpack.c.l.b16 %v1128
        %v1137 = vunpack.c.l.b16 %v1129
        %v1138 = vpack.c.b16 %v1135, %v1134
        %v1139 = vpack.c.b16 %v1137, %v1136
        %v1143 = vsel %vm514, %v1125, 0
        %1145 = vmatprep.subr.bf16.mxu0 0
        %1146 = vmatpush1.bf16.msra.mxu0 0
        %1147 = vmatprep.subr.bf16.mxu0 0
        %1148 = vmatpush1.bf16.msra.mxu0 0
        %1149 = vmatprep.subr.bf16.mxu0 0
        %1150 = vmatpush1.bf16.msra.mxu0 0
        %1151 = vmatprep.subr.bf16.mxu0 0
        %1152 = vmatpush1.bf16.msra.mxu0 0
        %1153 = vmatprep.subr.bf16.mxu0 0
        %1154 = vmatpush1.bf16.msra.mxu0 0
        %1155 = vmatprep.subr.bf16.mxu0 0
        %1156 = vmatpush1.bf16.msra.mxu0 0
        %1157 = vmatprep.subr.bf16.mxu0 0
        %1158 = vmatpush1.bf16.msra.mxu0 %v1139
        %1159 = vmatprep.subr.bf16.mxu0 0
        %1160 = vmatpush1.bf16.msra.mxu0 %v1138
        %1161 = vmatprep.subr.bf16.mxu0 0
        %1162 = vmatpush2.bf16.msra.mxu0 0
        %1163 = vmatprep.subr.bf16.mxu0 0
        %1164 = vmatpush2.bf16.msra.mxu0 0
        %1165 = vmatprep.subr.bf16.mxu0 0
        %1166 = vmatpush2.bf16.msra.mxu0 0
        %1167 = vmatprep.subr.bf16.mxu0 0
        %1168 = vmatpush2.bf16.msra.mxu0 0
        %1169 = vmatprep.subr.bf16.mxu0 0
        %1170 = vmatpush2.bf16.msra.mxu0 0
        %1171 = vmatprep.subr.bf16.mxu0 0
        %1172 = vmatpush2.bf16.msra.mxu0 0
        %1173 = vmatprep.subr.bf16.mxu0 0
        %1174 = vmatpush2.bf16.msra.mxu0 0
        %1175 = vmatprep.subr.bf16.mxu0 0
        %1176 = vmatpush2.bf16.msra.mxu0 0
        %1177 = vmatprep.mubr.bf16.mxu0 0
        %1178 = vmatmul.mubr.bf16.gmra.mxu0 %v1143
        %v1179 = vpop.f32.mrf.mxu0
        %v1180 = vadd.f32 0.0, %v1179
        %v1181 = vpop.f32.mrf.mxu0
        %v1182 = vpop.f32.mrf.mxu0
        %v1183 = vpop.f32.mrf.mxu0
        %1184 = vdwg.mxu0
        %v1185 = vadd.f32 %v513, %v1180
        %v1186 = vld [vmem:[%s5] sm:$0x1]
        %v1188 = vlaneseq
        %v1189 = vshrl.u32 %v1188, 7
        %v1190 = vsub.s32 0, %v1189
        %v1191 = vrot.slane %v1186, %v1190
        %v1193 = vadd.f32 %v1185, %v1191
        %v1194 = vsel %vm514, %v1193, 0.0
        %1195 = vadd.xlane.f32.xlu0 %v1194
        %v1196 = vpop.xlane.xlu0 %1195
        %v1197 = vmul.f32 %v1196, %v518
        %v1198 = vsub.f32 %v1193, %v1197
        %v1199 = vmul.f32 %v1198, %v1198
        %v1200 = vsel %vm514, %v1199, 0.0
        %1201 = vadd.xlane.f32.xlu0 %v1200
        %v1202 = vpop.xlane.xlu0 %1201
        %v1203 = vmul.f32 %v1202, 0.032258064
        %v1204 = vld [vmem:[%s12] sm:$0x1]
        %v1205 = vrsqrt.pop %v1203
        %v1206 = vmul.f32 %v1203, %v1205
        %vm1207 = vcmp.eq.f32.partialorder %v1203, inf
        %v1208 = vsel %vm1207, %v1203, %v1206
        %vm1209 = vcmp.eq.f32.partialorder %v1203, 0.0
        %v1210 = vand.u32 %v1203, 2147483648
        %v1211 = vsel %vm1209, %v1210, %v1208
        %v1212 = vadd.f32 %v1211, 1e-06
        %v1213 = vrcp.pop %v1212
        %v1214 = vmul.f32 %v1198, %v1213
        %v1216 = vlaneseq
        %v1217 = vshrl.u32 %v1216, 7
        %v1218 = vsub.s32 0, %v1217
        %v1219 = vrot.slane %v1204, %v1218
        %v1221 = vmul.f32 %v1219, %v1214
        %v1222 = vld [vmem:[%s13] sm:$0x1]
        %v1224 = vlaneseq
        %v1225 = vshrl.u32 %v1224, 7
        %v1226 = vsub.s32 0, %v1225
        %v1227 = vrot.slane %v1222, %v1226
        %v1229 = vadd.f32 %v1221, %v1227
        %v1230 = vpack.c.bf16 %v1229, %v1229
        %v1231 = vld [vmem:[#allocation7] sm:$0xf]
        %v1232 = vld [vmem:[#allocation7 + $0x4] sm:$0xf]
        %v1233 = vld [vmem:[#allocation7 + $0x8] sm:$0xf]
        %v1234 = vld [vmem:[#allocation7 + $0xc] sm:$0xf]
        %v1235 = vld [vmem:[%s7] sm:$0x1]
        %v1237 = vlaneseq
        %v1238 = vshrl.u32 %v1237, 7
        %v1239 = vsub.s32 0, %v1238
        %v1240 = vrot.slane %v1235, %v1239
        %v1246 = vunpack.c.l.b16 %v1231
        %v1247 = vunpack.c.l.b16 %v1232
        %v1248 = vunpack.c.l.b16 %v1233
        %v1249 = vunpack.c.l.b16 %v1234
        %v1250 = vpack.c.b16 %v1247, %v1246
        %v1251 = vpack.c.b16 %v1249, %v1248
        %v1255 = vsel %vm514, %v1230, 0
        %1257 = vmatprep.subr.bf16.mxu0 0
        %1258 = vmatpush1.bf16.msra.mxu0 0
        %1259 = vmatprep.subr.bf16.mxu0 0
        %1260 = vmatpush1.bf16.msra.mxu0 0
        %1261 = vmatprep.subr.bf16.mxu0 0
        %1262 = vmatpush1.bf16.msra.mxu0 0
        %1263 = vmatprep.subr.bf16.mxu0 0
        %1264 = vmatpush1.bf16.msra.mxu0 0
        %1265 = vmatprep.subr.bf16.mxu0 0
        %1266 = vmatpush1.bf16.msra.mxu0 0
        %1267 = vmatprep.subr.bf16.mxu0 0
        %1268 = vmatpush1.bf16.msra.mxu0 0
        %1269 = vmatprep.subr.bf16.mxu0 0
        %1270 = vmatpush1.bf16.msra.mxu0 %v1251
        %1271 = vmatprep.subr.bf16.mxu0 0
        %1272 = vmatpush1.bf16.msra.mxu0 %v1250
        %1273 = vmatprep.subr.bf16.mxu0 0
        %1274 = vmatpush2.bf16.msra.mxu0 0
        %1275 = vmatprep.subr.bf16.mxu0 0
        %1276 = vmatpush2.bf16.msra.mxu0 0
        %1277 = vmatprep.subr.bf16.mxu0 0
        %1278 = vmatpush2.bf16.msra.mxu0 0
        %1279 = vmatprep.subr.bf16.mxu0 0
        %1280 = vmatpush2.bf16.msra.mxu0 0
        %1281 = vmatprep.subr.bf16.mxu0 0
        %1282 = vmatpush2.bf16.msra.mxu0 0
        %1283 = vmatprep.subr.bf16.mxu0 0
        %1284 = vmatpush2.bf16.msra.mxu0 0
        %1285 = vmatprep.subr.bf16.mxu0 0
        %1286 = vmatpush2.bf16.msra.mxu0 0
        %1287 = vmatprep.subr.bf16.mxu0 0
        %1288 = vmatpush2.bf16.msra.mxu0 0
        %1289 = vmatprep.mubr.bf16.mxu0 0
        %1290 = vmatmul.mubr.bf16.gmra.mxu0 %v1255
        %v1291 = vpop.f32.mrf.mxu0
        %v1292 = vadd.f32 %v1240, %v1291
        %v1293 = vpop.f32.mrf.mxu0
        %v1294 = vpop.f32.mrf.mxu0
        %v1295 = vpop.f32.mrf.mxu0
        %1296 = vdwg.mxu0
        %v1297 = vmax.f32 %v1292, 0.0
        %v1298 = vpack.c.bf16 %v1297, %v1297
        %v1299 = vld [vmem:[%s8] sm:$0xf]
        %v1300 = vld [vmem:[%s8 + $0x4] sm:$0xf]
        %v1301 = vld [vmem:[%s8 + $0x8] sm:$0xf]
        %v1302 = vld [vmem:[%s8 + $0xc] sm:$0xf]
        %v1303 = vld [vmem:[%s8 + $0x10] sm:$0xf]
        %v1304 = vld [vmem:[%s8 + $0x14] sm:$0xf]
        %v1305 = vld [vmem:[%s8 + $0x18] sm:$0xf]
        %v1306 = vld [vmem:[%s8 + $0x1c] sm:$0xf]
        %v1307 = vld [vmem:[%s9] sm:$0x1]
        %v1309 = vlaneseq
        %v1310 = vshrl.u32 %v1309, 7
        %v1311 = vsub.s32 0, %v1310
        %v1312 = vrot.slane %v1307, %v1311
        %v1322 = vunpack.c.l.b16 %v1299
        %v1323 = vunpack.c.l.b16 %v1300
        %v1324 = vunpack.c.l.b16 %v1301
        %v1325 = vunpack.c.l.b16 %v1302
        %v1326 = vunpack.c.l.b16 %v1303
        %v1327 = vunpack.c.l.b16 %v1304
        %v1328 = vunpack.c.l.b16 %v1305
        %v1329 = vunpack.c.l.b16 %v1306
        %v1330 = vpack.c.b16 %v1323, %v1322
        %v1331 = vpack.c.b16 %v1325, %v1324
        %v1332 = vpack.c.b16 %v1327, %v1326
        %v1333 = vpack.c.b16 %v1329, %v1328
        %vm1338 = vcmask 523264
        %v1340 = vsel %vm1338, %v1298, 0
        %1342 = vmatprep.subr.bf16.mxu0 0
        %1343 = vmatpush1.bf16.msra.mxu0 0
        %1344 = vmatprep.subr.bf16.mxu0 0
        %1345 = vmatpush1.bf16.msra.mxu0 0
        %1346 = vmatprep.subr.bf16.mxu0 0
        %1347 = vmatpush1.bf16.msra.mxu0 0
        %1348 = vmatprep.subr.bf16.mxu0 0
        %1349 = vmatpush1.bf16.msra.mxu0 0
        %1350 = vmatprep.subr.bf16.mxu0 0
        %1351 = vmatpush1.bf16.msra.mxu0 %v1333
        %1352 = vmatprep.subr.bf16.mxu0 0
        %1353 = vmatpush1.bf16.msra.mxu0 %v1332
        %1354 = vmatprep.subr.bf16.mxu0 0
        %1355 = vmatpush1.bf16.msra.mxu0 %v1331
        %1356 = vmatprep.subr.bf16.mxu0 0
        %1357 = vmatpush1.bf16.msra.mxu0 %v1330
        %1358 = vmatprep.subr.bf16.mxu0 0
        %1359 = vmatpush2.bf16.msra.mxu0 0
        %1360 = vmatprep.subr.bf16.mxu0 0
        %1361 = vmatpush2.bf16.msra.mxu0 0
        %1362 = vmatprep.subr.bf16.mxu0 0
        %1363 = vmatpush2.bf16.msra.mxu0 0
        %1364 = vmatprep.subr.bf16.mxu0 0
        %1365 = vmatpush2.bf16.msra.mxu0 0
        %1366 = vmatprep.subr.bf16.mxu0 0
        %1367 = vmatpush2.bf16.msra.mxu0 0
        %1368 = vmatprep.subr.bf16.mxu0 0
        %1369 = vmatpush2.bf16.msra.mxu0 0
        %1370 = vmatprep.subr.bf16.mxu0 0
        %1371 = vmatpush2.bf16.msra.mxu0 0
        %1372 = vmatprep.subr.bf16.mxu0 0
        %1373 = vmatpush2.bf16.msra.mxu0 0
        %1374 = vmatprep.mubr.bf16.mxu0 0
        %1375 = vmatmul.mubr.bf16.gmra.mxu0 %v1340
        %v1376 = vpop.f32.mrf.mxu0
        %v1377 = vadd.f32 %v1312, %v1376
        %v1378 = vpop.f32.mrf.mxu0
        %v1379 = vpop.f32.mrf.mxu0
        %v1380 = vpop.f32.mrf.mxu0
        %1381 = vdwg.mxu0
        %v1382 = vadd.f32 %v1193, %v1377
        %1383 = vst.msk [vmem:[%s507] sm:$0xff] %vm514, %v1382
        %s1384 = sand.u32 %s344, 1
        %s1385 = scalar_lea.sflag [#allocation6], %s1384
        %s1386 = sand.u32 %s344, 1
        %s1387 = smul.addr %s1386, 8
        %s1388 = scalar_lea.vmem [#allocation9], %s1387
        // Predicated region
        $region85: #{tpu_custom_call.1} parent=75 // pred_check
          %p1389 = pneg %p354
        $region86: #{tpu_custom_call.1} parent=75 // pred_check_branch
          %1391 = sbr.rel (%p1389) target = $region88
        $region87: #{tpu_custom_call.1} parent=75 // pred_region
          %s1393 = ssub.s32 128, 128
          %1394 = vsyncadd %s1385, %s1393
          %s1395 = smul.addr %s32, 128
          %s1396 = scalar_lea.hbm %s14, %s1395
          %s1398 = sshll.u32 %s1388, 4
          %s1399 = int_to_ptr.vmem [resolvable:$true] %s1398
          %1401 = dma.vmem_to_hbm [thread:$0]  %s1399, 128, %s1396, %s1385
        $region88: #{tpu_custom_call.1} parent=75 // pred_fallthru
          _
      $region76: #{tpu_custom_call.1} parent=5 // pred_fallthru
        _
      %p1402 = scmp.le.s32.totalorder 2, %s27
      // Predicated region
      $region89: #{tpu_custom_call.1} parent=5 // pred_check
        %p1403 = pneg %p1402
      $region90: #{tpu_custom_call.1} parent=5 // pred_check_branch
        %1405 = sbr.rel (%p1403) target = $region92
      $region91: #{tpu_custom_call.1} parent=5 // pred_region
        %s1406 = ssub.s32 %s27, 2
        // Predicated region
        $region93: #{tpu_custom_call.1} parent=91 // pred_check
          %p1407 = pneg %p360
        $region94: #{tpu_custom_call.1} parent=91 // pred_check_branch
          %1409 = sbr.rel (%p1407) target = $region96
        $region95: #{tpu_custom_call.1} parent=91 // pred_region
          %s1410 = sand.u32 %s345, 1
          %s1411 = scalar_lea.sflag [#allocation6], %s1410
          %s1412 = sand.u32 %s345, 1
          %s1413 = smul.addr %s1412, 8
          %s1414 = scalar_lea.vmem [#allocation9], %s1413
          %1415 = dma.done %s1411, 128
        $region96: #{tpu_custom_call.1} parent=91 // pred_fallthru
          _
      $region92: #{tpu_custom_call.1} parent=5 // pred_fallthru
        _
    $region6: #{tpu_custom_call.1} parent=1 // loop_footer
      %s31 = sadd.s32 1, %s27
    $region7: #{tpu_custom_call.1} parent=1 // loop_footer_branch
      %26 = sbr.rel target = $region3
    $region8: #{tpu_custom_call.1} parent=1 // loop_exit
      _
    %1416 = vsyncpa [#allocation5], 1
    %s1417 = scalar_lea.sflag [#allocation5], 1
    %1418 = vsyncpa %s1417, 1
    %1419 = vsyncpa [#allocation8], 1
    %1420 = vsyncpa [#allocation6], 1
    %s1421 = scalar_lea.sflag [#allocation6], 1
    %1422 = vsyncpa %s1421, 1

// kernel: tpu_custom_call.1
$region0: #{tpu_custom_call.1}
  #allocation0 [shape = 'u32[]', space=smem, size = 0x4, offset = 0x4, fixed_abs, tag = 'smem constant byte address 0x4 - core index']
  #allocation1 [shape = 'u32[144,128]{1,0:T(1,128)}', space=vmem, size = 0x12000, scoped, tag = 'internal scratch']
  #allocation2 [shape = 'bf16[8,96]{1,0:T(8,128)(2,1)}', space=vmem, size = 0x800, scoped, tag = 'scratch operand']
  #allocation3 [shape = 'bf16[8,32]{1,0:T(8,128)(2,1)}', space=vmem, size = 0x800, scoped, tag = 'scratch operand']
  %s0 = inlined_call_operand.vmem [shape: f32[16,32], index: 0, kind: input, shape index: {}]
  %s1 = inlined_call_operand.hbm [shape: f32[2,1,1,8], index: 1, kind: input, shape index: {}]
  %s2 = inlined_call_operand.vmem [shape: bf16[32,96], index: 2, kind: input, shape index: {}]
  %s3 = inlined_call_operand.vmem [shape: f32[1,96], index: 3, kind: input, shape index: {}]
  %s4 = inlined_call_operand.vmem [shape: bf16[32,32], index: 4, kind: input, shape index: {}]
  %s5 = inlined_call_operand.vmem [shape: f32[1,32], index: 5, kind: input, shape index: {}]
  %s6 = inlined_call_operand.hbm [shape: bf16[32,64], index: 6, kind: input, shape index: {}]
  %s7 = inlined_call_operand.vmem [shape: f32[1,64], index: 7, kind: input, shape index: {}]
  %s8 = inlined_call_operand.vmem [shape: bf16[64,32], index: 8, kind: input, shape index: {}]
  %s9 = inlined_call_operand.vmem [shape: f32[1,32], index: 9, kind: input, shape index: {}]
  %s10 = inlined_call_operand.vmem [shape: f32[1,32], index: 10, kind: input, shape index: {}]
  %s11 = inlined_call_operand.vmem [shape: f32[1,32], index: 11, kind: input, shape index: {}]
  %s12 = inlined_call_operand.vmem [shape: f32[1,32], index: 12, kind: input, shape index: {}]
  %s13 = inlined_call_operand.vmem [shape: f32[1,32], index: 13, kind: input, shape index: {}]
  %s14 = inlined_call_operand.hbm [shape: f32[16,32], index: 14, kind: output, shape index: {}]
  %s15 = sld [smem:[#allocation0]]
  $region97: #{tpu_custom_call.1} parent=0
    _
  %s17 = ssub.s32 1, %s15
  %s18 = scalar_select 0, %s17, %s15
  $region1: #{tpu_custom_call.1} parent=0
    #allocation4 [shape = 'u8[1024]{0}', space=vmem, size = 0x400, scoped, tag = 'input window, operand 1']
    #allocation5 [shape = 's32[2]{0}', space=sflag, size = 0x8, scoped, tag = 'scoped memory for tpu_custom_call.1']
    #allocation6 [shape = 's32[2]{0}', space=sflag, size = 0x8, scoped, tag = 'scoped memory for tpu_custom_call.1']
    #allocation7 [shape = 'u8[8192]{0}', space=vmem, size = 0x2000, scoped, tag = 'input window, operand 6, single buffered']
    #allocation8 [shape = 's32[1]{0}', space=sflag, size = 0x4, scoped, tag = 'scoped memory for tpu_custom_call.1']
    #allocation9 [shape = 'u8[8192]{0}', space=vmem, size = 0x2000, scoped, tag = 'output window, operand 0']
    %19 = vsyncpa [#allocation5], 0
    %s20 = scalar_lea.sflag [#allocation5], 1
    %21 = vsyncpa %s20, 0
    %22 = vsyncpa [#allocation8], 0
    %23 = vsyncpa [#allocation6], 0
    %s24 = scalar_lea.sflag [#allocation6], 1
    %25 = vsyncpa %s24, 0
    loop: start=0, step=1, limit=4
    $region2: #{tpu_custom_call.1} parent=1 // loop_pre_header
      _
    $region3: #{tpu_custom_call.1} parent=1 // loop_header
      %s27 = sphi 0, %s31
      %p28 = scmp.ge.s32.totalorder %s27, 4
      %s37 = sphi 0, %s39
      %s40 = sphi 0, %s37
      %s41 = sphi 0, %s40
      %s57 = sphi 0, %s41
      %s63 = sphi 0, %s65
      %s66 = sphi 0, %s63
      %s67 = sphi 0, %s66
      %s83 = sphi 0, %s67
      %s87 = sphi 0, %s87
      %s89 = sphi 0, %s87
      %s90 = sphi 0, %s89
      %s104 = sphi 0, %s90
      %s108 = sphi 0, %s108
      %s110 = sphi 0, %s108
      %s111 = sphi 0, %s110
      %s125 = sphi 0, %s111
      %s129 = sphi 0, %s129
      %s131 = sphi 0, %s129
      %s132 = sphi 0, %s131
      %s146 = sphi 0, %s132
      %s150 = sphi 0, %s150
      %s152 = sphi 0, %s150
      %s153 = sphi 0, %s152
      %s167 = sphi 0, %s153
      %s171 = sphi 0, %s171
      %s173 = sphi 0, %s171
      %s174 = sphi 0, %s173
      %s188 = sphi 0, %s174
      %s192 = sphi 0, %s192
      %s194 = sphi 0, %s192
      %s195 = sphi 0, %s194
      %s209 = sphi 0, %s195
      %s213 = sphi 0, %s213
      %s215 = sphi 0, %s213
      %s216 = sphi 0, %s215
      %s230 = sphi 0, %s216
      %s234 = sphi 0, %s234
      %s236 = sphi 0, %s234
      %s237 = sphi 0, %s236
      %s251 = sphi 0, %s237
      %s255 = sphi 0, %s255
      %s257 = sphi 0, %s255
      %s258 = sphi 0, %s257
      %s272 = sphi 0, %s258
      %s276 = sphi 0, %s276
      %s278 = sphi 0, %s276
      %s279 = sphi 0, %s278
      %s293 = sphi 0, %s279
      %s297 = sphi 0, %s297
      %s299 = sphi 0, %s297
      %s300 = sphi 0, %s299
      %s314 = sphi 0, %s300
      %s318 = sphi 0, %s318
      %s320 = sphi 0, %s318
      %s321 = sphi 0, %s320
      %s335 = sphi 0, %s321
      %s341 = sphi 0, %s343
      %s344 = sphi 0, %s341
      %s345 = sphi 0, %s344
      %s361 = sphi 0, %s345
    $region4: #{tpu_custom_call.1} parent=1 // loop_header_branch
      %30 = sbr.rel (%p28) target = $region8
    $region5: #{tpu_custom_call.1} parent=1 // loop_body
      %s32 = ssub.s32 %s27, 1
      %s33 = ssub.s32 %s27, 2
      %s34 = sadd.s32 %s27, 1
      %s35 = ssub.s32 %s27, %s34
      %p36 = scmp.eq.s32.totalorder %s35, 0
      %s38 = sadd.s32 %s37, 1
      %s39 = scalar_select %p36, %s37, %s38
      %p42 = pneg %p36
      %p43 = scmp.eq.s32.totalorder %s27, 1
      %p44 = por %p42, %p43
      %p45 = scmp.ne.s32.totalorder %s37, %s40
      %p46 = scmp.eq.s32.totalorder %s27, 0
      %p47 = por %p45, %p46
      %p48 = scmp.ne.s32.totalorder %s37, %s40
      %p49 = scmp.eq.s32.totalorder %s32, 1
      %p50 = por %p48, %p49
      %p51 = scmp.ne.s32.totalorder %s40, %s41
      %p52 = scmp.eq.s32.totalorder %s32, 0
      %p53 = por %p51, %p52
      %p54 = scmp.ne.s32.totalorder %s40, %s41
      %p55 = scmp.eq.s32.totalorder %s33, 1
      %p56 = por %p54, %p55
      %p58 = scmp.ne.s32.totalorder %s41, %s57
      %p59 = scmp.eq.s32.totalorder %s33, 0
      %p60 = por %p58, %p59
      %s61 = ssub.s32 %s27, %s34
      %p62 = scmp.eq.s32.totalorder %s61, 0
      %s64 = sadd.s32 %s63, 1
      %s65 = scalar_select %p62, %s63, %s64
      %p68 = pneg %p62
      %p69 = scmp.eq.s32.totalorder %s27, 1
      %p70 = por %p68, %p69
      %p71 = scmp.ne.s32.totalorder %s63, %s66
      %p72 = scmp.eq.s32.totalorder %s27, 0
      %p73 = por %p71, %p72
      %p74 = scmp.ne.s32.totalorder %s63, %s66
      %p75 = scmp.eq.s32.totalorder %s32, 1
      %p76 = por %p74, %p75
      %p77 = scmp.ne.s32.totalorder %s66, %s67
      %p78 = scmp.eq.s32.totalorder %s32, 0
      %p79 = por %p77, %p78
      %p80 = scmp.ne.s32.totalorder %s66, %s67
      %p81 = scmp.eq.s32.totalorder %s33, 1
      %p82 = por %p80, %p81
      %p84 = scmp.ne.s32.totalorder %s67, %s83
      %p85 = scmp.eq.s32.totalorder %s33, 0
      %p86 = por %p84, %p85
      %s88 = sadd.s32 %s87, 1
      %p91 = scmp.eq.s32.totalorder %s27, 1
      %p92 = scmp.ne.s32.totalorder %s87, %s89
      %p93 = scmp.eq.s32.totalorder %s27, 0
      %p94 = por %p92, %p93
      %p95 = scmp.ne.s32.totalorder %s87, %s89
      %p96 = scmp.eq.s32.totalorder %s32, 1
      %p97 = por %p95, %p96
      %p98 = scmp.ne.s32.totalorder %s89, %s90
      %p99 = scmp.eq.s32.totalorder %s32, 0
      %p100 = por %p98, %p99
      %p101 = scmp.ne.s32.totalorder %s89, %s90
      %p102 = scmp.eq.s32.totalorder %s33, 1
      %p103 = por %p101, %p102
      %p105 = scmp.ne.s32.totalorder %s90, %s104
      %p106 = scmp.eq.s32.totalorder %s33, 0
      %p107 = por %p105, %p106
      %s109 = sadd.s32 %s108, 1
      %p112 = scmp.eq.s32.totalorder %s27, 1
      %p113 = scmp.ne.s32.totalorder %s108, %s110
      %p114 = scmp.eq.s32.totalorder %s27, 0
      %p115 = por %p113, %p114
      %p116 = scmp.ne.s32.totalorder %s108, %s110
      %p117 = scmp.eq.s32.totalorder %s32, 1
      %p118 = por %p116, %p117
      %p119 = scmp.ne.s32.totalorder %s110, %s111
      %p120 = scmp.eq.s32.totalorder %s32, 0
      %p121 = por %p119, %p120
      %p122 = scmp.ne.s32.totalorder %s110, %s111
      %p123 = scmp.eq.s32.totalorder %s33, 1
      %p124 = por %p122, %p123
      %p126 = scmp.ne.s32.totalorder %s111, %s125
      %p127 = scmp.eq.s32.totalorder %s33, 0
      %p128 = por %p126, %p127
      %s130 = sadd.s32 %s129, 1
      %p133 = scmp.eq.s32.totalorder %s27, 1
      %p134 = scmp.ne.s32.totalorder %s129, %s131
      %p135 = scmp.eq.s32.totalorder %s27, 0
      %p136 = por %p134, %p135
      %p137 = scmp.ne.s32.totalorder %s129, %s131
      %p138 = scmp.eq.s32.totalorder %s32, 1
      %p139 = por %p137, %p138
      %p140 = scmp.ne.s32.totalorder %s131, %s132
      %p141 = scmp.eq.s32.totalorder %s32, 0
      %p142 = por %p140, %p141
      %p143 = scmp.ne.s32.totalorder %s131, %s132
      %p144 = scmp.eq.s32.totalorder %s33, 1
      %p145 = por %p143, %p144
      %p147 = scmp.ne.s32.totalorder %s132, %s146
      %p148 = scmp.eq.s32.totalorder %s33, 0
      %p149 = por %p147, %p148
      %s151 = sadd.s32 %s150, 1
      %p154 = scmp.eq.s32.totalorder %s27, 1
      %p155 = scmp.ne.s32.totalorder %s150, %s152
      %p156 = scmp.eq.s32.totalorder %s27, 0
      %p157 = por %p155, %p156
      %p158 = scmp.ne.s32.totalorder %s150, %s152
      %p159 = scmp.eq.s32.totalorder %s32, 1
      %p160 = por %p158, %p159
      %p161 = scmp.ne.s32.totalorder %s152, %s153
      %p162 = scmp.eq.s32.totalorder %s32, 0
      %p163 = por %p161, %p162
      %p164 = scmp.ne.s32.totalorder %s152, %s153
      %p165 = scmp.eq.s32.totalorder %s33, 1
      %p166 = por %p164, %p165
      %p168 = scmp.ne.s32.totalorder %s153, %s167
      %p169 = scmp.eq.s32.totalorder %s33, 0
      %p170 = por %p168, %p169
      %s172 = sadd.s32 %s171, 1
      %p175 = scmp.eq.s32.totalorder %s27, 1
      %p176 = scmp.ne.s32.totalorder %s171, %s173
      %p177 = scmp.eq.s32.totalorder %s27, 0
      %p178 = por %p176, %p177
      %p179 = scmp.ne.s32.totalorder %s171, %s173
      %p180 = scmp.eq.s32.totalorder %s32, 1
      %p181 = por %p179, %p180
      %p182 = scmp.ne.s32.totalorder %s173, %s174
      %p183 = scmp.eq.s32.totalorder %s32, 0
      %p184 = por %p182, %p183
      %p185 = scmp.ne.s32.totalorder %s173, %s174
      %p186 = scmp.eq.s32.totalorder %s33, 1
      %p187 = por %p185, %p186
      %p189 = scmp.ne.s32.totalorder %s174, %s188
      %p190 = scmp.eq.s32.totalorder %s33, 0
      %p191 = por %p189, %p190
      %s193 = sadd.s32 %s192, 1
      %p196 = scmp.eq.s32.totalorder %s27, 1
      %p197 = scmp.ne.s32.totalorder %s192, %s194
      %p198 = scmp.eq.s32.totalorder %s27, 0
      %p199 = por %p197, %p198
      %p200 = scmp.ne.s32.totalorder %s192, %s194
      %p201 = scmp.eq.s32.totalorder %s32, 1
      %p202 = por %p200, %p201
      %p203 = scmp.ne.s32.totalorder %s194, %s195
      %p204 = scmp.eq.s32.totalorder %s32, 0
      %p205 = por %p203, %p204
      %p206 = scmp.ne.s32.totalorder %s194, %s195
      %p207 = scmp.eq.s32.totalorder %s33, 1
      %p208 = por %p206, %p207
      %p210 = scmp.ne.s32.totalorder %s195, %s209
      %p211 = scmp.eq.s32.totalorder %s33, 0
      %p212 = por %p210, %p211
      %s214 = sadd.s32 %s213, 1
      %p217 = scmp.eq.s32.totalorder %s27, 1
      %p218 = scmp.ne.s32.totalorder %s213, %s215
      %p219 = scmp.eq.s32.totalorder %s27, 0
      %p220 = por %p218, %p219
      %p221 = scmp.ne.s32.totalorder %s213, %s215
      %p222 = scmp.eq.s32.totalorder %s32, 1
      %p223 = por %p221, %p222
      %p224 = scmp.ne.s32.totalorder %s215, %s216
      %p225 = scmp.eq.s32.totalorder %s32, 0
      %p226 = por %p224, %p225
      %p227 = scmp.ne.s32.totalorder %s215, %s216
      %p228 = scmp.eq.s32.totalorder %s33, 1
      %p229 = por %p227, %p228
      %p231 = scmp.ne.s32.totalorder %s216, %s230
      %p232 = scmp.eq.s32.totalorder %s33, 0
      %p233 = por %p231, %p232
      %s235 = sadd.s32 %s234, 1
      %p238 = scmp.eq.s32.totalorder %s27, 1
      %p239 = scmp.ne.s32.totalorder %s234, %s236
      %p240 = scmp.eq.s32.totalorder %s27, 0
      %p241 = por %p239, %p240
      %p242 = scmp.ne.s32.totalorder %s234, %s236
      %p243 = scmp.eq.s32.totalorder %s32, 1
      %p244 = por %p242, %p243
      %p245 = scmp.ne.s32.totalorder %s236, %s237
      %p246 = scmp.eq.s32.totalorder %s32, 0
      %p247 = por %p245, %p246
      %p248 = scmp.ne.s32.totalorder %s236, %s237
      %p249 = scmp.eq.s32.totalorder %s33, 1
      %p250 = por %p248, %p249
      %p252 = scmp.ne.s32.totalorder %s237, %s251
      %p253 = scmp.eq.s32.totalorder %s33, 0
      %p254 = por %p252, %p253
      %s256 = sadd.s32 %s255, 1
      %p259 = scmp.eq.s32.totalorder %s27, 1
      %p260 = scmp.ne.s32.totalorder %s255, %s257
      %p261 = scmp.eq.s32.totalorder %s27, 0
      %p262 = por %p260, %p261
      %p263 = scmp.ne.s32.totalorder %s255, %s257
      %p264 = scmp.eq.s32.totalorder %s32, 1
      %p265 = por %p263, %p264
      %p266 = scmp.ne.s32.totalorder %s257, %s258
      %p267 = scmp.eq.s32.totalorder %s32, 0
      %p268 = por %p266, %p267
      %p269 = scmp.ne.s32.totalorder %s257, %s258
      %p270 = scmp.eq.s32.totalorder %s33, 1
      %p271 = por %p269, %p270
      %p273 = scmp.ne.s32.totalorder %s258, %s272
      %p274 = scmp.eq.s32.totalorder %s33, 0
      %p275 = por %p273, %p274
      %s277 = sadd.s32 %s276, 1
      %p280 = scmp.eq.s32.totalorder %s27, 1
      %p281 = scmp.ne.s32.totalorder %s276, %s278
      %p282 = scmp.eq.s32.totalorder %s27, 0
      %p283 = por %p281, %p282
      %p284 = scmp.ne.s32.totalorder %s276, %s278
      %p285 = scmp.eq.s32.totalorder %s32, 1
      %p286 = por %p284, %p285
      %p287 = scmp.ne.s32.totalorder %s278, %s279
      %p288 = scmp.eq.s32.totalorder %s32, 0
      %p289 = por %p287, %p288
      %p290 = scmp.ne.s32.totalorder %s278, %s279
      %p291 = scmp.eq.s32.totalorder %s33, 1
      %p292 = por %p290, %p291
      %p294 = scmp.ne.s32.totalorder %s279, %s293
      %p295 = scmp.eq.s32.totalorder %s33, 0
      %p296 = por %p294, %p295
      %s298 = sadd.s32 %s297, 1
      %p301 = scmp.eq.s32.totalorder %s27, 1
      %p302 = scmp.ne.s32.totalorder %s297, %s299
      %p303 = scmp.eq.s32.totalorder %s27, 0
      %p304 = por %p302, %p303
      %p305 = scmp.ne.s32.totalorder %s297, %s299
      %p306 = scmp.eq.s32.totalorder %s32, 1
      %p307 = por %p305, %p306
      %p308 = scmp.ne.s32.totalorder %s299, %s300
      %p309 = scmp.eq.s32.totalorder %s32, 0
      %p310 = por %p308, %p309
      %p311 = scmp.ne.s32.totalorder %s299, %s300
      %p312 = scmp.eq.s32.totalorder %s33, 1
      %p313 = por %p311, %p312
      %p315 = scmp.ne.s32.totalorder %s300, %s314
      %p316 = scmp.eq.s32.totalorder %s33, 0
      %p317 = por %p315, %p316
      %s319 = sadd.s32 %s318, 1
      %p322 = scmp.eq.s32.totalorder %s27, 1
      %p323 = scmp.ne.s32.totalorder %s318, %s320
      %p324 = scmp.eq.s32.totalorder %s27, 0
      %p325 = por %p323, %p324
      %p326 = scmp.ne.s32.totalorder %s318, %s320
      %p327 = scmp.eq.s32.totalorder %s32, 1
      %p328 = por %p326, %p327
      %p329 = scmp.ne.s32.totalorder %s320, %s321
      %p330 = scmp.eq.s32.totalorder %s32, 0
      %p331 = por %p329, %p330
      %p332 = scmp.ne.s32.totalorder %s320, %s321
      %p333 = scmp.eq.s32.totalorder %s33, 1
      %p334 = por %p332, %p333
      %p336 = scmp.ne.s32.totalorder %s321, %s335
      %p337 = scmp.eq.s32.totalorder %s33, 0
      %p338 = por %p336, %p337
      %s339 = ssub.s32 %s27, %s34
      %p340 = scmp.eq.s32.totalorder %s339, 0
      %s342 = sadd.s32 %s341, 1
      %s343 = scalar_select %p340, %s341, %s342
      %p346 = pneg %p340
      %p347 = scmp.eq.s32.totalorder %s27, 1
      %p348 = por %p346, %p347
      %p349 = scmp.ne.s32.totalorder %s341, %s344
      %p350 = scmp.eq.s32.totalorder %s27, 0
      %p351 = por %p349, %p350
      %p352 = scmp.ne.s32.totalorder %s341, %s344
      %p353 = scmp.eq.s32.totalorder %s32, 1
      %p354 = por %p352, %p353
      %p355 = scmp.ne.s32.totalorder %s344, %s345
      %p356 = scmp.eq.s32.totalorder %s32, 0
      %p357 = por %p355, %p356
      %p358 = scmp.ne.s32.totalorder %s344, %s345
      %p359 = scmp.eq.s32.totalorder %s33, 1
      %p360 = por %p358, %p359
      %p362 = scmp.ne.s32.totalorder %s345, %s361
      %p363 = scmp.eq.s32.totalorder %s33, 0
      %p364 = por %p362, %p363
      %p365 = scmp.le.s32.totalorder 1, %s27
      %p366 = scmp.lt.s32.totalorder %s27, 3
      %p367 = pnand %p365, %p366
      %p368 = pneg %p367
      // Predicated region
      $region9: #{tpu_custom_call.1} parent=5 // pred_check
        _
      $region10: #{tpu_custom_call.1} parent=5 // pred_check_branch
        %370 = sbr.rel (%p367) target = $region12
      $region11: #{tpu_custom_call.1} parent=5 // pred_region
        %s371 = ssub.s32 %s27, 1
        // Predicated region
        $region13: #{tpu_custom_call.1} parent=11 // pred_check
          %p372 = pneg %p100
        $region14: #{tpu_custom_call.1} parent=11 // pred_check_branch
          %374 = sbr.rel (%p372) target = $region16
        $region15: #{tpu_custom_call.1} parent=11 // pred_region
          _
        $region16: #{tpu_custom_call.1} parent=11 // pred_fallthru
          _
        // Predicated region
        $region17: #{tpu_custom_call.1} parent=11 // pred_check
          %p375 = pneg %p121
        $region18: #{tpu_custom_call.1} parent=11 // pred_check_branch
          %377 = sbr.rel (%p375) target = $region20
        $region19: #{tpu_custom_call.1} parent=11 // pred_region
          _
        $region20: #{tpu_custom_call.1} parent=11 // pred_fallthru
          _
        // Predicated region
        $region21: #{tpu_custom_call.1} parent=11 // pred_check
          %p378 = pneg %p142
        $region22: #{tpu_custom_call.1} parent=11 // pred_check_branch
          %380 = sbr.rel (%p378) target = $region24
        $region23: #{tpu_custom_call.1} parent=11 // pred_region
          _
        $region24: #{tpu_custom_call.1} parent=11 // pred_fallthru
          _
        // Predicated region
        $region25: #{tpu_custom_call.1} parent=11 // pred_check
          %p381 = pneg %p163
        $region26: #{tpu_custom_call.1} parent=11 // pred_check_branch
          %383 = sbr.rel (%p381) target = $region28
        $region27: #{tpu_custom_call.1} parent=11 // pred_region
          _
        $region28: #{tpu_custom_call.1} parent=11 // pred_fallthru
          _
        // Predicated region
        $region29: #{tpu_custom_call.1} parent=11 // pred_check
          %p384 = pneg %p184
        $region30: #{tpu_custom_call.1} parent=11 // pred_check_branch
          %386 = sbr.rel (%p384) target = $region32
        $region31: #{tpu_custom_call.1} parent=11 // pred_region
          %s388 = ssub.s32 256, 256
          %389 = vsyncadd [#allocation8], %s388
          %s390 = sshll.u32 [#allocation7], 4
          %s391 = int_to_ptr.vmem [resolvable:$true] %s390
          %396 = dma.hbm_to_vmem [thread:$0]  %s6, 256, %s391, [#allocation8], 64, 64, 4
        $region32: #{tpu_custom_call.1} parent=11 // pred_fallthru
          _
        // Predicated region
        $region33: #{tpu_custom_call.1} parent=11 // pred_check
          %p397 = pneg %p205
        $region34: #{tpu_custom_call.1} parent=11 // pred_check_branch
          %399 = sbr.rel (%p397) target = $region36
        $region35: #{tpu_custom_call.1} parent=11 // pred_region
          _
        $region36: #{tpu_custom_call.1} parent=11 // pred_fallthru
          _
        // Predicated region
        $region37: #{tpu_custom_call.1} parent=11 // pred_check
          %p400 = pneg %p226
        $region38: #{tpu_custom_call.1} parent=11 // pred_check_branch
          %402 = sbr.rel (%p400) target = $region40
        $region39: #{tpu_custom_call.1} parent=11 // pred_region
          _
        $region40: #{tpu_custom_call.1} parent=11 // pred_fallthru
          _
        // Predicated region
        $region41: #{tpu_custom_call.1} parent=11 // pred_check
          %p403 = pneg %p247
        $region42: #{tpu_custom_call.1} parent=11 // pred_check_branch
          %405 = sbr.rel (%p403) target = $region44
        $region43: #{tpu_custom_call.1} parent=11 // pred_region
          _
        $region44: #{tpu_custom_call.1} parent=11 // pred_fallthru
          _
        // Predicated region
        $region45: #{tpu_custom_call.1} parent=11 // pred_check
          %p406 = pneg %p268
        $region46: #{tpu_custom_call.1} parent=11 // pred_check_branch
          %408 = sbr.rel (%p406) target = $region48
        $region47: #{tpu_custom_call.1} parent=11 // pred_region
          _
        $region48: #{tpu_custom_call.1} parent=11 // pred_fallthru
          _
        // Predicated region
        $region49: #{tpu_custom_call.1} parent=11 // pred_check
          %p409 = pneg %p289
        $region50: #{tpu_custom_call.1} parent=11 // pred_check_branch
          %411 = sbr.rel (%p409) target = $region52
        $region51: #{tpu_custom_call.1} parent=11 // pred_region
          _
        $region52: #{tpu_custom_call.1} parent=11 // pred_fallthru
          _
        // Predicated region
        $region53: #{tpu_custom_call.1} parent=11 // pred_check
          %p412 = pneg %p310
        $region54: #{tpu_custom_call.1} parent=11 // pred_check_branch
          %414 = sbr.rel (%p412) target = $region56
        $region55: #{tpu_custom_call.1} parent=11 // pred_region
          _
        $region56: #{tpu_custom_call.1} parent=11 // pred_fallthru
          _
        // Predicated region
        $region57: #{tpu_custom_call.1} parent=11 // pred_check
          %p415 = pneg %p331
        $region58: #{tpu_custom_call.1} parent=11 // pred_check_branch
          %417 = sbr.rel (%p415) target = $region60
        $region59: #{tpu_custom_call.1} parent=11 // pred_region
          _
        $region60: #{tpu_custom_call.1} parent=11 // pred_fallthru
          _
      $region12: #{tpu_custom_call.1} parent=5 // pred_fallthru
        _
      %p418 = scmp.lt.s32.totalorder %s27, 2
      // Predicated region
      $region61: #{tpu_custom_call.1} parent=5 // pred_check
        %p419 = pneg %p418
      $region62: #{tpu_custom_call.1} parent=5 // pred_check_branch
        %421 = sbr.rel (%p419) target = $region64
      $region63: #{tpu_custom_call.1} parent=5 // pred_region
        // Predicated region
        $region65: #{tpu_custom_call.1} parent=63 // pred_check
          %p422 = pneg %p47
        $region66: #{tpu_custom_call.1} parent=63 // pred_check_branch
          %424 = sbr.rel (%p422) target = $region68
        $region67: #{tpu_custom_call.1} parent=63 // pred_region
          %p425 = scmp.lt.s32.totalorder %s27, 1
          %s426 = scalar_select %p425, %s27, 1
          %s427 = smul.addr %s426, 8
          %s428 = scalar_lea.vmem %s0, %s427
        $region68: #{tpu_custom_call.1} parent=63 // pred_fallthru
          _
        // Predicated region
        $region69: #{tpu_custom_call.1} parent=63 // pred_check
          %p429 = pneg %p73
        $region70: #{tpu_custom_call.1} parent=63 // pred_check_branch
          %431 = sbr.rel (%p429) target = $region72
        $region71: #{tpu_custom_call.1} parent=63 // pred_region
          %s432 = sand.u32 %s63, 1
          %s433 = scalar_lea.sflag [#allocation5], %s432
          %s434 = sand.u32 %s63, 1
          %s435 = scalar_lea.vmem [#allocation4], %s434
          %s437 = ssub.s32 16, 16
          %438 = vsyncadd %s433, %s437
          %s439 = smul.addr %s27, 16
          %s440 = scalar_lea.hbm %s1, %s439
          %s442 = sshll.u32 %s435, 4
          %s443 = int_to_ptr.vmem [resolvable:$true] %s442
          %445 = dma.hbm_to_vmem [thread:$0]  %s440, 16, %s443, %s433
        $region72: #{tpu_custom_call.1} parent=63 // pred_fallthru
          _
      $region64: #{tpu_custom_call.1} parent=5 // pred_fallthru
        _
      %p446 = scmp.le.s32.totalorder 1, %s27
      %p447 = scmp.lt.s32.totalorder %s27, 3
      %p448 = pnand %p446, %p447
      %p449 = pneg %p448
      // Predicated region
      $region73: #{tpu_custom_call.1} parent=5 // pred_check
        _
      $region74: #{tpu_custom_call.1} parent=5 // pred_check_branch
        %451 = sbr.rel (%p448) target = $region76
      $region75: #{tpu_custom_call.1} parent=5 // pred_region
        %s452 = ssub.s32 %s27, 1
        %s453 = sand.u32 %s66, 1
        %s454 = scalar_lea.sflag [#allocation5], %s453
        %s455 = sand.u32 %s66, 1
        %s456 = scalar_lea.vmem [#allocation4], %s455
        // Predicated region
        $region77: #{tpu_custom_call.1} parent=75 // pred_check
          %p457 = pneg %p79
        $region78: #{tpu_custom_call.1} parent=75 // pred_check_branch
          %459 = sbr.rel (%p457) target = $region80
        $region79: #{tpu_custom_call.1} parent=75 // pred_region
          %460 = dma.done %s454, 16
        $region80: #{tpu_custom_call.1} parent=75 // pred_fallthru
          _
        // Predicated region
        $region81: #{tpu_custom_call.1} parent=75 // pred_check
          %p461 = pneg %p184
        $region82: #{tpu_custom_call.1} parent=75 // pred_check_branch
          %463 = sbr.rel (%p461) target = $region84
        $region83: #{tpu_custom_call.1} parent=75 // pred_region
          %464 = dma.done [#allocation8], 256
        $region84: #{tpu_custom_call.1} parent=75 // pred_fallthru
          _
        %p465 = scmp.lt.s32.totalorder %s32, 1
        %s466 = scalar_select %p465, %s32, 1
        %s467 = smul.addr %s466, 8
        %s468 = scalar_lea.vmem %s0, %s467
        %p469 = pneg %p53
        %p470 = pneg %p50
        %s471 = sand.u32 %s66, 1
        %s472 = scalar_lea.sflag [#allocation5], %s471
        %s473 = sand.u32 %s66, 1
        %s474 = scalar_lea.vmem [#allocation4], %s473
        %p475 = pneg %p79
        %p476 = pneg %p76
        %p477 = pneg %p100
        %p478 = pneg %p97
        %p479 = pneg %p121
        %p480 = pneg %p118
        %p481 = pneg %p142
        %p482 = pneg %p139
        %p483 = pneg %p163
        %p484 = pneg %p160
        %p485 = pneg %p184
        %p486 = pneg %p181
        %p487 = pneg %p205
        %p488 = pneg %p202
        %p489 = pneg %p226
        %p490 = pneg %p223
        %p491 = pneg %p247
        %p492 = pneg %p244
        %p493 = pneg %p268
        %p494 = pneg %p265
        %p495 = pneg %p289
        %p496 = pneg %p286
        %p497 = pneg %p310
        %p498 = pneg %p307
        %p499 = pneg %p331
        %p500 = pneg %p328
        %p501 = pneg %p357
        %p502 = pneg %p354
        %s503 = sand.u32 %s344, 1
        %s504 = scalar_lea.sflag [#allocation6], %s503
        %s505 = sand.u32 %s344, 1
        %s506 = smul.addr %s505, 8
        %s507 = scalar_lea.vmem [#allocation9], %s506
        %p508 = scmp.lt.s32.totalorder %s32, 1
        %s509 = scalar_select %p508, %s32, 1
        %s510 = smul.addr %s509, 8
        %s511 = scalar_lea.vmem %s0, %s510
        %v513 = vld [vmem:[%s511] sm:$0xff]
        %vm514 = vcmask 261120
        %v515 = vsel %vm514, %v513, 0.0
        %516 = vadd.xlane.f32.xlu0 %v515
        %v517 = vpop.xlane.xlu0 %516
        %v518 = vrcp.pop 32.0
        %v519 = vmul.f32 %v517, %v518
        %v520 = vsub.f32 %v513, %v519
        %v521 = vmul.f32 %v520, %v520
        %v522 = vsel %vm514, %v521, 0.0
        %523 = vadd.xlane.f32.xlu0 %v522
        %v524 = vpop.xlane.xlu0 %523
        %v525 = vmul.f32 %v524, 0.032258064
        %v526 = vld [vmem:[%s10] sm:$0x1]
        %v527 = vrsqrt.pop %v525
        %v528 = vmul.f32 %v525, %v527
        %vm529 = vcmp.eq.f32.partialorder %v525, inf
        %v530 = vsel %vm529, %v525, %v528
        %vm531 = vcmp.eq.f32.partialorder %v525, 0.0
        %v532 = vand.u32 %v525, 2147483648
        %v533 = vsel %vm531, %v532, %v530
        %v534 = vadd.f32 %v533, 1e-06
        %v535 = vrcp.pop %v534
        %v536 = vmul.f32 %v520, %v535
        %v538 = vlaneseq
        %v539 = vshrl.u32 %v538, 7
        %v540 = vsub.s32 0, %v539
        %v541 = vrot.slane %v526, %v540
        %v543 = vmul.f32 %v541, %v536
        %v544 = vld [vmem:[%s11] sm:$0x1]
        %v546 = vlaneseq
        %v547 = vshrl.u32 %v546, 7
        %v548 = vsub.s32 0, %v547
        %v549 = vrot.slane %v544, %v548
        %v551 = vadd.f32 %v543, %v549
        %v552 = vpack.c.bf16 %v551, %v551
        %v553 = vld [vmem:[%s2] sm:$0xf]
        %v554 = vld [vmem:[%s2 + $0x4] sm:$0xf]
        %v555 = vld [vmem:[%s2 + $0x8] sm:$0xf]
        %v556 = vld [vmem:[%s2 + $0xc] sm:$0xf]
        %v557 = vld [vmem:[%s3] sm:$0x1]
        %v559 = vlaneseq
        %v560 = vshrl.u32 %v559, 7
        %v561 = vsub.s32 0, %v560
        %v562 = vrot.slane %v557, %v561
        %v568 = vunpack.c.l.b16 %v553
        %v569 = vunpack.c.l.b16 %v554
        %v570 = vunpack.c.l.b16 %v555
        %v571 = vunpack.c.l.b16 %v556
        %v572 = vpack.c.b16 %v569, %v568
        %v573 = vpack.c.b16 %v571, %v570
        %v577 = vsel %vm514, %v552, 0
        %579 = vmatprep.subr.bf16.mxu0 0
        %580 = vmatpush1.bf16.msra.mxu0 0
        %581 = vmatprep.subr.bf16.mxu0 0
        %582 = vmatpush1.bf16.msra.mxu0 0
        %583 = vmatprep.subr.bf16.mxu0 0
        %584 = vmatpush1.bf16.msra.mxu0 0
        %585 = vmatprep.subr.bf16.mxu0 0
        %586 = vmatpush1.bf16.msra.mxu0 0
        %587 = vmatprep.subr.bf16.mxu0 0
        %588 = vmatpush1.bf16.msra.mxu0 0
        %589 = vmatprep.subr.bf16.mxu0 0
        %590 = vmatpush1.bf16.msra.mxu0 0
        %591 = vmatprep.subr.bf16.mxu0 0
        %592 = vmatpush1.bf16.msra.mxu0 %v573
        %593 = vmatprep.subr.bf16.mxu0 0
        %594 = vmatpush1.bf16.msra.mxu0 %v572
        %595 = vmatprep.subr.bf16.mxu0 0
        %596 = vmatpush2.bf16.msra.mxu0 0
        %597 = vmatprep.subr.bf16.mxu0 0
        %598 = vmatpush2.bf16.msra.mxu0 0
        %599 = vmatprep.subr.bf16.mxu0 0
        %600 = vmatpush2.bf16.msra.mxu0 0
        %601 = vmatprep.subr.bf16.mxu0 0
        %602 = vmatpush2.bf16.msra.mxu0 0
        %603 = vmatprep.subr.bf16.mxu0 0
        %604 = vmatpush2.bf16.msra.mxu0 0
        %605 = vmatprep.subr.bf16.mxu0 0
        %606 = vmatpush2.bf16.msra.mxu0 0
        %607 = vmatprep.subr.bf16.mxu0 0
        %608 = vmatpush2.bf16.msra.mxu0 0
        %609 = vmatprep.subr.bf16.mxu0 0
        %610 = vmatpush2.bf16.msra.mxu0 0
        %611 = vmatprep.mubr.bf16.mxu0 0
        %612 = vmatmul.mubr.bf16.gmra.mxu0 %v577
        %v613 = vpop.f32.mrf.mxu0
        %v614 = vadd.f32 %v562, %v613
        %v615 = vpop.f32.mrf.mxu0
        %v616 = vpop.f32.mrf.mxu0
        %v617 = vpop.f32.mrf.mxu0
        %618 = vdwg.mxu0
        %v619 = vpack.c.bf16 %v614, %v614
        %vm620 = vcmask 781312
        %621 = vst.msk [vmem:[#allocation2] sm:$0xf] %vm620, %v619
        %v622 = vld [vmem:[%s456] sm:$0x1]
        %vm623 = vcmp.eq.f32.partialorder %v622, 0.0
        %v624 = vsel %vm623, -1e+09, 0.0
        %v625 = vld [vmem:[#allocation2] sm:$0xf]
        %v627 = vunpack.c.l.b16 %v625
        %v628 = vpack.c.b16 %v627, %v627
        %629 = vrot.lane.b32.xlu0 %v628, 96
        %v630 = vpop.permute.xlu0 %629
        %vm631 = vcmask 64512
        %v633 = vsel %vm631, %v625, 0
        %v636 = vsel %vm631, %v630, 0
        %638 = vmatprep.subr.bf16.mxu0 0
        %639 = vmatpush1.bf16.xpose.msra.mxu0 0
        %640 = vmatprep.subr.bf16.mxu0 0
        %641 = vmatpush1.bf16.xpose.msra.mxu0 0
        %642 = vmatprep.subr.bf16.mxu0 0
        %643 = vmatpush1.bf16.xpose.msra.mxu0 0
        %644 = vmatprep.subr.bf16.mxu0 0
        %645 = vmatpush1.bf16.xpose.msra.mxu0 0
        %646 = vmatprep.subr.bf16.mxu0 0
        %647 = vmatpush1.bf16.xpose.msra.mxu0 0
        %648 = vmatprep.subr.bf16.mxu0 0
        %649 = vmatpush1.bf16.xpose.msra.mxu0 0
        %650 = vmatprep.subr.bf16.mxu0 0
        %651 = vmatpush1.bf16.xpose.msra.mxu0 0
        %652 = vmatprep.subr.bf16.mxu0 0
        %653 = vmatpush1.bf16.xpose.msra.mxu0 %v636
        %654 = vmatprep.subr.bf16.mxu0 0
        %655 = vmatpush2.bf16.xpose.msra.mxu0 0
        %656 = vmatprep.subr.bf16.mxu0 0
        %657 = vmatpush2.bf16.xpose.msra.mxu0 0
        %658 = vmatprep.subr.bf16.mxu0 0
        %659 = vmatpush2.bf16.xpose.msra.mxu0 0
        %660 = vmatprep.subr.bf16.mxu0 0
        %661 = vmatpush2.bf16.xpose.msra.mxu0 0
        %662 = vmatprep.subr.bf16.mxu0 0
        %663 = vmatpush2.bf16.xpose.msra.mxu0 0
        %664 = vmatprep.subr.bf16.mxu0 0
        %665 = vmatpush2.bf16.xpose.msra.mxu0 0
        %666 = vmatprep.subr.bf16.mxu0 0
        %667 = vmatpush2.bf16.xpose.msra.mxu0 0
        %668 = vmatprep.subr.bf16.mxu0 0
        %669 = vmatpush2.bf16.xpose.msra.mxu0 0
        %670 = vmatprep.mubr.bf16.mxu0 0
        %671 = vmatmul.mubr.bf16.gmra.mxu0 %v633
        %v672 = vpop.f32.mrf.mxu0
        %v673 = vadd.f32 0.0, %v672
        %v674 = vpop.f32.mrf.mxu0
        %v675 = vpop.f32.mrf.mxu0
        %v676 = vpop.f32.mrf.mxu0
        %677 = vdwg.mxu0
        %v678 = vmul.f32 %v673, 0.35355338
        %v680 = vlaneseq
        %v681 = vshrl.u32 %v680, 7
        %v682 = vsub.s32 0, %v681
        %v683 = vrot.slane %v624, %v682
        %v685 = vadd.f32 %v678, %v683
        %v686 = vsel %vm631, %v685, -inf
        %687 = vmax.xlane.f32.xlu0 %v686
        %v688 = vpop.xlane.xlu0 %687
        %v689 = vsub.f32 %v685, %v688
        %v690 = vmul.f32 %v689, 1.442695
        %v691 = vpow.pop %v690
        %v692 = vsel %vm631, %v691, 0.0
        %693 = vadd.xlane.f32.xlu0 %v692
        %v694 = vpop.xlane.xlu0 %693
        %v695 = vrcp.pop %v694
        %v696 = vmul.f32 %v691, %v695
        %v697 = vpack.c.bf16 %v696, %v696
        %698 = vrot.lane.b32.xlu0 %v628, 64
        %v699 = vpop.permute.xlu0 %698
        %v701 = vsel %vm631, %v697, 0
        %vm703 = vcmask 1043456
        %v705 = vsel %vm703, %v699, 0
        %707 = vmatprep.subr.bf16.mxu0 0
        %708 = vmatpush1.bf16.msra.mxu0 0
        %709 = vmatprep.subr.bf16.mxu0 0
        %710 = vmatpush1.bf16.msra.mxu0 0
        %711 = vmatprep.subr.bf16.mxu0 0
        %712 = vmatpush1.bf16.msra.mxu0 0
        %713 = vmatprep.subr.bf16.mxu0 0
        %714 = vmatpush1.bf16.msra.mxu0 0
        %715 = vmatprep.subr.bf16.mxu0 0
        %716 = vmatpush1.bf16.msra.mxu0 0
        %717 = vmatprep.subr.bf16.mxu0 0
        %718 = vmatpush1.bf16.msra.mxu0 0
        %719 = vmatprep.subr.bf16.mxu0 0
        %720 = vmatpush1.bf16.msra.mxu0 0
        %721 = vmatprep.subr.bf16.mxu0 0
        %722 = vmatpush1.bf16.msra.mxu0 %v705
        %723 = vmatprep.subr.bf16.mxu0 0
        %724 = vmatpush2.bf16.msra.mxu0 0
        %725 = vmatprep.subr.bf16.mxu0 0
        %726 = vmatpush2.bf16.msra.mxu0 0
        %727 = vmatprep.subr.bf16.mxu0 0
        %728 = vmatpush2.bf16.msra.mxu0 0
        %729 = vmatprep.subr.bf16.mxu0 0
        %730 = vmatpush2.bf16.msra.mxu0 0
        %731 = vmatprep.subr.bf16.mxu0 0
        %732 = vmatpush2.bf16.msra.mxu0 0
        %733 = vmatprep.subr.bf16.mxu0 0
        %734 = vmatpush2.bf16.msra.mxu0 0
        %735 = vmatprep.subr.bf16.mxu0 0
        %736 = vmatpush2.bf16.msra.mxu0 0
        %737 = vmatprep.subr.bf16.mxu0 0
        %738 = vmatpush2.bf16.msra.mxu0 0
        %739 = vmatprep.mubr.bf16.mxu0 0
        %740 = vmatmul.mubr.bf16.gmra.mxu0 %v701
        %v741 = vpop.f32.mrf.mxu0
        %v742 = vadd.f32 0.0, %v741
        %v743 = vpop.f32.mrf.mxu0
        %v744 = vpop.f32.mrf.mxu0
        %v745 = vpop.f32.mrf.mxu0
        %746 = vdwg.mxu0
        %v747 = vpack.c.bf16 %v742, %v742
        %vm748 = vcmask 60416
        %749 = vst.msk [vmem:[#allocation3] sm:$0xf] %vm748, %v747
        %v750 = vld [vmem:[#allocation2] sm:$0xf]
        %v752 = vunpack.c.l.b16 %v750
        %v753 = vpack.c.b16 %v752, %v752
        %754 = vrot.lane.b32.xlu0 %v753, 120
        %v755 = vpop.permute.xlu0 %754
        %756 = vrot.lane.b32.xlu0 %v753, 88
        %v757 = vpop.permute.xlu0 %756
        %v759 = vsel %vm631, %v755, 0
        %v762 = vsel %vm631, %v757, 0
        %764 = vmatprep.subr.bf16.mxu0 0
        %765 = vmatpush1.bf16.xpose.msra.mxu0 0
        %766 = vmatprep.subr.bf16.mxu0 0
        %767 = vmatpush1.bf16.xpose.msra.mxu0 0
        %768 = vmatprep.subr.bf16.mxu0 0
        %769 = vmatpush1.bf16.xpose.msra.mxu0 0
        %770 = vmatprep.subr.bf16.mxu0 0
        %771 = vmatpush1.bf16.xpose.msra.mxu0 0
        %772 = vmatprep.subr.bf16.mxu0 0
        %773 = vmatpush1.bf16.xpose.msra.mxu0 0
        %774 = vmatprep.subr.bf16.mxu0 0
        %775 = vmatpush1.bf16.xpose.msra.mxu0 0
        %776 = vmatprep.subr.bf16.mxu0 0
        %777 = vmatpush1.bf16.xpose.msra.mxu0 0
        %778 = vmatprep.subr.bf16.mxu0 0
        %779 = vmatpush1.bf16.xpose.msra.mxu0 %v762
        %780 = vmatprep.subr.bf16.mxu0 0
        %781 = vmatpush2.bf16.xpose.msra.mxu0 0
        %782 = vmatprep.subr.bf16.mxu0 0
        %783 = vmatpush2.bf16.xpose.msra.mxu0 0
        %784 = vmatprep.subr.bf16.mxu0 0
        %785 = vmatpush2.bf16.xpose.msra.mxu0 0
        %786 = vmatprep.subr.bf16.mxu0 0
        %787 = vmatpush2.bf16.xpose.msra.mxu0 0
        %788 = vmatprep.subr.bf16.mxu0 0
        %789 = vmatpush2.bf16.xpose.msra.mxu0 0
        %790 = vmatprep.subr.bf16.mxu0 0
        %791 = vmatpush2.bf16.xpose.msra.mxu0 0
        %792 = vmatprep.subr.bf16.mxu0 0
        %793 = vmatpush2.bf16.xpose.msra.mxu0 0
        %794 = vmatprep.subr.bf16.mxu0 0
        %795 = vmatpush2.bf16.xpose.msra.mxu0 0
        %796 = vmatprep.mubr.bf16.mxu0 0
        %797 = vmatmul.mubr.bf16.gmra.mxu0 %v759
        %v798 = vpop.f32.mrf.mxu0
        %v799 = vadd.f32 0.0, %v798
        %v800 = vpop.f32.mrf.mxu0
        %v801 = vpop.f32.mrf.mxu0
        %v802 = vpop.f32.mrf.mxu0
        %803 = vdwg.mxu0
        %v804 = vmul.f32 %v799, 0.35355338
        %v805 = vadd.f32 %v804, %v683
        %v806 = vsel %vm631, %v805, -inf
        %807 = vmax.xlane.f32.xlu0 %v806
        %v808 = vpop.xlane.xlu0 %807
        %v809 = vsub.f32 %v805, %v808
        %v810 = vmul.f32 %v809, 1.442695
        %v811 = vpow.pop %v810
        %v812 = vsel %vm631, %v811, 0.0
        %813 = vadd.xlane.f32.xlu0 %v812
        %v814 = vpop.xlane.xlu0 %813
        %v815 = vrcp.pop %v814
        %v816 = vmul.f32 %v811, %v815
        %v817 = vpack.c.bf16 %v816, %v816
        %818 = vrot.lane.b32.xlu0 %v753, 56
        %v819 = vpop.permute.xlu0 %818
        %v821 = vsel %vm631, %v817, 0
        %v824 = vsel %vm703, %v819, 0
        %826 = vmatprep.subr.bf16.mxu0 0
        %827 = vmatpush1.bf16.msra.mxu0 0
        %828 = vmatprep.subr.bf16.mxu0 0
        %829 = vmatpush1.bf16.msra.mxu0 0
        %830 = vmatprep.subr.bf16.mxu0 0
        %831 = vmatpush1.bf16.msra.mxu0 0
        %832 = vmatprep.subr.bf16.mxu0 0
        %833 = vmatpush1.bf16.msra.mxu0 0
        %834 = vmatprep.subr.bf16.mxu0 0
        %835 = vmatpush1.bf16.msra.mxu0 0
        %836 = vmatprep.subr.bf16.mxu0 0
        %837 = vmatpush1.bf16.msra.mxu0 0
        %838 = vmatprep.subr.bf16.mxu0 0
        %839 = vmatpush1.bf16.msra.mxu0 0
        %840 = vmatprep.subr.bf16.mxu0 0
        %841 = vmatpush1.bf16.msra.mxu0 %v824
        %842 = vmatprep.subr.bf16.mxu0 0
        %843 = vmatpush2.bf16.msra.mxu0 0
        %844 = vmatprep.subr.bf16.mxu0 0
        %845 = vmatpush2.bf16.msra.mxu0 0
        %846 = vmatprep.subr.bf16.mxu0 0
        %847 = vmatpush2.bf16.msra.mxu0 0
        %848 = vmatprep.subr.bf16.mxu0 0
        %849 = vmatpush2.bf16.msra.mxu0 0
        %850 = vmatprep.subr.bf16.mxu0 0
        %851 = vmatpush2.bf16.msra.mxu0 0
        %852 = vmatprep.subr.bf16.mxu0 0
        %853 = vmatpush2.bf16.msra.mxu0 0
        %854 = vmatprep.subr.bf16.mxu0 0
        %855 = vmatpush2.bf16.msra.mxu0 0
        %856 = vmatprep.subr.bf16.mxu0 0
        %857 = vmatpush2.bf16.msra.mxu0 0
        %858 = vmatprep.mubr.bf16.mxu0 0
        %859 = vmatmul.mubr.bf16.gmra.mxu0 %v821
        %v860 = vpop.f32.mrf.mxu0
        %v861 = vadd.f32 0.0, %v860
        %v862 = vpop.f32.mrf.mxu0
        %v863 = vpop.f32.mrf.mxu0
        %v864 = vpop.f32.mrf.mxu0
        %865 = vdwg.mxu0
        %v866 = vpack.c.bf16 %v861, %v861
        %v868 = vunpack.c.l.b16 %v866
        %v869 = vpack.c.b16 %v868, %v868
        %870 = vrot.lane.b32.xlu0 %v869, 8
        %v871 = vpop.permute.xlu0 %870
        %vm873 = vcmask 126016
        %874 = vst.msk [vmem:[#allocation3] sm:$0xf] %vm873, %v871
        %v875 = vld [vmem:[#allocation2] sm:$0xf]
        %v877 = vunpack.c.l.b16 %v875
        %v878 = vpack.c.b16 %v877, %v877
        %879 = vrot.lane.b32.xlu0 %v878, 112
        %v880 = vpop.permute.xlu0 %879
        %881 = vrot.lane.b32.xlu0 %v878, 80
        %v882 = vpop.permute.xlu0 %881
        %v884 = vsel %vm631, %v880, 0
        %v887 = vsel %vm631, %v882, 0
        %889 = vmatprep.subr.bf16.mxu0 0
        %890 = vmatpush1.bf16.xpose.msra.mxu0 0
        %891 = vmatprep.subr.bf16.mxu0 0
        %892 = vmatpush1.bf16.xpose.msra.mxu0 0
        %893 = vmatprep.subr.bf16.mxu0 0
        %894 = vmatpush1.bf16.xpose.msra.mxu0 0
        %895 = vmatprep.subr.bf16.mxu0 0
        %896 = vmatpush1.bf16.xpose.msra.mxu0 0
        %897 = vmatprep.subr.bf16.mxu0 0
        %898 = vmatpush1.bf16.xpose.msra.mxu0 0
        %899 = vmatprep.subr.bf16.mxu0 0
        %900 = vmatpush1.bf16.xpose.msra.mxu0 0
        %901 = vmatprep.subr.bf16.mxu0 0
        %902 = vmatpush1.bf16.xpose.msra.mxu0 0
        %903 = vmatprep.subr.bf16.mxu0 0
        %904 = vmatpush1.bf16.xpose.msra.mxu0 %v887
        %905 = vmatprep.subr.bf16.mxu0 0
        %906 = vmatpush2.bf16.xpose.msra.mxu0 0
        %907 = vmatprep.subr.bf16.mxu0 0
        %908 = vmatpush2.bf16.xpose.msra.mxu0 0
        %909 = vmatprep.subr.bf16.mxu0 0
        %910 = vmatpush2.bf16.xpose.msra.mxu0 0
        %911 = vmatprep.subr.bf16.mxu0 0
        %912 = vmatpush2.bf16.xpose.msra.mxu0 0
        %913 = vmatprep.subr.bf16.mxu0 0
        %914 = vmatpush2.bf16.xpose.msra.mxu0 0
        %915 = vmatprep.subr.bf16.mxu0 0
        %916 = vmatpush2.bf16.xpose.msra.mxu0 0
        %917 = vmatprep.subr.bf16.mxu0 0
        %918 = vmatpush2.bf16.xpose.msra.mxu0 0
        %919 = vmatprep.subr.bf16.mxu0 0
        %920 = vmatpush2.bf16.xpose.msra.mxu0 0
        %921 = vmatprep.mubr.bf16.mxu0 0
        %922 = vmatmul.mubr.bf16.gmra.mxu0 %v884
        %v923 = vpop.f32.mrf.mxu0
        %v924 = vadd.f32 0.0, %v923
        %v925 = vpop.f32.mrf.mxu0
        %v926 = vpop.f32.mrf.mxu0
        %v927 = vpop.f32.mrf.mxu0
        %928 = vdwg.mxu0
        %v929 = vmul.f32 %v924, 0.35355338
        %v930 = vadd.f32 %v929, %v683
        %v931 = vsel %vm631, %v930, -inf
        %932 = vmax.xlane.f32.xlu0 %v931
        %v933 = vpop.xlane.xlu0 %932
        %v934 = vsub.f32 %v930, %v933
        %v935 = vmul.f32 %v934, 1.442695
        %v936 = vpow.pop %v935
        %v937 = vsel %vm631, %v936, 0.0
        %938 = vadd.xlane.f32.xlu0 %v937
        %v939 = vpop.xlane.xlu0 %938
        %v940 = vrcp.pop %v939
        %v941 = vmul.f32 %v936, %v940
        %v942 = vpack.c.bf16 %v941, %v941
        %943 = vrot.lane.b32.xlu0 %v878, 48
        %v944 = vpop.permute.xlu0 %943
        %v946 = vsel %vm631, %v942, 0
        %v949 = vsel %vm703, %v944, 0
        %951 = vmatprep.subr.bf16.mxu0 0
        %952 = vmatpush1.bf16.msra.mxu0 0
        %953 = vmatprep.subr.bf16.mxu0 0
        %954 = vmatpush1.bf16.msra.mxu0 0
        %955 = vmatprep.subr.bf16.mxu0 0
        %956 = vmatpush1.bf16.msra.mxu0 0
        %957 = vmatprep.subr.bf16.mxu0 0
        %958 = vmatpush1.bf16.msra.mxu0 0
        %959 = vmatprep.subr.bf16.mxu0 0
        %960 = vmatpush1.bf16.msra.mxu0 0
        %961 = vmatprep.subr.bf16.mxu0 0
        %962 = vmatpush1.bf16.msra.mxu0 0
        %963 = vmatprep.subr.bf16.mxu0 0
        %964 = vmatpush1.bf16.msra.mxu0 0
        %965 = vmatprep.subr.bf16.mxu0 0
        %966 = vmatpush1.bf16.msra.mxu0 %v949
        %967 = vmatprep.subr.bf16.mxu0 0
        %968 = vmatpush2.bf16.msra.mxu0 0
        %969 = vmatprep.subr.bf16.mxu0 0
        %970 = vmatpush2.bf16.msra.mxu0 0
        %971 = vmatprep.subr.bf16.mxu0 0
        %972 = vmatpush2.bf16.msra.mxu0 0
        %973 = vmatprep.subr.bf16.mxu0 0
        %974 = vmatpush2.bf16.msra.mxu0 0
        %975 = vmatprep.subr.bf16.mxu0 0
        %976 = vmatpush2.bf16.msra.mxu0 0
        %977 = vmatprep.subr.bf16.mxu0 0
        %978 = vmatpush2.bf16.msra.mxu0 0
        %979 = vmatprep.subr.bf16.mxu0 0
        %980 = vmatpush2.bf16.msra.mxu0 0
        %981 = vmatprep.subr.bf16.mxu0 0
        %982 = vmatpush2.bf16.msra.mxu0 0
        %983 = vmatprep.mubr.bf16.mxu0 0
        %984 = vmatmul.mubr.bf16.gmra.mxu0 %v946
        %v985 = vpop.f32.mrf.mxu0
        %v986 = vadd.f32 0.0, %v985
        %v987 = vpop.f32.mrf.mxu0
        %v988 = vpop.f32.mrf.mxu0
        %v989 = vpop.f32.mrf.mxu0
        %990 = vdwg.mxu0
        %v991 = vpack.c.bf16 %v986, %v986
        %v993 = vunpack.c.l.b16 %v991
        %v994 = vpack.c.b16 %v993, %v993
        %995 = vrot.lane.b32.xlu0 %v994, 16
        %v996 = vpop.permute.xlu0 %995
        %vm998 = vcmask 191616
        %999 = vst.msk [vmem:[#allocation3] sm:$0xf] %vm998, %v996
        %v1000 = vld [vmem:[#allocation2] sm:$0xf]
        %v1002 = vunpack.c.l.b16 %v1000
        %v1003 = vpack.c.b16 %v1002, %v1002
        %1004 = vrot.lane.b32.xlu0 %v1003, 104
        %v1005 = vpop.permute.xlu0 %1004
        %1006 = vrot.lane.b32.xlu0 %v1003, 72
        %v1007 = vpop.permute.xlu0 %1006
        %v1009 = vsel %vm631, %v1005, 0
        %v1012 = vsel %vm631, %v1007, 0
        %1014 = vmatprep.subr.bf16.mxu0 0
        %1015 = vmatpush1.bf16.xpose.msra.mxu0 0
        %1016 = vmatprep.subr.bf16.mxu0 0
        %1017 = vmatpush1.bf16.xpose.msra.mxu0 0
        %1018 = vmatprep.subr.bf16.mxu0 0
        %1019 = vmatpush1.bf16.xpose.msra.mxu0 0
        %1020 = vmatprep.subr.bf16.mxu0 0
        %1021 = vmatpush1.bf16.xpose.msra.mxu0 0
        %1022 = vmatprep.subr.bf16.mxu0 0
        %1023 = vmatpush1.bf16.xpose.msra.mxu0 0
        %1024 = vmatprep.subr.bf16.mxu0 0
        %1025 = vmatpush1.bf16.xpose.msra.mxu0 0
        %1026 = vmatprep.subr.bf16.mxu0 0
        %1027 = vmatpush1.bf16.xpose.msra.mxu0 0
        %1028 = vmatprep.subr.bf16.mxu0 0
        %1029 = vmatpush1.bf16.xpose.msra.mxu0 %v1012
        %1030 = vmatprep.subr.bf16.mxu0 0
        %1031 = vmatpush2.bf16.xpose.msra.mxu0 0
        %1032 = vmatprep.subr.bf16.mxu0 0
        %1033 = vmatpush2.bf16.xpose.msra.mxu0 0
        %1034 = vmatprep.subr.bf16.mxu0 0
        %1035 = vmatpush2.bf16.xpose.msra.mxu0 0
        %1036 = vmatprep.subr.bf16.mxu0 0
        %1037 = vmatpush2.bf16.xpose.msra.mxu0 0
        %1038 = vmatprep.subr.bf16.mxu0 0
        %1039 = vmatpush2.bf16.xpose.msra.mxu0 0
        %1040 = vmatprep.subr.bf16.mxu0 0
        %1041 = vmatpush2.bf16.xpose.msra.mxu0 0
        %1042 = vmatprep.subr.bf16.mxu0 0
        %1043 = vmatpush2.bf16.xpose.msra.mxu0 0
        %1044 = vmatprep.subr.bf16.mxu0 0
        %1045 = vmatpush2.bf16.xpose.msra.mxu0 0
        %1046 = vmatprep.mubr.bf16.mxu0 0
        %1047 = vmatmul.mubr.bf16.gmra.mxu0 %v1009
        %v1048 = vpop.f32.mrf.mxu0
        %v1049 = vadd.f32 0.0, %v1048
        %v1050 = vpop.f32.mrf.mxu0
        %v1051 = vpop.f32.mrf.mxu0
        %v1052 = vpop.f32.mrf.mxu0
        %1053 = vdwg.mxu0
        %v1054 = vmul.f32 %v1049, 0.35355338
        %v1055 = vadd.f32 %v1054, %v683
        %v1056 = vsel %vm631, %v1055, -inf
        %1057 = vmax.xlane.f32.xlu0 %v1056
        %v1058 = vpop.xlane.xlu0 %1057
        %v1059 = vsub.f32 %v1055, %v1058
        %v1060 = vmul.f32 %v1059, 1.442695
        %v1061 = vpow.pop %v1060
        %v1062 = vsel %vm631, %v1061, 0.0
        %1063 = vadd.xlane.f32.xlu0 %v1062
        %v1064 = vpop.xlane.xlu0 %1063
        %v1065 = vrcp.pop %v1064
        %v1066 = vmul.f32 %v1061, %v1065
        %v1067 = vpack.c.bf16 %v1066, %v1066
        %1068 = vrot.lane.b32.xlu0 %v1003, 40
        %v1069 = vpop.permute.xlu0 %1068
        %v1071 = vsel %vm631, %v1067, 0
        %v1074 = vsel %vm703, %v1069, 0
        %1076 = vmatprep.subr.bf16.mxu0 0
        %1077 = vmatpush1.bf16.msra.mxu0 0
        %1078 = vmatprep.subr.bf16.mxu0 0
        %1079 = vmatpush1.bf16.msra.mxu0 0
        %1080 = vmatprep.subr.bf16.mxu0 0
        %1081 = vmatpush1.bf16.msra.mxu0 0
        %1082 = vmatprep.subr.bf16.mxu0 0
        %1083 = vmatpush1.bf16.msra.mxu0 0
        %1084 = vmatprep.subr.bf16.mxu0 0
        %1085 = vmatpush1.bf16.msra.mxu0 0
        %1086 = vmatprep.subr.bf16.mxu0 0
        %1087 = vmatpush1.bf16.msra.mxu0 0
        %1088 = vmatprep.subr.bf16.mxu0 0
        %1089 = vmatpush1.bf16.msra.mxu0 0
        %1090 = vmatprep.subr.bf16.mxu0 0
        %1091 = vmatpush1.bf16.msra.mxu0 %v1074
        %1092 = vmatprep.subr.bf16.mxu0 0
        %1093 = vmatpush2.bf16.msra.mxu0 0
        %1094 = vmatprep.subr.bf16.mxu0 0
        %1095 = vmatpush2.bf16.msra.mxu0 0
        %1096 = vmatprep.subr.bf16.mxu0 0
        %1097 = vmatpush2.bf16.msra.mxu0 0
        %1098 = vmatprep.subr.bf16.mxu0 0
        %1099 = vmatpush2.bf16.msra.mxu0 0
        %1100 = vmatprep.subr.bf16.mxu0 0
        %1101 = vmatpush2.bf16.msra.mxu0 0
        %1102 = vmatprep.subr.bf16.mxu0 0
        %1103 = vmatpush2.bf16.msra.mxu0 0
        %1104 = vmatprep.subr.bf16.mxu0 0
        %1105 = vmatpush2.bf16.msra.mxu0 0
        %1106 = vmatprep.subr.bf16.mxu0 0
        %1107 = vmatpush2.bf16.msra.mxu0 0
        %1108 = vmatprep.mubr.bf16.mxu0 0
        %1109 = vmatmul.mubr.bf16.gmra.mxu0 %v1071
        %v1110 = vpop.f32.mrf.mxu0
        %v1111 = vadd.f32 0.0, %v1110
        %v1112 = vpop.f32.mrf.mxu0
        %v1113 = vpop.f32.mrf.mxu0
        %v1114 = vpop.f32.mrf.mxu0
        %1115 = vdwg.mxu0
        %v1116 = vpack.c.bf16 %v1111, %v1111
        %v1118 = vunpack.c.l.b16 %v1116
        %v1119 = vpack.c.b16 %v1118, %v1118
        %1120 = vrot.lane.b32.xlu0 %v1119, 24
        %v1121 = vpop.permute.xlu0 %1120
        %vm1123 = vcmask 257216
        %1124 = vst.msk [vmem:[#allocation3] sm:$0xf] %vm1123, %v1121
        %v1125 = vld [vmem:[#allocation3] sm:$0xf]
        %v1126 = vld [vmem:[%s4] sm:$0xf]
        %v1127 = vld [vmem:[%s4 + $0x4] sm:$0xf]
        %v1128 = vld [vmem:[%s4 + $0x8] sm:$0xf]
        %v1129 = vld [vmem:[%s4 + $0xc] sm:$0xf]
        %v1134 = vunpack.c.l.b16 %v1126
        %v1135 = vunpack.c.l.b16 %v1127
        %v1136 = vunpack.c.l.b16 %v1128
        %v1137 = vunpack.c.l.b16 %v1129
        %v1138 = vpack.c.b16 %v1135, %v1134
        %v1139 = vpack.c.b16 %v1137, %v1136
        %v1143 = vsel %vm514, %v1125, 0
        %1145 = vmatprep.subr.bf16.mxu0 0
        %1146 = vmatpush1.bf16.msra.mxu0 0
        %1147 = vmatprep.subr.bf16.mxu0 0
        %1148 = vmatpush1.bf16.msra.mxu0 0
        %1149 = vmatprep.subr.bf16.mxu0 0
        %1150 = vmatpush1.bf16.msra.mxu0 0
        %1151 = vmatprep.subr.bf16.mxu0 0
        %1152 = vmatpush1.bf16.msra.mxu0 0
        %1153 = vmatprep.subr.bf16.mxu0 0
        %1154 = vmatpush1.bf16.msra.mxu0 0
        %1155 = vmatprep.subr.bf16.mxu0 0
        %1156 = vmatpush1.bf16.msra.mxu0 0
        %1157 = vmatprep.subr.bf16.mxu0 0
        %1158 = vmatpush1.bf16.msra.mxu0 %v1139
        %1159 = vmatprep.subr.bf16.mxu0 0
        %1160 = vmatpush1.bf16.msra.mxu0 %v1138
        %1161 = vmatprep.subr.bf16.mxu0 0
        %1162 = vmatpush2.bf16.msra.mxu0 0
        %1163 = vmatprep.subr.bf16.mxu0 0
        %1164 = vmatpush2.bf16.msra.mxu0 0
        %1165 = vmatprep.subr.bf16.mxu0 0
        %1166 = vmatpush2.bf16.msra.mxu0 0
        %1167 = vmatprep.subr.bf16.mxu0 0
        %1168 = vmatpush2.bf16.msra.mxu0 0
        %1169 = vmatprep.subr.bf16.mxu0 0
        %1170 = vmatpush2.bf16.msra.mxu0 0
        %1171 = vmatprep.subr.bf16.mxu0 0
        %1172 = vmatpush2.bf16.msra.mxu0 0
        %1173 = vmatprep.subr.bf16.mxu0 0
        %1174 = vmatpush2.bf16.msra.mxu0 0
        %1175 = vmatprep.subr.bf16.mxu0 0
        %1176 = vmatpush2.bf16.msra.mxu0 0
        %1177 = vmatprep.mubr.bf16.mxu0 0
        %1178 = vmatmul.mubr.bf16.gmra.mxu0 %v1143
        %v1179 = vpop.f32.mrf.mxu0
        %v1180 = vadd.f32 0.0, %v1179
        %v1181 = vpop.f32.mrf.mxu0
        %v1182 = vpop.f32.mrf.mxu0
        %v1183 = vpop.f32.mrf.mxu0
        %1184 = vdwg.mxu0
        %v1185 = vadd.f32 %v513, %v1180
        %v1186 = vld [vmem:[%s5] sm:$0x1]
        %v1188 = vlaneseq
        %v1189 = vshrl.u32 %v1188, 7
        %v1190 = vsub.s32 0, %v1189
        %v1191 = vrot.slane %v1186, %v1190
        %v1193 = vadd.f32 %v1185, %v1191
        %v1194 = vsel %vm514, %v1193, 0.0
        %1195 = vadd.xlane.f32.xlu0 %v1194
        %v1196 = vpop.xlane.xlu0 %1195
        %v1197 = vmul.f32 %v1196, %v518
        %v1198 = vsub.f32 %v1193, %v1197
        %v1199 = vmul.f32 %v1198, %v1198
        %v1200 = vsel %vm514, %v1199, 0.0
        %1201 = vadd.xlane.f32.xlu0 %v1200
        %v1202 = vpop.xlane.xlu0 %1201
        %v1203 = vmul.f32 %v1202, 0.032258064
        %v1204 = vld [vmem:[%s12] sm:$0x1]
        %v1205 = vrsqrt.pop %v1203
        %v1206 = vmul.f32 %v1203, %v1205
        %vm1207 = vcmp.eq.f32.partialorder %v1203, inf
        %v1208 = vsel %vm1207, %v1203, %v1206
        %vm1209 = vcmp.eq.f32.partialorder %v1203, 0.0
        %v1210 = vand.u32 %v1203, 2147483648
        %v1211 = vsel %vm1209, %v1210, %v1208
        %v1212 = vadd.f32 %v1211, 1e-06
        %v1213 = vrcp.pop %v1212
        %v1214 = vmul.f32 %v1198, %v1213
        %v1216 = vlaneseq
        %v1217 = vshrl.u32 %v1216, 7
        %v1218 = vsub.s32 0, %v1217
        %v1219 = vrot.slane %v1204, %v1218
        %v1221 = vmul.f32 %v1219, %v1214
        %v1222 = vld [vmem:[%s13] sm:$0x1]
        %v1224 = vlaneseq
        %v1225 = vshrl.u32 %v1224, 7
        %v1226 = vsub.s32 0, %v1225
        %v1227 = vrot.slane %v1222, %v1226
        %v1229 = vadd.f32 %v1221, %v1227
        %v1230 = vpack.c.bf16 %v1229, %v1229
        %v1231 = vld [vmem:[#allocation7] sm:$0xf]
        %v1232 = vld [vmem:[#allocation7 + $0x4] sm:$0xf]
        %v1233 = vld [vmem:[#allocation7 + $0x8] sm:$0xf]
        %v1234 = vld [vmem:[#allocation7 + $0xc] sm:$0xf]
        %v1235 = vld [vmem:[%s7] sm:$0x1]
        %v1237 = vlaneseq
        %v1238 = vshrl.u32 %v1237, 7
        %v1239 = vsub.s32 0, %v1238
        %v1240 = vrot.slane %v1235, %v1239
        %v1246 = vunpack.c.l.b16 %v1231
        %v1247 = vunpack.c.l.b16 %v1232
        %v1248 = vunpack.c.l.b16 %v1233
        %v1249 = vunpack.c.l.b16 %v1234
        %v1250 = vpack.c.b16 %v1247, %v1246
        %v1251 = vpack.c.b16 %v1249, %v1248
        %v1255 = vsel %vm514, %v1230, 0
        %1257 = vmatprep.subr.bf16.mxu0 0
        %1258 = vmatpush1.bf16.msra.mxu0 0
        %1259 = vmatprep.subr.bf16.mxu0 0
        %1260 = vmatpush1.bf16.msra.mxu0 0
        %1261 = vmatprep.subr.bf16.mxu0 0
        %1262 = vmatpush1.bf16.msra.mxu0 0
        %1263 = vmatprep.subr.bf16.mxu0 0
        %1264 = vmatpush1.bf16.msra.mxu0 0
        %1265 = vmatprep.subr.bf16.mxu0 0
        %1266 = vmatpush1.bf16.msra.mxu0 0
        %1267 = vmatprep.subr.bf16.mxu0 0
        %1268 = vmatpush1.bf16.msra.mxu0 0
        %1269 = vmatprep.subr.bf16.mxu0 0
        %1270 = vmatpush1.bf16.msra.mxu0 %v1251
        %1271 = vmatprep.subr.bf16.mxu0 0
        %1272 = vmatpush1.bf16.msra.mxu0 %v1250
        %1273 = vmatprep.subr.bf16.mxu0 0
        %1274 = vmatpush2.bf16.msra.mxu0 0
        %1275 = vmatprep.subr.bf16.mxu0 0
        %1276 = vmatpush2.bf16.msra.mxu0 0
        %1277 = vmatprep.subr.bf16.mxu0 0
        %1278 = vmatpush2.bf16.msra.mxu0 0
        %1279 = vmatprep.subr.bf16.mxu0 0
        %1280 = vmatpush2.bf16.msra.mxu0 0
        %1281 = vmatprep.subr.bf16.mxu0 0
        %1282 = vmatpush2.bf16.msra.mxu0 0
        %1283 = vmatprep.subr.bf16.mxu0 0
        %1284 = vmatpush2.bf16.msra.mxu0 0
        %1285 = vmatprep.subr.bf16.mxu0 0
        %1286 = vmatpush2.bf16.msra.mxu0 0
        %1287 = vmatprep.subr.bf16.mxu0 0
        %1288 = vmatpush2.bf16.msra.mxu0 0
        %1289 = vmatprep.mubr.bf16.mxu0 0
        %1290 = vmatmul.mubr.bf16.gmra.mxu0 %v1255
        %v1291 = vpop.f32.mrf.mxu0
        %v1292 = vadd.f32 %v1240, %v1291
        %v1293 = vpop.f32.mrf.mxu0
        %v1294 = vpop.f32.mrf.mxu0
        %v1295 = vpop.f32.mrf.mxu0
        %1296 = vdwg.mxu0
        %v1297 = vmax.f32 %v1292, 0.0
        %v1298 = vpack.c.bf16 %v1297, %v1297
        %v1299 = vld [vmem:[%s8] sm:$0xf]
        %v1300 = vld [vmem:[%s8 + $0x4] sm:$0xf]
        %v1301 = vld [vmem:[%s8 + $0x8] sm:$0xf]
        %v1302 = vld [vmem:[%s8 + $0xc] sm:$0xf]
        %v1303 = vld [vmem:[%s8 + $0x10] sm:$0xf]
        %v1304 = vld [vmem:[%s8 + $0x14] sm:$0xf]
        %v1305 = vld [vmem:[%s8 + $0x18] sm:$0xf]
        %v1306 = vld [vmem:[%s8 + $0x1c] sm:$0xf]
        %v1307 = vld [vmem:[%s9] sm:$0x1]
        %v1309 = vlaneseq
        %v1310 = vshrl.u32 %v1309, 7
        %v1311 = vsub.s32 0, %v1310
        %v1312 = vrot.slane %v1307, %v1311
        %v1322 = vunpack.c.l.b16 %v1299
        %v1323 = vunpack.c.l.b16 %v1300
        %v1324 = vunpack.c.l.b16 %v1301
        %v1325 = vunpack.c.l.b16 %v1302
        %v1326 = vunpack.c.l.b16 %v1303
        %v1327 = vunpack.c.l.b16 %v1304
        %v1328 = vunpack.c.l.b16 %v1305
        %v1329 = vunpack.c.l.b16 %v1306
        %v1330 = vpack.c.b16 %v1323, %v1322
        %v1331 = vpack.c.b16 %v1325, %v1324
        %v1332 = vpack.c.b16 %v1327, %v1326
        %v1333 = vpack.c.b16 %v1329, %v1328
        %vm1338 = vcmask 523264
        %v1340 = vsel %vm1338, %v1298, 0
        %1342 = vmatprep.subr.bf16.mxu0 0
        %1343 = vmatpush1.bf16.msra.mxu0 0
        %1344 = vmatprep.subr.bf16.mxu0 0
        %1345 = vmatpush1.bf16.msra.mxu0 0
        %1346 = vmatprep.subr.bf16.mxu0 0
        %1347 = vmatpush1.bf16.msra.mxu0 0
        %1348 = vmatprep.subr.bf16.mxu0 0
        %1349 = vmatpush1.bf16.msra.mxu0 0
        %1350 = vmatprep.subr.bf16.mxu0 0
        %1351 = vmatpush1.bf16.msra.mxu0 %v1333
        %1352 = vmatprep.subr.bf16.mxu0 0
        %1353 = vmatpush1.bf16.msra.mxu0 %v1332
        %1354 = vmatprep.subr.bf16.mxu0 0
        %1355 = vmatpush1.bf16.msra.mxu0 %v1331
        %1356 = vmatprep.subr.bf16.mxu0 0
        %1357 = vmatpush1.bf16.msra.mxu0 %v1330
        %1358 = vmatprep.subr.bf16.mxu0 0
        %1359 = vmatpush2.bf16.msra.mxu0 0
        %1360 = vmatprep.subr.bf16.mxu0 0
        %1361 = vmatpush2.bf16.msra.mxu0 0
        %1362 = vmatprep.subr.bf16.mxu0 0
        %1363 = vmatpush2.bf16.msra.mxu0 0
        %1364 = vmatprep.subr.bf16.mxu0 0
        %1365 = vmatpush2.bf16.msra.mxu0 0
        %1366 = vmatprep.subr.bf16.mxu0 0
        %1367 = vmatpush2.bf16.msra.mxu0 0
        %1368 = vmatprep.subr.bf16.mxu0 0
        %1369 = vmatpush2.bf16.msra.mxu0 0
        %1370 = vmatprep.subr.bf16.mxu0 0
        %1371 = vmatpush2.bf16.msra.mxu0 0
        %1372 = vmatprep.subr.bf16.mxu0 0
        %1373 = vmatpush2.bf16.msra.mxu0 0
        %1374 = vmatprep.mubr.bf16.mxu0 0
        %1375 = vmatmul.mubr.bf16.gmra.mxu0 %v1340
        %v1376 = vpop.f32.mrf.mxu0
        %v1377 = vadd.f32 %v1312, %v1376
        %v1378 = vpop.f32.mrf.mxu0
        %v1379 = vpop.f32.mrf.mxu0
        %v1380 = vpop.f32.mrf.mxu0
        %1381 = vdwg.mxu0
        %v1382 = vadd.f32 %v1193, %v1377
        %1383 = vst.msk [vmem:[%s507] sm:$0xff] %vm514, %v1382
        %s1384 = sand.u32 %s344, 1
        %s1385 = scalar_lea.sflag [#allocation6], %s1384
        %s1386 = sand.u32 %s344, 1
        %s1387 = smul.addr %s1386, 8
        %s1388 = scalar_lea.vmem [#allocation9], %s1387
        // Predicated region
        $region85: #{tpu_custom_call.1} parent=75 // pred_check
          %p1389 = pneg %p354
        $region86: #{tpu_custom_call.1} parent=75 // pred_check_branch
          %1391 = sbr.rel (%p1389) target = $region88
        $region87: #{tpu_custom_call.1} parent=75 // pred_region
          %s1393 = ssub.s32 128, 128
          %1394 = vsyncadd %s1385, %s1393
          %s1395 = smul.addr %s32, 128
          %s1396 = scalar_lea.hbm %s14, %s1395
          %s1398 = sshll.u32 %s1388, 4
          %s1399 = int_to_ptr.vmem [resolvable:$true] %s1398
          %1401 = dma.vmem_to_hbm [thread:$0]  %s1399, 128, %s1396, %s1385
        $region88: #{tpu_custom_call.1} parent=75 // pred_fallthru
          _
      $region76: #{tpu_custom_call.1} parent=5 // pred_fallthru
        _
      %p1402 = scmp.le.s32.totalorder 2, %s27
      // Predicated region
      $region89: #{tpu_custom_call.1} parent=5 // pred_check
        %p1403 = pneg %p1402
      $region90: #{tpu_custom_call.1} parent=5 // pred_check_branch
        %1405 = sbr.rel (%p1403) target = $region92
      $region91: #{tpu_custom_call.1} parent=5 // pred_region
        %s1406 = ssub.s32 %s27, 2
        // Predicated region
        $region93: #{tpu_custom_call.1} parent=91 // pred_check
          %p1407 = pneg %p360
        $region94: #{tpu_custom_call.1} parent=91 // pred_check_branch
          %1409 = sbr.rel (%p1407) target = $region96
        $region95: #{tpu_custom_call.1} parent=91 // pred_region
          %s1410 = sand.u32 %s345, 1
          %s1411 = scalar_lea.sflag [#allocation6], %s1410
          %s1412 = sand.u32 %s345, 1
          %s1413 = smul.addr %s1412, 8
          %s1414 = scalar_lea.vmem [#allocation9], %s1413
          %1415 = dma.done %s1411, 128
        $region96: #{tpu_custom_call.1} parent=91 // pred_fallthru
          _
      $region92: #{tpu_custom_call.1} parent=5 // pred_fallthru
        _
    $region6: #{tpu_custom_call.1} parent=1 // loop_footer
      %s31 = sadd.s32 1, %s27
    $region7: #{tpu_custom_call.1} parent=1 // loop_footer_branch
      %26 = sbr.rel target = $region3
    $region8: #{tpu_custom_call.1} parent=1 // loop_exit
      _
    %1416 = vsyncpa [#allocation5], 1
    %s1417 = scalar_lea.sflag [#allocation5], 1
    %1418 = vsyncpa %s1417, 1
    %1419 = vsyncpa [#allocation8], 1
    %1420 = vsyncpa [#allocation6], 1
    %s1421 = scalar_lea.sflag [#allocation6], 1
    %1422 = vsyncpa %s1421, 1

</llo_original>
